<compile_context>
chip_gen: v6e
topology: v6e:2x2x1
jax: 0.10.0
libtpu: 0.0.40
codegen_flags: <defaults>
</compile_context>

<pallas_src>
import math
import jax
import jax.numpy as jnp
from jax.experimental import pallas as pl
from jax.experimental.pallas import tpu as pltpu


def _round_up(a: int, b: int) -> int:
    return (a + b - 1) // b * b


def _tpu_info():
    """Return (vmem_capacity_bytes, is_v5_or_older, is_multicore) with safe fallbacks."""
    vmem_cap = 128 * 1024 * 1024
    kind = ""
    try:
        kind = jax.devices()[0].device_kind.lower()
    except Exception:
        pass
    try:
        vmem_cap = int(pltpu.get_tpu_info().vmem_capacity_bytes)
    except Exception:
        pass
    is_old = any(t in kind for t in ("v2", "v3", "v4", "v5"))
    is_multicore = ("v7" in kind) or ((not is_old) and vmem_cap <= 64 * 1024 * 1024)
    return vmem_cap, is_old, is_multicore


def _default_use_bf16(x_dtype, is_v5_or_older):
    # bf16 MXU operands only pay off on v6e/v7x; v5e stays HBM-bound with f32.
    return (jnp.dtype(x_dtype) == jnp.float32) and (not is_v5_or_older)


def control_kernel(x_ref, wdT_ref, bd_ref, wu_ref, bu_ref, o_ref):
    # x_ref  : (tm, F)      activation row tile (input dtype)
    # wdT_ref: (F, R_pad)   down_proj.weight^T, rank zero-padded, compute dtype
    # bd_ref : (1, R_pad)   down_proj.bias (f32, rank zero-padded)
    # wu_ref : (R_pad, F)   up_proj.weight^T, rank zero-padded, compute dtype
    # bu_ref : (1, F)       up_proj.bias (f32)
    x = x_ref[...].astype(wdT_ref.dtype)          # VPU cast (bf16 on v6e/v7x; no-op otherwise)

    # down = x @ W_down^T + b_down  -> canonical (tm,F)@(F,R_pad) MXU matmul.
    down = jnp.dot(x, wdT_ref[...], preferred_element_type=jnp.float32)
    down = down + bd_ref[...]                     # bias add in f32
    down = down.astype(wu_ref.dtype)              # native MXU dtype for the up-projection

    # up = down @ W_up^T + b_up   (W_up stored pre-transposed as (R_pad, F)).
    up = jnp.dot(down, wu_ref[...], preferred_element_type=jnp.float32)
    up = up + bu_ref[...]
    o_ref[...] = up.astype(o_ref.dtype)


def control_module_forward(x, w_down, b_down, w_up, b_up, *, tm=None, use_bf16=None):
    """Forward of ControlModule.

    x      : [B, N, F]  activations
    w_down : [R, F]     == down_proj.weight (PyTorch layout)
    b_down : [R]        == down_proj.bias
    w_up   : [R, F]     == up_proj.weight.T (pre-transposed; lane-dense on F)
    b_up   : [F]        == up_proj.bias
    """
    B, N, F = x.shape
    R = w_down.shape[0]
    M = B * N
    x2 = x.reshape(M, F)

    vmem_cap, is_old, is_multicore = _tpu_info()
    if use_bf16 is None:
        use_bf16 = _default_use_bf16(x.dtype, is_old)
    compute_dtype = jnp.bfloat16 if use_bf16 else x.dtype

    itemsize_x = jnp.dtype(x.dtype).itemsize
    itemsize_w = jnp.dtype(compute_dtype).itemsize
    row_min = {4: 8, 2: 16, 1: 32}.get(itemsize_x, 8)

    # ---- pad the rank axis to a lane-dense multiple of 128 (exact: zero rank
    # rows/columns contribute nothing), pre-transpose W_down once, and cast the
    # weights to the compute dtype once (also halves their HBM traffic).
    R_pad = _round_up(R, 128)
    wdT = jnp.pad(w_down, ((0, R_pad - R), (0, 0))).T.astype(compute_dtype)   # (F, R_pad)
    wu2 = jnp.pad(w_up, ((0, R_pad - R), (0, 0))).astype(compute_dtype)       # (R_pad, F)
    bd2 = jnp.pad(b_down, (0, R_pad - R)).reshape(1, R_pad).astype(jnp.float32)
    bu2 = b_up.reshape(1, F).astype(jnp.float32)

    # ---- VMEM accounting (generation aware).
    # Resident weight blocks (conservatively counted double-buffered) + f32 biases.
    fixed_bytes = 2 * (2 * R_pad * F * itemsize_w) + 2 * 4 * (R_pad + F)
    # Per-row: x tile (x2 buffers) + out tile (x2 buffers) + f32 `up` + f32 `down`
    # intermediates + compute-dtype copies of x / down when casting.
    per_row_bytes = (2 * F * itemsize_x) + (2 * F * itemsize_x) + 4 * F + 4 * R_pad
    if jnp.dtype(compute_dtype) != jnp.dtype(x.dtype):
        per_row_bytes += itemsize_w * (F + R_pad)

    # ~96 MiB budget on 128 MiB parts (v5e/v6e), ~48 MiB on 64 MiB parts (v7x).
    budget = min(vmem_cap * 3 // 4, vmem_cap - (16 << 20))
    internal = 2 * 1024 * 1024          # Mosaic internal-scratch headroom

    if tm is None:
        avail = budget - fixed_bytes - internal
        if avail < per_row_bytes * row_min:
            tm_cap = row_min            # degenerate guard: weights barely fit
        else:
            tm_cap = max(row_min,
                         min(1024, (avail // per_row_bytes) // row_min * row_min))
        tm = min(tm_cap, _round_up(M, row_min))
    tm = max(row_min, _round_up(int(tm), row_min))

    grid = pl.cdiv(M, tm)
    if is_multicore:
        # Keep the ("parallel",) grid even so both TensorCores get equal work.
        if grid % 2 == 1 and M >= 2 * row_min:
            tm = max(row_min, _round_up(pl.cdiv(M, grid + 1), row_min))
            grid = pl.cdiv(M, tm)
    elif grid == 1 and M >= 512:
        # Single TC: >=2 steps lets input DMA / compute / output DMA overlap.
        tm = max(row_min, _round_up(pl.cdiv(M, 2), row_min))
        grid = pl.cdiv(M, tm)
    if grid == 1:
        tm = M                          # single block == full extent (always legal)

    vmem_need = tm * per_row_bytes + fixed_bytes + internal
    vmem_limit = int(min(max(vmem_need, 32 * 1024 * 1024), budget))

    weight_bytes = 2 * R_pad * F * itemsize_w + 4 * (R_pad + F)
    cost = pl.CostEstimate(
        flops=4 * M * F * R,            # real rank, not R_pad
        transcendentals=0,
        bytes_accessed=2 * M * F * itemsize_x + weight_bytes,
    )

    out = pl.pallas_call(
        control_kernel,
        out_shape=jax.ShapeDtypeStruct((M, F), x.dtype),
        grid_spec=pltpu.PrefetchScalarGridSpec(
            num_scalar_prefetch=0,
            grid=(grid,),
            in_specs=[
                pl.BlockSpec((tm, F), lambda i: (i, 0)),       # x row tile
                pl.BlockSpec((F, R_pad), lambda i: (0, 0)),    # W_down^T (resident)
                pl.BlockSpec((1, R_pad), lambda i: (0, 0)),    # b_down (f32)
                pl.BlockSpec((R_pad, F), lambda i: (0, 0)),    # W_up^T (resident)
                pl.BlockSpec((1, F), lambda i: (0, 0)),        # b_up (f32)
            ],
            out_specs=pl.BlockSpec((tm, F), lambda i: (i, 0)),
        ),
        compiler_params=pltpu.CompilerParams(
            dimension_semantics=("parallel",),
            vmem_limit_bytes=vmem_limit,
        ),
        cost_estimate=cost,
    )(x2, wdT, bd2, wu2, bu2)

    return out.reshape(B, N, F)


def init_params(key, num_features, control_rank, dtype=jnp.float32):
    """Matches the PyTorch __init__:
       - down_proj.weight: kaiming_uniform_(a=sqrt(5)) -> U(-1/sqrt(F), 1/sqrt(F))
       - down_proj.bias:   zeros
       - up_proj.weight:   zeros   (returned here already transposed to (R, F))
       - up_proj.bias:     zeros
    """
    bound = 1.0 / math.sqrt(num_features)
    w_down = jax.random.uniform(
        key, (control_rank, num_features), dtype=dtype, minval=-bound, maxval=bound
    )
    b_down = jnp.zeros((control_rank,), dtype=dtype)
    w_up = jnp.zeros((control_rank, num_features), dtype=dtype)  # up_proj.weight.T
    b_up = jnp.zeros((num_features,), dtype=dtype)
    return w_down, b_down, w_up, b_up


def _reference(x, w_down, b_down, w_up, b_up, use_bf16):
    # Mirrors the kernel's numerics (bf16 operands + f32 accumulation when
    # use_bf16, pure input dtype otherwise).
    cdt = jnp.bfloat16 if use_bf16 else x.dtype
    down = jnp.dot(x.astype(cdt), w_down.T.astype(cdt),
                   preferred_element_type=jnp.float32) + b_down.astype(jnp.float32)
    up = jnp.dot(down.astype(cdt), w_up.astype(cdt),
                 preferred_element_type=jnp.float32) + b_up.astype(jnp.float32)
    return up.astype(x.dtype)


if __name__ == "__main__":
    key = jax.random.PRNGKey(0)
    _, _is_old, _ = _tpu_info()

    # ---- case 1: ViT-like defaults (B=2, N=197, F=768, R=8) — ragged M=394
    # exercises the partial-block path (no wrapper pad / slice).
    B, N, F, R = 2, 197, 768, 8
    k1, k2, k3, k4, k5, key = jax.random.split(key, 6)
    x = jax.random.normal(k1, (B, N, F), dtype=jnp.float32)
    w_down = jax.random.normal(k2, (R, F), dtype=jnp.float32) / math.sqrt(F)
    b_down = jax.random.normal(k3, (R,), dtype=jnp.float32) * 0.1
    w_up = jax.random.normal(k4, (R, F), dtype=jnp.float32) / math.sqrt(R)
    b_up = jax.random.normal(k5, (F,), dtype=jnp.float32) * 0.1

    use_bf16 = _default_use_bf16(x.dtype, _is_old)
    tol = 5e-3 if use_bf16 else 1e-3

    out = jax.block_until_ready(
        control_module_forward(x, w_down, b_down, w_up, b_up, use_bf16=use_bf16))
    ref = _reference(x, w_down, b_down, w_up, b_up, use_bf16)
    assert out.shape == (B, N, F)
    assert jnp.allclose(out, ref, atol=tol, rtol=tol), float(jnp.abs(out - ref).max())

    # ---- case 2: multi-tile grid (M = 1024) + module init (up_proj zeros ->
    # the adapter must be an exact zero function at init).
    B2, N2, F2, R2 = 4, 256, 256, 8
    kx, kw = jax.random.split(key)
    x_b = jax.random.normal(kx, (B2, N2, F2), dtype=jnp.float32)
    wd_b, bd_b, wu_b, bu_b = init_params(kw, num_features=F2, control_rank=R2)
    out2 = jax.block_until_ready(
        control_module_forward(x_b, wd_b, bd_b, wu_b, bu_b, use_bf16=use_bf16))
    ref2 = _reference(x_b, wd_b, bd_b, wu_b, bu_b, use_bf16)
    assert out2.shape == (B2, N2, F2)
    assert jnp.allclose(out2, ref2, atol=tol, rtol=tol), float(jnp.abs(out2 - ref2).max())
    assert jnp.allclose(out2, jnp.zeros_like(out2), atol=tol)

    print("KERNEL_OK")
</pallas_src>

<mosaic_0001>
module attributes {stable_mosaic.version = 11 : i64} {
  func.func @control_kernel(%arg0: i32, %arg1: memref<394x768xf32, #tpu.memory_space<vmem>>, %arg2: memref<768x128xbf16, #tpu.memory_space<vmem>>, %arg3: memref<1x128xf32, #tpu.memory_space<vmem>>, %arg4: memref<128x768xbf16, #tpu.memory_space<vmem>>, %arg5: memref<1x768xf32, #tpu.memory_space<vmem>>, %arg6: memref<394x768xf32, #tpu.memory_space<vmem>>) attributes {dimension_semantics = [#tpu.dimension_semantics<parallel>], iteration_bounds = array<i64: 1>, scalar_prefetch = 0 : i64, scratch_operands = 0 : i64, tpu.core_type = #tpu.core_type<tc>, window_params = [{transform_indices = @transform_0, window_bounds = array<i64: 394, 768>}, {pipeline_mode = #tpu.pipeline_mode<synchronous>, transform_indices = @transform_1, window_bounds = array<i64: 768, 128>}, {pipeline_mode = #tpu.pipeline_mode<synchronous>, transform_indices = @transform_2, window_bounds = array<i64: 1, 128>}, {pipeline_mode = #tpu.pipeline_mode<synchronous>, transform_indices = @transform_3, window_bounds = array<i64: 128, 768>}, {pipeline_mode = #tpu.pipeline_mode<synchronous>, transform_indices = @transform_4, window_bounds = array<i64: 1, 768>}, {transform_indices = @transform_5, window_bounds = array<i64: 394, 768>}]} {
    %c0 = arith.constant 0 : index
    %c0_0 = arith.constant 0 : index
    %0 = vector.load %arg1[%c0, %c0_0] : memref<394x768xf32, #tpu.memory_space<vmem>>, vector<394x768xf32>
    %1 = arith.truncf %0 : vector<394x768xf32> to vector<394x768xbf16>
    %c0_1 = arith.constant 0 : index
    %c0_2 = arith.constant 0 : index
    %2 = vector.load %arg2[%c0_1, %c0_2] : memref<768x128xbf16, #tpu.memory_space<vmem>>, vector<768x128xbf16>
    %cst = arith.constant dense<0.000000e+00> : vector<394x128xf32>
    %3 = tpu.matmul %1, %2, %cst {dimension_numbers = #tpu.dot_dimension_numbers<[1], [0], [0], [1], [0, 0, 1, 1], [], []>} : vector<394x768xbf16>, vector<768x128xbf16>, vector<394x128xf32> -> vector<394x128xf32>
    %c0_3 = arith.constant 0 : index
    %c0_4 = arith.constant 0 : index
    %4 = vector.load %arg3[%c0_3, %c0_4] : memref<1x128xf32, #tpu.memory_space<vmem>>, vector<1x128xf32>
    %5 = vector.broadcast %4 : vector<1x128xf32> to vector<394x128xf32>
    %6 = arith.addf %3, %5 : vector<394x128xf32>
    %7 = arith.truncf %6 : vector<394x128xf32> to vector<394x128xbf16>
    %c0_5 = arith.constant 0 : index
    %c0_6 = arith.constant 0 : index
    %8 = vector.load %arg4[%c0_5, %c0_6] : memref<128x768xbf16, #tpu.memory_space<vmem>>, vector<128x768xbf16>
    %cst_7 = arith.constant dense<0.000000e+00> : vector<394x768xf32>
    %9 = tpu.matmul %7, %8, %cst_7 {dimension_numbers = #tpu.dot_dimension_numbers<[1], [0], [0], [1], [0, 0, 1, 1], [], []>} : vector<394x128xbf16>, vector<128x768xbf16>, vector<394x768xf32> -> vector<394x768xf32>
    %c0_8 = arith.constant 0 : index
    %c0_9 = arith.constant 0 : index
    %10 = vector.load %arg5[%c0_8, %c0_9] : memref<1x768xf32, #tpu.memory_space<vmem>>, vector<1x768xf32>
    %11 = vector.broadcast %10 : vector<1x768xf32> to vector<394x768xf32>
    %12 = arith.addf %9, %11 : vector<394x768xf32>
    %c0_10 = arith.constant 0 : index
    %c0_11 = arith.constant 0 : index
    %13 = vector.load %arg6[%c0_10, %c0_11] : memref<394x768xf32, #tpu.memory_space<vmem>>, vector<394x768xf32>
    tpu.vector_store %arg6[%c0_10, %c0_11], %12 {strides = array<i32>} : memref<394x768xf32, #tpu.memory_space<vmem>>, vector<394x768xf32>,
    return
  }
  func.func @transform_0(%arg0: i32) -> (i32, i32) {
    %c0_i32 = arith.constant 0 : i32
    %c0_i32_0 = arith.constant 0 : i32
    return %arg0, %c0_i32 : i32, i32
  }
  func.func @transform_1(%arg0: i32) -> (i32, i32) {
    %c0_i32 = arith.constant 0 : i32
    %c0_i32_0 = arith.constant 0 : i32
    %c0_i32_1 = arith.constant 0 : i32
    return %c0_i32, %c0_i32_0 : i32, i32
  }
  func.func @transform_2(%arg0: i32) -> (i32, i32) {
    %c0_i32 = arith.constant 0 : i32
    %c0_i32_0 = arith.constant 0 : i32
    %c0_i32_1 = arith.constant 0 : i32
    return %c0_i32, %c0_i32_0 : i32, i32
  }
  func.func @transform_3(%arg0: i32) -> (i32, i32) {
    %c0_i32 = arith.constant 0 : i32
    %c0_i32_0 = arith.constant 0 : i32
    %c0_i32_1 = arith.constant 0 : i32
    return %c0_i32, %c0_i32_0 : i32, i32
  }
  func.func @transform_4(%arg0: i32) -> (i32, i32) {
    %c0_i32 = arith.constant 0 : i32
    %c0_i32_0 = arith.constant 0 : i32
    %c0_i32_1 = arith.constant 0 : i32
    return %c0_i32, %c0_i32_0 : i32, i32
  }
  func.func @transform_5(%arg0: i32) -> (i32, i32) {
    %c0_i32 = arith.constant 0 : i32
    %c0_i32_0 = arith.constant 0 : i32
    return %arg0, %c0_i32 : i32, i32
  }
}

</mosaic_0001>

<llo_original>
// kernel: tpu_custom_call.1
$region0: #{tpu_custom_call.1}
  #allocation0 [shape = 'u32[]', space=smem, size = 0x4, offset = 0x4, fixed_abs, tag = 'smem constant byte address 0x4 - core index']
  #allocation1 [shape = 'u32[144,128]{1,0:T(1,128)}', space=vmem, size = 0x12000, scoped, tag = 'internal scratch']
  %s0 = inlined_call_operand.hbm [shape: f32[394,768], index: 0, kind: input, shape index: {}]
  %s1 = inlined_call_operand.hbm [shape: bf16[768,128], index: 1, kind: input, shape index: {}]
  %s2 = inlined_call_operand.hbm [shape: f32[1,128], index: 2, kind: input, shape index: {}]
  %s3 = inlined_call_operand.hbm [shape: bf16[128,768], index: 3, kind: input, shape index: {}]
  %s4 = inlined_call_operand.hbm [shape: f32[1,768], index: 4, kind: input, shape index: {}]
  %s5 = inlined_call_operand.hbm [shape: f32[394,768], index: 5, kind: output, shape index: {}]
  %s6 = sld [smem:[#allocation0]]
  $region50: #{tpu_custom_call.1} parent=0
    _
  %s8 = ssub.s32 1, %s6
  %s9 = scalar_select 0, %s8, %s6
  $region1: #{tpu_custom_call.1} parent=0
    #allocation2 [shape = 'u8[1228800]{0}', space=vmem, size = 0x12c000, scoped, tag = 'input window, operand 0, single buffered']
    #allocation3 [shape = 's32[1]{0}', space=sflag, size = 0x4, scoped, tag = 'scoped memory for tpu_custom_call.1']
    #allocation4 [shape = 's32[1]{0}', space=sflag, size = 0x4, scoped, tag = 'scoped memory for tpu_custom_call.1']
    #allocation5 [shape = 'u8[196608]{0}', space=vmem, size = 0x30000, scoped, tag = 'input window, operand 1, single buffered']
    #allocation6 [shape = 's32[1]{0}', space=sflag, size = 0x4, scoped, tag = 'scoped memory for tpu_custom_call.1']
    #allocation7 [shape = 'u8[512]{0}', space=vmem, size = 0x400, scoped, tag = 'input window, operand 2, single buffered']
    #allocation8 [shape = 'u8[196608]{0}', space=vmem, size = 0x30000, scoped, tag = 'input window, operand 3, single buffered']
    #allocation9 [shape = 's32[1]{0}', space=sflag, size = 0x4, scoped, tag = 'scoped memory for tpu_custom_call.1']
    #allocation10 [shape = 'u8[3072]{0}', space=vmem, size = 0xc00, scoped, tag = 'input window, operand 4, single buffered']
    #allocation11 [shape = 'u8[1228800]{0}', space=vmem, size = 0x12c000, scoped, tag = 'output window, operand 0, single buffered']
    %10 = vsyncpa [#allocation3], 0
    %11 = vsyncpa [#allocation6], 0
    %12 = vsyncpa [#allocation9], 0
    %13 = vsyncpa [#allocation4], 0
    // Predicated region
    $region2: #{tpu_custom_call.1} parent=1 // pred_check
      _
    $region3: #{tpu_custom_call.1} parent=1 // pred_check_branch
      %15 = sbr.rel (0) target = $region5
    $region4: #{tpu_custom_call.1} parent=1 // pred_region
      %s17 = ssub.s32 38400, 38400
      %18 = vsyncadd [#allocation3], %s17
      %s19 = sshll.u32 [#allocation2], 4
      %s20 = int_to_ptr.vmem [resolvable:$true] %s19
      %25 = dma.hbm_to_vmem [thread:$0]  %s0, 38400, %s20, [#allocation3], 768, 768, 48
    $region5: #{tpu_custom_call.1} parent=1 // pred_fallthru
      _
    // Predicated region
    $region6: #{tpu_custom_call.1} parent=1 // pred_check
      _
    $region7: #{tpu_custom_call.1} parent=1 // pred_check_branch
      %27 = sbr.rel (0) target = $region9
    $region8: #{tpu_custom_call.1} parent=1 // pred_region
      %s29 = ssub.s32 6144, 6144
      %30 = vsyncadd [#allocation6], %s29
      %s31 = sshll.u32 [#allocation5], 4
      %s32 = int_to_ptr.vmem [resolvable:$true] %s31
      %37 = dma.hbm_to_vmem [thread:$0]  %s1, 6144, %s32, [#allocation6], 64, 64, 4
    $region9: #{tpu_custom_call.1} parent=1 // pred_fallthru
      _
    // Predicated region
    $region10: #{tpu_custom_call.1} parent=1 // pred_check
      _
    $region11: #{tpu_custom_call.1} parent=1 // pred_check_branch
      %39 = sbr.rel (0) target = $region13
    $region12: #{tpu_custom_call.1} parent=1 // pred_region
      %s41 = ssub.s32 16, 16
      %42 = vsyncadd [#allocation6], %s41
      %s44 = sshll.u32 [#allocation7], 4
      %s45 = int_to_ptr.vmem [resolvable:$true] %s44
      %47 = dma.hbm_to_vmem [thread:$0]  %s2, 16, %s45, [#allocation6]
    $region13: #{tpu_custom_call.1} parent=1 // pred_fallthru
      _
    // Predicated region
    $region14: #{tpu_custom_call.1} parent=1 // pred_check
      _
    $region15: #{tpu_custom_call.1} parent=1 // pred_check_branch
      %49 = sbr.rel (0) target = $region17
    $region16: #{tpu_custom_call.1} parent=1 // pred_region
      %s51 = ssub.s32 6144, 6144
      %52 = vsyncadd [#allocation9], %s51
      %s53 = sshll.u32 [#allocation8], 4
      %s54 = int_to_ptr.vmem [resolvable:$true] %s53
      %59 = dma.hbm_to_vmem [thread:$0]  %s3, 6144, %s54, [#allocation9], 384, 384, 24
    $region17: #{tpu_custom_call.1} parent=1 // pred_fallthru
      _
    // Predicated region
    $region18: #{tpu_custom_call.1} parent=1 // pred_check
      _
    $region19: #{tpu_custom_call.1} parent=1 // pred_check_branch
      %61 = sbr.rel (0) target = $region21
    $region20: #{tpu_custom_call.1} parent=1 // pred_region
      %s63 = ssub.s32 96, 96
      %64 = vsyncadd [#allocation9], %s63
      %s66 = sshll.u32 [#allocation10], 4
      %s67 = int_to_ptr.vmem [resolvable:$true] %s66
      %69 = dma.hbm_to_vmem [thread:$0]  %s4, 96, %s67, [#allocation9]
    $region21: #{tpu_custom_call.1} parent=1 // pred_fallthru
      _
    // Predicated region
    $region22: #{tpu_custom_call.1} parent=1 // pred_check
      _
    $region23: #{tpu_custom_call.1} parent=1 // pred_check_branch
      %71 = sbr.rel (0) target = $region25
    $region24: #{tpu_custom_call.1} parent=1 // pred_region
      %72 = dma.done [#allocation3], 38400
    $region25: #{tpu_custom_call.1} parent=1 // pred_fallthru
      _
    // Predicated region
    $region26: #{tpu_custom_call.1} parent=1 // pred_check
      _
    $region27: #{tpu_custom_call.1} parent=1 // pred_check_branch
      %74 = sbr.rel (0) target = $region29
    $region28: #{tpu_custom_call.1} parent=1 // pred_region
      %75 = dma.done [#allocation6], 6144
    $region29: #{tpu_custom_call.1} parent=1 // pred_fallthru
      _
    // Predicated region
    $region30: #{tpu_custom_call.1} parent=1 // pred_check
      _
    $region31: #{tpu_custom_call.1} parent=1 // pred_check_branch
      %77 = sbr.rel (0) target = $region33
    $region32: #{tpu_custom_call.1} parent=1 // pred_region
      %78 = dma.done [#allocation6], 16
    $region33: #{tpu_custom_call.1} parent=1 // pred_fallthru
      _
    // Predicated region
    $region34: #{tpu_custom_call.1} parent=1 // pred_check
      _
    $region35: #{tpu_custom_call.1} parent=1 // pred_check_branch
      %80 = sbr.rel (0) target = $region37
    $region36: #{tpu_custom_call.1} parent=1 // pred_region
      %81 = dma.done [#allocation9], 6144
    $region37: #{tpu_custom_call.1} parent=1 // pred_fallthru
      _
    // Predicated region
    $region38: #{tpu_custom_call.1} parent=1 // pred_check
      _
    $region39: #{tpu_custom_call.1} parent=1 // pred_check_branch
      %83 = sbr.rel (0) target = $region41
    $region40: #{tpu_custom_call.1} parent=1 // pred_region
      %84 = dma.done [#allocation9], 96
    $region41: #{tpu_custom_call.1} parent=1 // pred_fallthru
      _
    %v86 = vld [vmem:[#allocation2] sm:$0xff]
    %v87 = vld [vmem:[#allocation2 + $0x8] sm:$0xff]
    %v88 = vld [vmem:[#allocation2 + $0x10] sm:$0xff]
    %v89 = vld [vmem:[#allocation2 + $0x18] sm:$0xff]
    %v90 = vld [vmem:[#allocation2 + $0x20] sm:$0xff]
    %v91 = vld [vmem:[#allocation2 + $0x28] sm:$0xff]
    %v92 = vld [vmem:[#allocation2 + $0x30] sm:$0xff]
    %v93 = vld [vmem:[#allocation2 + $0x38] sm:$0xff]
    %v94 = vld [vmem:[#allocation2 + $0x40] sm:$0xff]
    %v95 = vld [vmem:[#allocation2 + $0x48] sm:$0xff]
    %v96 = vld [vmem:[#allocation2 + $0x50] sm:$0xff]
    %v97 = vld [vmem:[#allocation2 + $0x58] sm:$0xff]
    %v98 = vld [vmem:[#allocation2 + $0x60] sm:$0xff]
    %v99 = vld [vmem:[#allocation2 + $0x68] sm:$0xff]
    %v100 = vld [vmem:[#allocation2 + $0x70] sm:$0xff]
    %v101 = vld [vmem:[#allocation2 + $0x78] sm:$0xff]
    %v102 = vld [vmem:[#allocation2 + $0x80] sm:$0xff]
    %v103 = vld [vmem:[#allocation2 + $0x88] sm:$0xff]
    %v104 = vld [vmem:[#allocation2 + $0x90] sm:$0xff]
    %v105 = vld [vmem:[#allocation2 + $0x98] sm:$0xff]
    %v106 = vld [vmem:[#allocation2 + $0xa0] sm:$0xff]
    %v107 = vld [vmem:[#allocation2 + $0xa8] sm:$0xff]
    %v108 = vld [vmem:[#allocation2 + $0xb0] sm:$0xff]
    %v109 = vld [vmem:[#allocation2 + $0xb8] sm:$0xff]
    %v110 = vld [vmem:[#allocation2 + $0xc0] sm:$0xff]
    %v111 = vld [vmem:[#allocation2 + $0xc8] sm:$0xff]
    %v112 = vld [vmem:[#allocation2 + $0xd0] sm:$0xff]
    %v113 = vld [vmem:[#allocation2 + $0xd8] sm:$0xff]
    %v114 = vld [vmem:[#allocation2 + $0xe0] sm:$0xff]
    %v115 = vld [vmem:[#allocation2 + $0xe8] sm:$0xff]
    %v116 = vld [vmem:[#allocation2 + $0xf0] sm:$0xff]
    %v117 = vld [vmem:[#allocation2 + $0xf8] sm:$0xff]
    %v118 = vld [vmem:[#allocation2 + $0x100] sm:$0xff]
    %v119 = vld [vmem:[#allocation2 + $0x108] sm:$0xff]
    %v120 = vld [vmem:[#allocation2 + $0x110] sm:$0xff]
    %v121 = vld [vmem:[#allocation2 + $0x118] sm:$0xff]
    %v122 = vld [vmem:[#allocation2 + $0x120] sm:$0xff]
    %v123 = vld [vmem:[#allocation2 + $0x128] sm:$0xff]
    %v124 = vld [vmem:[#allocation2 + $0x130] sm:$0xff]
    %v125 = vld [vmem:[#allocation2 + $0x138] sm:$0xff]
    %v126 = vld [vmem:[#allocation2 + $0x140] sm:$0xff]
    %v127 = vld [vmem:[#allocation2 + $0x148] sm:$0xff]
    %v128 = vld [vmem:[#allocation2 + $0x150] sm:$0xff]
    %v129 = vld [vmem:[#allocation2 + $0x158] sm:$0xff]
    %v130 = vld [vmem:[#allocation2 + $0x160] sm:$0xff]
    %v131 = vld [vmem:[#allocation2 + $0x168] sm:$0xff]
    %v132 = vld [vmem:[#allocation2 + $0x170] sm:$0xff]
    %v133 = vld [vmem:[#allocation2 + $0x178] sm:$0xff]
    %v134 = vld [vmem:[#allocation2 + $0x180] sm:$0xff]
    %v135 = vld [vmem:[#allocation2 + $0x188] sm:$0xff]
    %v136 = vld [vmem:[#allocation2 + $0x190] sm:$0xff]
    %v137 = vld [vmem:[#allocation2 + $0x198] sm:$0xff]
    %v138 = vld [vmem:[#allocation2 + $0x1a0] sm:$0xff]
    %v139 = vld [vmem:[#allocation2 + $0x1a8] sm:$0xff]
    %v140 = vld [vmem:[#allocation2 + $0x1b0] sm:$0xff]
    %v141 = vld [vmem:[#allocation2 + $0x1b8] sm:$0xff]
    %v142 = vld [vmem:[#allocation2 + $0x1c0] sm:$0xff]
    %v143 = vld [vmem:[#allocation2 + $0x1c8] sm:$0xff]
    %v144 = vld [vmem:[#allocation2 + $0x1d0] sm:$0xff]
    %v145 = vld [vmem:[#allocation2 + $0x1d8] sm:$0xff]
    %v146 = vld [vmem:[#allocation2 + $0x1e0] sm:$0xff]
    %v147 = vld [vmem:[#allocation2 + $0x1e8] sm:$0xff]
    %v148 = vld [vmem:[#allocation2 + $0x1f0] sm:$0xff]
    %v149 = vld [vmem:[#allocation2 + $0x1f8] sm:$0xff]
    %v150 = vld [vmem:[#allocation2 + $0x200] sm:$0xff]
    %v151 = vld [vmem:[#allocation2 + $0x208] sm:$0xff]
    %v152 = vld [vmem:[#allocation2 + $0x210] sm:$0xff]
    %v153 = vld [vmem:[#allocation2 + $0x218] sm:$0xff]
    %v154 = vld [vmem:[#allocation2 + $0x220] sm:$0xff]
    %v155 = vld [vmem:[#allocation2 + $0x228] sm:$0xff]
    %v156 = vld [vmem:[#allocation2 + $0x230] sm:$0xff]
    %v157 = vld [vmem:[#allocation2 + $0x238] sm:$0xff]
    %v158 = vld [vmem:[#allocation2 + $0x240] sm:$0xff]
    %v159 = vld [vmem:[#allocation2 + $0x248] sm:$0xff]
    %v160 = vld [vmem:[#allocation2 + $0x250] sm:$0xff]
    %v161 = vld [vmem:[#allocation2 + $0x258] sm:$0xff]
    %v162 = vld [vmem:[#allocation2 + $0x260] sm:$0xff]
    %v163 = vld [vmem:[#allocation2 + $0x268] sm:$0xff]
    %v164 = vld [vmem:[#allocation2 + $0x270] sm:$0xff]
    %v165 = vld [vmem:[#allocation2 + $0x278] sm:$0xff]
    %v166 = vld [vmem:[#allocation2 + $0x280] sm:$0xff]
    %v167 = vld [vmem:[#allocation2 + $0x288] sm:$0xff]
    %v168 = vld [vmem:[#allocation2 + $0x290] sm:$0xff]
    %v169 = vld [vmem:[#allocation2 + $0x298] sm:$0xff]
    %v170 = vld [vmem:[#allocation2 + $0x2a0] sm:$0xff]
    %v171 = vld [vmem:[#allocation2 + $0x2a8] sm:$0xff]
    %v172 = vld [vmem:[#allocation2 + $0x2b0] sm:$0xff]
    %v173 = vld [vmem:[#allocation2 + $0x2b8] sm:$0xff]
    %v174 = vld [vmem:[#allocation2 + $0x2c0] sm:$0xff]
    %v175 = vld [vmem:[#allocation2 + $0x2c8] sm:$0xff]
    %v176 = vld [vmem:[#allocation2 + $0x2d0] sm:$0xff]
    %v177 = vld [vmem:[#allocation2 + $0x2d8] sm:$0xff]
    %v178 = vld [vmem:[#allocation2 + $0x2e0] sm:$0xff]
    %v179 = vld [vmem:[#allocation2 + $0x2e8] sm:$0xff]
    %v180 = vld [vmem:[#allocation2 + $0x2f0] sm:$0xff]
    %v181 = vld [vmem:[#allocation2 + $0x2f8] sm:$0xff]
    %v182 = vld [vmem:[#allocation2 + $0x300] sm:$0xff]
    %v183 = vld [vmem:[#allocation2 + $0x308] sm:$0xff]
    %v184 = vld [vmem:[#allocation2 + $0x310] sm:$0xff]
    %v185 = vld [vmem:[#allocation2 + $0x318] sm:$0xff]
    %v186 = vld [vmem:[#allocation2 + $0x320] sm:$0xff]
    %v187 = vld [vmem:[#allocation2 + $0x328] sm:$0xff]
    %v188 = vld [vmem:[#allocation2 + $0x330] sm:$0xff]
    %v189 = vld [vmem:[#allocation2 + $0x338] sm:$0xff]
    %v190 = vld [vmem:[#allocation2 + $0x340] sm:$0xff]
    %v191 = vld [vmem:[#allocation2 + $0x348] sm:$0xff]
    %v192 = vld [vmem:[#allocation2 + $0x350] sm:$0xff]
    %v193 = vld [vmem:[#allocation2 + $0x358] sm:$0xff]
    %v194 = vld [vmem:[#allocation2 + $0x360] sm:$0xff]
    %v195 = vld [vmem:[#allocation2 + $0x368] sm:$0xff]
    %v196 = vld [vmem:[#allocation2 + $0x370] sm:$0xff]
    %v197 = vld [vmem:[#allocation2 + $0x378] sm:$0xff]
    %v198 = vld [vmem:[#allocation2 + $0x380] sm:$0xff]
    %v199 = vld [vmem:[#allocation2 + $0x388] sm:$0xff]
    %v200 = vld [vmem:[#allocation2 + $0x390] sm:$0xff]
    %v201 = vld [vmem:[#allocation2 + $0x398] sm:$0xff]
    %v202 = vld [vmem:[#allocation2 + $0x3a0] sm:$0xff]
    %v203 = vld [vmem:[#allocation2 + $0x3a8] sm:$0xff]
    %v204 = vld [vmem:[#allocation2 + $0x3b0] sm:$0xff]
    %v205 = vld [vmem:[#allocation2 + $0x3b8] sm:$0xff]
    %v206 = vld [vmem:[#allocation2 + $0x3c0] sm:$0xff]
    %v207 = vld [vmem:[#allocation2 + $0x3c8] sm:$0xff]
    %v208 = vld [vmem:[#allocation2 + $0x3d0] sm:$0xff]
    %v209 = vld [vmem:[#allocation2 + $0x3d8] sm:$0xff]
    %v210 = vld [vmem:[#allocation2 + $0x3e0] sm:$0xff]
    %v211 = vld [vmem:[#allocation2 + $0x3e8] sm:$0xff]
    %v212 = vld [vmem:[#allocation2 + $0x3f0] sm:$0xff]
    %v213 = vld [vmem:[#allocation2 + $0x3f8] sm:$0xff]
    %v214 = vld [vmem:[#allocation2 + $0x400] sm:$0xff]
    %v215 = vld [vmem:[#allocation2 + $0x408] sm:$0xff]
    %v216 = vld [vmem:[#allocation2 + $0x410] sm:$0xff]
    %v217 = vld [vmem:[#allocation2 + $0x418] sm:$0xff]
    %v218 = vld [vmem:[#allocation2 + $0x420] sm:$0xff]
    %v219 = vld [vmem:[#allocation2 + $0x428] sm:$0xff]
    %v220 = vld [vmem:[#allocation2 + $0x430] sm:$0xff]
    %v221 = vld [vmem:[#allocation2 + $0x438] sm:$0xff]
    %v222 = vld [vmem:[#allocation2 + $0x440] sm:$0xff]
    %v223 = vld [vmem:[#allocation2 + $0x448] sm:$0xff]
    %v224 = vld [vmem:[#allocation2 + $0x450] sm:$0xff]
    %v225 = vld [vmem:[#allocation2 + $0x458] sm:$0xff]
    %v226 = vld [vmem:[#allocation2 + $0x460] sm:$0xff]
    %v227 = vld [vmem:[#allocation2 + $0x468] sm:$0xff]
    %v228 = vld [vmem:[#allocation2 + $0x470] sm:$0xff]
    %v229 = vld [vmem:[#allocation2 + $0x478] sm:$0xff]
    %v230 = vld [vmem:[#allocation2 + $0x480] sm:$0xff]
    %v231 = vld [vmem:[#allocation2 + $0x488] sm:$0xff]
    %v232 = vld [vmem:[#allocation2 + $0x490] sm:$0xff]
    %v233 = vld [vmem:[#allocation2 + $0x498] sm:$0xff]
    %v234 = vld [vmem:[#allocation2 + $0x4a0] sm:$0xff]
    %v235 = vld [vmem:[#allocation2 + $0x4a8] sm:$0xff]
    %v236 = vld [vmem:[#allocation2 + $0x4b0] sm:$0xff]
    %v237 = vld [vmem:[#allocation2 + $0x4b8] sm:$0xff]
    %v238 = vld [vmem:[#allocation2 + $0x4c0] sm:$0xff]
    %v239 = vld [vmem:[#allocation2 + $0x4c8] sm:$0xff]
    %v240 = vld [vmem:[#allocation2 + $0x4d0] sm:$0xff]
    %v241 = vld [vmem:[#allocation2 + $0x4d8] sm:$0xff]
    %v242 = vld [vmem:[#allocation2 + $0x4e0] sm:$0xff]
    %v243 = vld [vmem:[#allocation2 + $0x4e8] sm:$0xff]
    %v244 = vld [vmem:[#allocation2 + $0x4f0] sm:$0xff]
    %v245 = vld [vmem:[#allocation2 + $0x4f8] sm:$0xff]
    %v246 = vld [vmem:[#allocation2 + $0x500] sm:$0xff]
    %v247 = vld [vmem:[#allocation2 + $0x508] sm:$0xff]
    %v248 = vld [vmem:[#allocation2 + $0x510] sm:$0xff]
    %v249 = vld [vmem:[#allocation2 + $0x518] sm:$0xff]
    %v250 = vld [vmem:[#allocation2 + $0x520] sm:$0xff]
    %v251 = vld [vmem:[#allocation2 + $0x528] sm:$0xff]
    %v252 = vld [vmem:[#allocation2 + $0x530] sm:$0xff]
    %v253 = vld [vmem:[#allocation2 + $0x538] sm:$0xff]
    %v254 = vld [vmem:[#allocation2 + $0x540] sm:$0xff]
    %v255 = vld [vmem:[#allocation2 + $0x548] sm:$0xff]
    %v256 = vld [vmem:[#allocation2 + $0x550] sm:$0xff]
    %v257 = vld [vmem:[#allocation2 + $0x558] sm:$0xff]
    %v258 = vld [vmem:[#allocation2 + $0x560] sm:$0xff]
    %v259 = vld [vmem:[#allocation2 + $0x568] sm:$0xff]
    %v260 = vld [vmem:[#allocation2 + $0x570] sm:$0xff]
    %v261 = vld [vmem:[#allocation2 + $0x578] sm:$0xff]
    %v262 = vld [vmem:[#allocation2 + $0x580] sm:$0xff]
    %v263 = vld [vmem:[#allocation2 + $0x588] sm:$0xff]
    %v264 = vld [vmem:[#allocation2 + $0x590] sm:$0xff]
    %v265 = vld [vmem:[#allocation2 + $0x598] sm:$0xff]
    %v266 = vld [vmem:[#allocation2 + $0x5a0] sm:$0xff]
    %v267 = vld [vmem:[#allocation2 + $0x5a8] sm:$0xff]
    %v268 = vld [vmem:[#allocation2 + $0x5b0] sm:$0xff]
    %v269 = vld [vmem:[#allocation2 + $0x5b8] sm:$0xff]
    %v270 = vld [vmem:[#allocation2 + $0x5c0] sm:$0xff]
    %v271 = vld [vmem:[#allocation2 + $0x5c8] sm:$0xff]
    %v272 = vld [vmem:[#allocation2 + $0x5d0] sm:$0xff]
    %v273 = vld [vmem:[#allocation2 + $0x5d8] sm:$0xff]
    %v274 = vld [vmem:[#allocation2 + $0x5e0] sm:$0xff]
    %v275 = vld [vmem:[#allocation2 + $0x5e8] sm:$0xff]
    %v276 = vld [vmem:[#allocation2 + $0x5f0] sm:$0xff]
    %v277 = vld [vmem:[#allocation2 + $0x5f8] sm:$0xff]
    %v278 = vld [vmem:[#allocation2 + $0x600] sm:$0xff]
    %v279 = vld [vmem:[#allocation2 + $0x608] sm:$0xff]
    %v280 = vld [vmem:[#allocation2 + $0x610] sm:$0xff]
    %v281 = vld [vmem:[#allocation2 + $0x618] sm:$0xff]
    %v282 = vld [vmem:[#allocation2 + $0x620] sm:$0xff]
    %v283 = vld [vmem:[#allocation2 + $0x628] sm:$0xff]
    %v284 = vld [vmem:[#allocation2 + $0x630] sm:$0xff]
    %v285 = vld [vmem:[#allocation2 + $0x638] sm:$0xff]
    %v286 = vld [vmem:[#allocation2 + $0x640] sm:$0xff]
    %v287 = vld [vmem:[#allocation2 + $0x648] sm:$0xff]
    %v288 = vld [vmem:[#allocation2 + $0x650] sm:$0xff]
    %v289 = vld [vmem:[#allocation2 + $0x658] sm:$0xff]
    %v290 = vld [vmem:[#allocation2 + $0x660] sm:$0xff]
    %v291 = vld [vmem:[#allocation2 + $0x668] sm:$0xff]
    %v292 = vld [vmem:[#allocation2 + $0x670] sm:$0xff]
    %v293 = vld [vmem:[#allocation2 + $0x678] sm:$0xff]
    %v294 = vld [vmem:[#allocation2 + $0x680] sm:$0xff]
    %v295 = vld [vmem:[#allocation2 + $0x688] sm:$0xff]
    %v296 = vld [vmem:[#allocation2 + $0x690] sm:$0xff]
    %v297 = vld [vmem:[#allocation2 + $0x698] sm:$0xff]
    %v298 = vld [vmem:[#allocation2 + $0x6a0] sm:$0xff]
    %v299 = vld [vmem:[#allocation2 + $0x6a8] sm:$0xff]
    %v300 = vld [vmem:[#allocation2 + $0x6b0] sm:$0xff]
    %v301 = vld [vmem:[#allocation2 + $0x6b8] sm:$0xff]
    %v302 = vld [vmem:[#allocation2 + $0x6c0] sm:$0xff]
    %v303 = vld [vmem:[#allocation2 + $0x6c8] sm:$0xff]
    %v304 = vld [vmem:[#allocation2 + $0x6d0] sm:$0xff]
    %v305 = vld [vmem:[#allocation2 + $0x6d8] sm:$0xff]
    %v306 = vld [vmem:[#allocation2 + $0x6e0] sm:$0xff]
    %v307 = vld [vmem:[#allocation2 + $0x6e8] sm:$0xff]
    %v308 = vld [vmem:[#allocation2 + $0x6f0] sm:$0xff]
    %v309 = vld [vmem:[#allocation2 + $0x6f8] sm:$0xff]
    %v310 = vld [vmem:[#allocation2 + $0x700] sm:$0xff]
    %v311 = vld [vmem:[#allocation2 + $0x708] sm:$0xff]
    %v312 = vld [vmem:[#allocation2 + $0x710] sm:$0xff]
    %v313 = vld [vmem:[#allocation2 + $0x718] sm:$0xff]
    %v314 = vld [vmem:[#allocation2 + $0x720] sm:$0xff]
    %v315 = vld [vmem:[#allocation2 + $0x728] sm:$0xff]
    %v316 = vld [vmem:[#allocation2 + $0x730] sm:$0xff]
    %v317 = vld [vmem:[#allocation2 + $0x738] sm:$0xff]
    %v318 = vld [vmem:[#allocation2 + $0x740] sm:$0xff]
    %v319 = vld [vmem:[#allocation2 + $0x748] sm:$0xff]
    %v320 = vld [vmem:[#allocation2 + $0x750] sm:$0xff]
    %v321 = vld [vmem:[#allocation2 + $0x758] sm:$0xff]
    %v322 = vld [vmem:[#allocation2 + $0x760] sm:$0xff]
    %v323 = vld [vmem:[#allocation2 + $0x768] sm:$0xff]
    %v324 = vld [vmem:[#allocation2 + $0x770] sm:$0xff]
    %v325 = vld [vmem:[#allocation2 + $0x778] sm:$0xff]
    %v326 = vld [vmem:[#allocation2 + $0x780] sm:$0xff]
    %v327 = vld [vmem:[#allocation2 + $0x788] sm:$0xff]
    %v328 = vld [vmem:[#allocation2 + $0x790] sm:$0xff]
    %v329 = vld [vmem:[#allocation2 + $0x798] sm:$0xff]
    %v330 = vld [vmem:[#allocation2 + $0x7a0] sm:$0xff]
    %v331 = vld [vmem:[#allocation2 + $0x7a8] sm:$0xff]
    %v332 = vld [vmem:[#allocation2 + $0x7b0] sm:$0xff]
    %v333 = vld [vmem:[#allocation2 + $0x7b8] sm:$0xff]
    %v334 = vld [vmem:[#allocation2 + $0x7c0] sm:$0xff]
    %v335 = vld [vmem:[#allocation2 + $0x7c8] sm:$0xff]
    %v336 = vld [vmem:[#allocation2 + $0x7d0] sm:$0xff]
    %v337 = vld [vmem:[#allocation2 + $0x7d8] sm:$0xff]
    %v338 = vld [vmem:[#allocation2 + $0x7e0] sm:$0xff]
    %v339 = vld [vmem:[#allocation2 + $0x7e8] sm:$0xff]
    %v340 = vld [vmem:[#allocation2 + $0x7f0] sm:$0xff]
    %v341 = vld [vmem:[#allocation2 + $0x7f8] sm:$0xff]
    %v342 = vld [vmem:[#allocation2 + $0x800] sm:$0xff]
    %v343 = vld [vmem:[#allocation2 + $0x808] sm:$0xff]
    %v344 = vld [vmem:[#allocation2 + $0x810] sm:$0xff]
    %v345 = vld [vmem:[#allocation2 + $0x818] sm:$0xff]
    %v346 = vld [vmem:[#allocation2 + $0x820] sm:$0xff]
    %v347 = vld [vmem:[#allocation2 + $0x828] sm:$0xff]
    %v348 = vld [vmem:[#allocation2 + $0x830] sm:$0xff]
    %v349 = vld [vmem:[#allocation2 + $0x838] sm:$0xff]
    %v350 = vld [vmem:[#allocation2 + $0x840] sm:$0xff]
    %v351 = vld [vmem:[#allocation2 + $0x848] sm:$0xff]
    %v352 = vld [vmem:[#allocation2 + $0x850] sm:$0xff]
    %v353 = vld [vmem:[#allocation2 + $0x858] sm:$0xff]
    %v354 = vld [vmem:[#allocation2 + $0x860] sm:$0xff]
    %v355 = vld [vmem:[#allocation2 + $0x868] sm:$0xff]
    %v356 = vld [vmem:[#allocation2 + $0x870] sm:$0xff]
    %v357 = vld [vmem:[#allocation2 + $0x878] sm:$0xff]
    %v358 = vld [vmem:[#allocation2 + $0x880] sm:$0xff]
    %v359 = vld [vmem:[#allocation2 + $0x888] sm:$0xff]
    %v360 = vld [vmem:[#allocation2 + $0x890] sm:$0xff]
    %v361 = vld [vmem:[#allocation2 + $0x898] sm:$0xff]
    %v362 = vld [vmem:[#allocation2 + $0x8a0] sm:$0xff]
    %v363 = vld [vmem:[#allocation2 + $0x8a8] sm:$0xff]
    %v364 = vld [vmem:[#allocation2 + $0x8b0] sm:$0xff]
    %v365 = vld [vmem:[#allocation2 + $0x8b8] sm:$0xff]
    %v366 = vld [vmem:[#allocation2 + $0x8c0] sm:$0xff]
    %v367 = vld [vmem:[#allocation2 + $0x8c8] sm:$0xff]
    %v368 = vld [vmem:[#allocation2 + $0x8d0] sm:$0xff]
    %v369 = vld [vmem:[#allocation2 + $0x8d8] sm:$0xff]
    %v370 = vld [vmem:[#allocation2 + $0x8e0] sm:$0xff]
    %v371 = vld [vmem:[#allocation2 + $0x8e8] sm:$0xff]
    %v372 = vld [vmem:[#allocation2 + $0x8f0] sm:$0xff]
    %v373 = vld [vmem:[#allocation2 + $0x8f8] sm:$0xff]
    %v374 = vld [vmem:[#allocation2 + $0x900] sm:$0xff]
    %v375 = vld [vmem:[#allocation2 + $0x908] sm:$0xff]
    %v376 = vld [vmem:[#allocation2 + $0x910] sm:$0xff]
    %v377 = vld [vmem:[#allocation2 + $0x918] sm:$0xff]
    %v378 = vld [vmem:[#allocation2 + $0x920] sm:$0xff]
    %v379 = vld [vmem:[#allocation2 + $0x928] sm:$0xff]
    %v380 = vld [vmem:[#allocation2 + $0x930] sm:$0x3]
    %v381 = vld [vmem:[#allocation2 + $0x938] sm:$0x3]
    %v382 = vld [vmem:[#allocation2 + $0x940] sm:$0x3]
    %v383 = vld [vmem:[#allocation2 + $0x948] sm:$0x3]
    %v384 = vld [vmem:[#allocation2 + $0x950] sm:$0x3]
    %v385 = vld [vmem:[#allocation2 + $0x958] sm:$0x3]
    %v386 = vpack.c.bf16 %v92, %v86
    %v387 = vpack.c.bf16 %v93, %v87
    %v388 = vpack.c.bf16 %v94, %v88
    %v389 = vpack.c.bf16 %v95, %v89
    %v390 = vpack.c.bf16 %v96, %v90
    %v391 = vpack.c.bf16 %v97, %v91
    %v392 = vpack.c.bf16 %v104, %v98
    %v393 = vpack.c.bf16 %v105, %v99
    %v394 = vpack.c.bf16 %v106, %v100
    %v395 = vpack.c.bf16 %v107, %v101
    %v396 = vpack.c.bf16 %v108, %v102
    %v397 = vpack.c.bf16 %v109, %v103
    %v398 = vpack.c.bf16 %v116, %v110
    %v399 = vpack.c.bf16 %v117, %v111
    %v400 = vpack.c.bf16 %v118, %v112
    %v401 = vpack.c.bf16 %v119, %v113
    %v402 = vpack.c.bf16 %v120, %v114
    %v403 = vpack.c.bf16 %v121, %v115
    %v404 = vpack.c.bf16 %v128, %v122
    %v405 = vpack.c.bf16 %v129, %v123
    %v406 = vpack.c.bf16 %v130, %v124
    %v407 = vpack.c.bf16 %v131, %v125
    %v408 = vpack.c.bf16 %v132, %v126
    %v409 = vpack.c.bf16 %v133, %v127
    %v410 = vpack.c.bf16 %v140, %v134
    %v411 = vpack.c.bf16 %v141, %v135
    %v412 = vpack.c.bf16 %v142, %v136
    %v413 = vpack.c.bf16 %v143, %v137
    %v414 = vpack.c.bf16 %v144, %v138
    %v415 = vpack.c.bf16 %v145, %v139
    %v416 = vpack.c.bf16 %v152, %v146
    %v417 = vpack.c.bf16 %v153, %v147
    %v418 = vpack.c.bf16 %v154, %v148
    %v419 = vpack.c.bf16 %v155, %v149
    %v420 = vpack.c.bf16 %v156, %v150
    %v421 = vpack.c.bf16 %v157, %v151
    %v422 = vpack.c.bf16 %v164, %v158
    %v423 = vpack.c.bf16 %v165, %v159
    %v424 = vpack.c.bf16 %v166, %v160
    %v425 = vpack.c.bf16 %v167, %v161
    %v426 = vpack.c.bf16 %v168, %v162
    %v427 = vpack.c.bf16 %v169, %v163
    %v428 = vpack.c.bf16 %v176, %v170
    %v429 = vpack.c.bf16 %v177, %v171
    %v430 = vpack.c.bf16 %v178, %v172
    %v431 = vpack.c.bf16 %v179, %v173
    %v432 = vpack.c.bf16 %v180, %v174
    %v433 = vpack.c.bf16 %v181, %v175
    %v434 = vpack.c.bf16 %v188, %v182
    %v435 = vpack.c.bf16 %v189, %v183
    %v436 = vpack.c.bf16 %v190, %v184
    %v437 = vpack.c.bf16 %v191, %v185
    %v438 = vpack.c.bf16 %v192, %v186
    %v439 = vpack.c.bf16 %v193, %v187
    %v440 = vpack.c.bf16 %v200, %v194
    %v441 = vpack.c.bf16 %v201, %v195
    %v442 = vpack.c.bf16 %v202, %v196
    %v443 = vpack.c.bf16 %v203, %v197
    %v444 = vpack.c.bf16 %v204, %v198
    %v445 = vpack.c.bf16 %v205, %v199
    %v446 = vpack.c.bf16 %v212, %v206
    %v447 = vpack.c.bf16 %v213, %v207
    %v448 = vpack.c.bf16 %v214, %v208
    %v449 = vpack.c.bf16 %v215, %v209
    %v450 = vpack.c.bf16 %v216, %v210
    %v451 = vpack.c.bf16 %v217, %v211
    %v452 = vpack.c.bf16 %v224, %v218
    %v453 = vpack.c.bf16 %v225, %v219
    %v454 = vpack.c.bf16 %v226, %v220
    %v455 = vpack.c.bf16 %v227, %v221
    %v456 = vpack.c.bf16 %v228, %v222
    %v457 = vpack.c.bf16 %v229, %v223
    %v458 = vpack.c.bf16 %v236, %v230
    %v459 = vpack.c.bf16 %v237, %v231
    %v460 = vpack.c.bf16 %v238, %v232
    %v461 = vpack.c.bf16 %v239, %v233
    %v462 = vpack.c.bf16 %v240, %v234
    %v463 = vpack.c.bf16 %v241, %v235
    %v464 = vpack.c.bf16 %v248, %v242
    %v465 = vpack.c.bf16 %v249, %v243
    %v466 = vpack.c.bf16 %v250, %v244
    %v467 = vpack.c.bf16 %v251, %v245
    %v468 = vpack.c.bf16 %v252, %v246
    %v469 = vpack.c.bf16 %v253, %v247
    %v470 = vpack.c.bf16 %v260, %v254
    %v471 = vpack.c.bf16 %v261, %v255
    %v472 = vpack.c.bf16 %v262, %v256
    %v473 = vpack.c.bf16 %v263, %v257
    %v474 = vpack.c.bf16 %v264, %v258
    %v475 = vpack.c.bf16 %v265, %v259
    %v476 = vpack.c.bf16 %v272, %v266
    %v477 = vpack.c.bf16 %v273, %v267
    %v478 = vpack.c.bf16 %v274, %v268
    %v479 = vpack.c.bf16 %v275, %v269
    %v480 = vpack.c.bf16 %v276, %v270
    %v481 = vpack.c.bf16 %v277, %v271
    %v482 = vpack.c.bf16 %v284, %v278
    %v483 = vpack.c.bf16 %v285, %v279
    %v484 = vpack.c.bf16 %v286, %v280
    %v485 = vpack.c.bf16 %v287, %v281
    %v486 = vpack.c.bf16 %v288, %v282
    %v487 = vpack.c.bf16 %v289, %v283
    %v488 = vpack.c.bf16 %v296, %v290
    %v489 = vpack.c.bf16 %v297, %v291
    %v490 = vpack.c.bf16 %v298, %v292
    %v491 = vpack.c.bf16 %v299, %v293
    %v492 = vpack.c.bf16 %v300, %v294
    %v493 = vpack.c.bf16 %v301, %v295
    %v494 = vpack.c.bf16 %v308, %v302
    %v495 = vpack.c.bf16 %v309, %v303
    %v496 = vpack.c.bf16 %v310, %v304
    %v497 = vpack.c.bf16 %v311, %v305
    %v498 = vpack.c.bf16 %v312, %v306
    %v499 = vpack.c.bf16 %v313, %v307
    %v500 = vpack.c.bf16 %v320, %v314
    %v501 = vpack.c.bf16 %v321, %v315
    %v502 = vpack.c.bf16 %v322, %v316
    %v503 = vpack.c.bf16 %v323, %v317
    %v504 = vpack.c.bf16 %v324, %v318
    %v505 = vpack.c.bf16 %v325, %v319
    %v506 = vpack.c.bf16 %v332, %v326
    %v507 = vpack.c.bf16 %v333, %v327
    %v508 = vpack.c.bf16 %v334, %v328
    %v509 = vpack.c.bf16 %v335, %v329
    %v510 = vpack.c.bf16 %v336, %v330
    %v511 = vpack.c.bf16 %v337, %v331
    %v512 = vpack.c.bf16 %v344, %v338
    %v513 = vpack.c.bf16 %v345, %v339
    %v514 = vpack.c.bf16 %v346, %v340
    %v515 = vpack.c.bf16 %v347, %v341
    %v516 = vpack.c.bf16 %v348, %v342
    %v517 = vpack.c.bf16 %v349, %v343
    %v518 = vpack.c.bf16 %v356, %v350
    %v519 = vpack.c.bf16 %v357, %v351
    %v520 = vpack.c.bf16 %v358, %v352
    %v521 = vpack.c.bf16 %v359, %v353
    %v522 = vpack.c.bf16 %v360, %v354
    %v523 = vpack.c.bf16 %v361, %v355
    %v524 = vpack.c.bf16 %v368, %v362
    %v525 = vpack.c.bf16 %v369, %v363
    %v526 = vpack.c.bf16 %v370, %v364
    %v527 = vpack.c.bf16 %v371, %v365
    %v528 = vpack.c.bf16 %v372, %v366
    %v529 = vpack.c.bf16 %v373, %v367
    %v530 = vpack.c.bf16 %v380, %v374
    %v531 = vpack.c.bf16 %v381, %v375
    %v532 = vpack.c.bf16 %v382, %v376
    %v533 = vpack.c.bf16 %v383, %v377
    %v534 = vpack.c.bf16 %v384, %v378
    %v535 = vpack.c.bf16 %v385, %v379
    %v536 = vld [vmem:[#allocation5] sm:$0xf]
    %v537 = vld [vmem:[#allocation5 + $0x4] sm:$0xf]
    %v538 = vld [vmem:[#allocation5 + $0x8] sm:$0xf]
    %v539 = vld [vmem:[#allocation5 + $0xc] sm:$0xf]
    %v540 = vld [vmem:[#allocation5 + $0x10] sm:$0xf]
    %v541 = vld [vmem:[#allocation5 + $0x14] sm:$0xf]
    %v542 = vld [vmem:[#allocation5 + $0x18] sm:$0xf]
    %v543 = vld [vmem:[#allocation5 + $0x1c] sm:$0xf]
    %v544 = vld [vmem:[#allocation5 + $0x20] sm:$0xf]
    %v545 = vld [vmem:[#allocation5 + $0x24] sm:$0xf]
    %v546 = vld [vmem:[#allocation5 + $0x28] sm:$0xf]
    %v547 = vld [vmem:[#allocation5 + $0x2c] sm:$0xf]
    %v548 = vld [vmem:[#allocation5 + $0x30] sm:$0xf]
    %v549 = vld [vmem:[#allocation5 + $0x34] sm:$0xf]
    %v550 = vld [vmem:[#allocation5 + $0x38] sm:$0xf]
    %v551 = vld [vmem:[#allocation5 + $0x3c] sm:$0xf]
    %v552 = vld [vmem:[#allocation5 + $0x40] sm:$0xf]
    %v553 = vld [vmem:[#allocation5 + $0x44] sm:$0xf]
    %v554 = vld [vmem:[#allocation5 + $0x48] sm:$0xf]
    %v555 = vld [vmem:[#allocation5 + $0x4c] sm:$0xf]
    %v556 = vld [vmem:[#allocation5 + $0x50] sm:$0xf]
    %v557 = vld [vmem:[#allocation5 + $0x54] sm:$0xf]
    %v558 = vld [vmem:[#allocation5 + $0x58] sm:$0xf]
    %v559 = vld [vmem:[#allocation5 + $0x5c] sm:$0xf]
    %v560 = vld [vmem:[#allocation5 + $0x60] sm:$0xf]
    %v561 = vld [vmem:[#allocation5 + $0x64] sm:$0xf]
    %v562 = vld [vmem:[#allocation5 + $0x68] sm:$0xf]
    %v563 = vld [vmem:[#allocation5 + $0x6c] sm:$0xf]
    %v564 = vld [vmem:[#allocation5 + $0x70] sm:$0xf]
    %v565 = vld [vmem:[#allocation5 + $0x74] sm:$0xf]
    %v566 = vld [vmem:[#allocation5 + $0x78] sm:$0xf]
    %v567 = vld [vmem:[#allocation5 + $0x7c] sm:$0xf]
    %v568 = vld [vmem:[#allocation5 + $0x80] sm:$0xf]
    %v569 = vld [vmem:[#allocation5 + $0x84] sm:$0xf]
    %v570 = vld [vmem:[#allocation5 + $0x88] sm:$0xf]
    %v571 = vld [vmem:[#allocation5 + $0x8c] sm:$0xf]
    %v572 = vld [vmem:[#allocation5 + $0x90] sm:$0xf]
    %v573 = vld [vmem:[#allocation5 + $0x94] sm:$0xf]
    %v574 = vld [vmem:[#allocation5 + $0x98] sm:$0xf]
    %v575 = vld [vmem:[#allocation5 + $0x9c] sm:$0xf]
    %v576 = vld [vmem:[#allocation5 + $0xa0] sm:$0xf]
    %v577 = vld [vmem:[#allocation5 + $0xa4] sm:$0xf]
    %v578 = vld [vmem:[#allocation5 + $0xa8] sm:$0xf]
    %v579 = vld [vmem:[#allocation5 + $0xac] sm:$0xf]
    %v580 = vld [vmem:[#allocation5 + $0xb0] sm:$0xf]
    %v581 = vld [vmem:[#allocation5 + $0xb4] sm:$0xf]
    %v582 = vld [vmem:[#allocation5 + $0xb8] sm:$0xf]
    %v583 = vld [vmem:[#allocation5 + $0xbc] sm:$0xf]
    %v584 = vld [vmem:[#allocation5 + $0xc0] sm:$0xf]
    %v585 = vld [vmem:[#allocation5 + $0xc4] sm:$0xf]
    %v586 = vld [vmem:[#allocation5 + $0xc8] sm:$0xf]
    %v587 = vld [vmem:[#allocation5 + $0xcc] sm:$0xf]
    %v588 = vld [vmem:[#allocation5 + $0xd0] sm:$0xf]
    %v589 = vld [vmem:[#allocation5 + $0xd4] sm:$0xf]
    %v590 = vld [vmem:[#allocation5 + $0xd8] sm:$0xf]
    %v591 = vld [vmem:[#allocation5 + $0xdc] sm:$0xf]
    %v592 = vld [vmem:[#allocation5 + $0xe0] sm:$0xf]
    %v593 = vld [vmem:[#allocation5 + $0xe4] sm:$0xf]
    %v594 = vld [vmem:[#allocation5 + $0xe8] sm:$0xf]
    %v595 = vld [vmem:[#allocation5 + $0xec] sm:$0xf]
    %v596 = vld [vmem:[#allocation5 + $0xf0] sm:$0xf]
    %v597 = vld [vmem:[#allocation5 + $0xf4] sm:$0xf]
    %v598 = vld [vmem:[#allocation5 + $0xf8] sm:$0xf]
    %v599 = vld [vmem:[#allocation5 + $0xfc] sm:$0xf]
    %v600 = vld [vmem:[#allocation5 + $0x100] sm:$0xf]
    %v601 = vld [vmem:[#allocation5 + $0x104] sm:$0xf]
    %v602 = vld [vmem:[#allocation5 + $0x108] sm:$0xf]
    %v603 = vld [vmem:[#allocation5 + $0x10c] sm:$0xf]
    %v604 = vld [vmem:[#allocation5 + $0x110] sm:$0xf]
    %v605 = vld [vmem:[#allocation5 + $0x114] sm:$0xf]
    %v606 = vld [vmem:[#allocation5 + $0x118] sm:$0xf]
    %v607 = vld [vmem:[#allocation5 + $0x11c] sm:$0xf]
    %v608 = vld [vmem:[#allocation5 + $0x120] sm:$0xf]
    %v609 = vld [vmem:[#allocation5 + $0x124] sm:$0xf]
    %v610 = vld [vmem:[#allocation5 + $0x128] sm:$0xf]
    %v611 = vld [vmem:[#allocation5 + $0x12c] sm:$0xf]
    %v612 = vld [vmem:[#allocation5 + $0x130] sm:$0xf]
    %v613 = vld [vmem:[#allocation5 + $0x134] sm:$0xf]
    %v614 = vld [vmem:[#allocation5 + $0x138] sm:$0xf]
    %v615 = vld [vmem:[#allocation5 + $0x13c] sm:$0xf]
    %v616 = vld [vmem:[#allocation5 + $0x140] sm:$0xf]
    %v617 = vld [vmem:[#allocation5 + $0x144] sm:$0xf]
    %v618 = vld [vmem:[#allocation5 + $0x148] sm:$0xf]
    %v619 = vld [vmem:[#allocation5 + $0x14c] sm:$0xf]
    %v620 = vld [vmem:[#allocation5 + $0x150] sm:$0xf]
    %v621 = vld [vmem:[#allocation5 + $0x154] sm:$0xf]
    %v622 = vld [vmem:[#allocation5 + $0x158] sm:$0xf]
    %v623 = vld [vmem:[#allocation5 + $0x15c] sm:$0xf]
    %v624 = vld [vmem:[#allocation5 + $0x160] sm:$0xf]
    %v625 = vld [vmem:[#allocation5 + $0x164] sm:$0xf]
    %v626 = vld [vmem:[#allocation5 + $0x168] sm:$0xf]
    %v627 = vld [vmem:[#allocation5 + $0x16c] sm:$0xf]
    %v628 = vld [vmem:[#allocation5 + $0x170] sm:$0xf]
    %v629 = vld [vmem:[#allocation5 + $0x174] sm:$0xf]
    %v630 = vld [vmem:[#allocation5 + $0x178] sm:$0xf]
    %v631 = vld [vmem:[#allocation5 + $0x17c] sm:$0xf]
    %v632 = vld [vmem:[#allocation7] sm:$0x1]
    %v634 = vlaneseq
    %v635 = vshrl.u32 %v634, 7
    %v636 = vsub.s32 0, %v635
    %v637 = vrot.slane %v632, %v636
    %v735 = vunpack.c.l.b16 %v536
    %v736 = vunpack.c.l.b16 %v537
    %v737 = vunpack.c.l.b16 %v538
    %v738 = vunpack.c.l.b16 %v539
    %v739 = vunpack.c.l.b16 %v540
    %v740 = vunpack.c.l.b16 %v541
    %v741 = vunpack.c.l.b16 %v542
    %v742 = vunpack.c.l.b16 %v543
    %v743 = vunpack.c.l.b16 %v544
    %v744 = vunpack.c.l.b16 %v545
    %v745 = vunpack.c.l.b16 %v546
    %v746 = vunpack.c.l.b16 %v547
    %v747 = vunpack.c.l.b16 %v548
    %v748 = vunpack.c.l.b16 %v549
    %v749 = vunpack.c.l.b16 %v550
    %v750 = vunpack.c.l.b16 %v551
    %v751 = vunpack.c.l.b16 %v552
    %v752 = vunpack.c.l.b16 %v553
    %v753 = vunpack.c.l.b16 %v554
    %v754 = vunpack.c.l.b16 %v555
    %v755 = vunpack.c.l.b16 %v556
    %v756 = vunpack.c.l.b16 %v557
    %v757 = vunpack.c.l.b16 %v558
    %v758 = vunpack.c.l.b16 %v559
    %v759 = vunpack.c.l.b16 %v560
    %v760 = vunpack.c.l.b16 %v561
    %v761 = vunpack.c.l.b16 %v562
    %v762 = vunpack.c.l.b16 %v563
    %v763 = vunpack.c.l.b16 %v564
    %v764 = vunpack.c.l.b16 %v565
    %v765 = vunpack.c.l.b16 %v566
    %v766 = vunpack.c.l.b16 %v567
    %v767 = vunpack.c.l.b16 %v568
    %v768 = vunpack.c.l.b16 %v569
    %v769 = vunpack.c.l.b16 %v570
    %v770 = vunpack.c.l.b16 %v571
    %v771 = vunpack.c.l.b16 %v572
    %v772 = vunpack.c.l.b16 %v573
    %v773 = vunpack.c.l.b16 %v574
    %v774 = vunpack.c.l.b16 %v575
    %v775 = vunpack.c.l.b16 %v576
    %v776 = vunpack.c.l.b16 %v577
    %v777 = vunpack.c.l.b16 %v578
    %v778 = vunpack.c.l.b16 %v579
    %v779 = vunpack.c.l.b16 %v580
    %v780 = vunpack.c.l.b16 %v581
    %v781 = vunpack.c.l.b16 %v582
    %v782 = vunpack.c.l.b16 %v583
    %v783 = vunpack.c.l.b16 %v584
    %v784 = vunpack.c.l.b16 %v585
    %v785 = vunpack.c.l.b16 %v586
    %v786 = vunpack.c.l.b16 %v587
    %v787 = vunpack.c.l.b16 %v588
    %v788 = vunpack.c.l.b16 %v589
    %v789 = vunpack.c.l.b16 %v590
    %v790 = vunpack.c.l.b16 %v591
    %v791 = vunpack.c.l.b16 %v592
    %v792 = vunpack.c.l.b16 %v593
    %v793 = vunpack.c.l.b16 %v594
    %v794 = vunpack.c.l.b16 %v595
    %v795 = vunpack.c.l.b16 %v596
    %v796 = vunpack.c.l.b16 %v597
    %v797 = vunpack.c.l.b16 %v598
    %v798 = vunpack.c.l.b16 %v599
    %v799 = vunpack.c.l.b16 %v600
    %v800 = vunpack.c.l.b16 %v601
    %v801 = vunpack.c.l.b16 %v602
    %v802 = vunpack.c.l.b16 %v603
    %v803 = vunpack.c.l.b16 %v604
    %v804 = vunpack.c.l.b16 %v605
    %v805 = vunpack.c.l.b16 %v606
    %v806 = vunpack.c.l.b16 %v607
    %v807 = vunpack.c.l.b16 %v608
    %v808 = vunpack.c.l.b16 %v609
    %v809 = vunpack.c.l.b16 %v610
    %v810 = vunpack.c.l.b16 %v611
    %v811 = vunpack.c.l.b16 %v612
    %v812 = vunpack.c.l.b16 %v613
    %v813 = vunpack.c.l.b16 %v614
    %v814 = vunpack.c.l.b16 %v615
    %v815 = vunpack.c.l.b16 %v616
    %v816 = vunpack.c.l.b16 %v617
    %v817 = vunpack.c.l.b16 %v618
    %v818 = vunpack.c.l.b16 %v619
    %v819 = vunpack.c.l.b16 %v620
    %v820 = vunpack.c.l.b16 %v621
    %v821 = vunpack.c.l.b16 %v622
    %v822 = vunpack.c.l.b16 %v623
    %v823 = vunpack.c.l.b16 %v624
    %v824 = vunpack.c.l.b16 %v625
    %v825 = vunpack.c.l.b16 %v626
    %v826 = vunpack.c.l.b16 %v627
    %v827 = vunpack.c.l.b16 %v628
    %v828 = vunpack.c.l.b16 %v629
    %v829 = vunpack.c.l.b16 %v630
    %v830 = vunpack.c.l.b16 %v631
    %v831 = vpack.c.b16 %v736, %v735
    %v832 = vpack.c.b16 %v738, %v737
    %v833 = vpack.c.b16 %v740, %v739
    %v834 = vpack.c.b16 %v742, %v741
    %v835 = vpack.c.b16 %v744, %v743
    %v836 = vpack.c.b16 %v746, %v745
    %v837 = vpack.c.b16 %v748, %v747
    %v838 = vpack.c.b16 %v750, %v749
    %v839 = vpack.c.b16 %v752, %v751
    %v840 = vpack.c.b16 %v754, %v753
    %v841 = vpack.c.b16 %v756, %v755
    %v842 = vpack.c.b16 %v758, %v757
    %v843 = vpack.c.b16 %v760, %v759
    %v844 = vpack.c.b16 %v762, %v761
    %v845 = vpack.c.b16 %v764, %v763
    %v846 = vpack.c.b16 %v766, %v765
    %v847 = vpack.c.b16 %v768, %v767
    %v848 = vpack.c.b16 %v770, %v769
    %v849 = vpack.c.b16 %v772, %v771
    %v850 = vpack.c.b16 %v774, %v773
    %v851 = vpack.c.b16 %v776, %v775
    %v852 = vpack.c.b16 %v778, %v777
    %v853 = vpack.c.b16 %v780, %v779
    %v854 = vpack.c.b16 %v782, %v781
    %v855 = vpack.c.b16 %v784, %v783
    %v856 = vpack.c.b16 %v786, %v785
    %v857 = vpack.c.b16 %v788, %v787
    %v858 = vpack.c.b16 %v790, %v789
    %v859 = vpack.c.b16 %v792, %v791
    %v860 = vpack.c.b16 %v794, %v793
    %v861 = vpack.c.b16 %v796, %v795
    %v862 = vpack.c.b16 %v798, %v797
    %v863 = vpack.c.b16 %v800, %v799
    %v864 = vpack.c.b16 %v802, %v801
    %v865 = vpack.c.b16 %v804, %v803
    %v866 = vpack.c.b16 %v806, %v805
    %v867 = vpack.c.b16 %v808, %v807
    %v868 = vpack.c.b16 %v810, %v809
    %v869 = vpack.c.b16 %v812, %v811
    %v870 = vpack.c.b16 %v814, %v813
    %v871 = vpack.c.b16 %v816, %v815
    %v872 = vpack.c.b16 %v818, %v817
    %v873 = vpack.c.b16 %v820, %v819
    %v874 = vpack.c.b16 %v822, %v821
    %v875 = vpack.c.b16 %v824, %v823
    %v876 = vpack.c.b16 %v826, %v825
    %v877 = vpack.c.b16 %v828, %v827
    %v878 = vpack.c.b16 %v830, %v829
    %927 = vmatprep.subr.bf16.mxu0 0
    %928 = vmatpush1.bf16.msra.mxu0 %v838
    %929 = vmatprep.subr.bf16.mxu0 0
    %930 = vmatpush1.bf16.msra.mxu0 %v837
    %931 = vmatprep.subr.bf16.mxu0 0
    %932 = vmatpush1.bf16.msra.mxu0 %v836
    %933 = vmatprep.subr.bf16.mxu0 0
    %934 = vmatpush1.bf16.msra.mxu0 %v835
    %935 = vmatprep.subr.bf16.mxu0 0
    %936 = vmatpush1.bf16.msra.mxu0 %v834
    %937 = vmatprep.subr.bf16.mxu0 0
    %938 = vmatpush1.bf16.msra.mxu0 %v833
    %939 = vmatprep.subr.bf16.mxu0 0
    %940 = vmatpush1.bf16.msra.mxu0 %v832
    %941 = vmatprep.subr.bf16.mxu0 0
    %942 = vmatpush1.bf16.msra.mxu0 %v831
    %943 = vmatprep.subr.bf16.mxu0 0
    %944 = vmatpush2.bf16.msra.mxu0 %v846
    %945 = vmatprep.subr.bf16.mxu0 0
    %946 = vmatpush2.bf16.msra.mxu0 %v845
    %947 = vmatprep.subr.bf16.mxu0 0
    %948 = vmatpush2.bf16.msra.mxu0 %v844
    %949 = vmatprep.subr.bf16.mxu0 0
    %950 = vmatpush2.bf16.msra.mxu0 %v843
    %951 = vmatprep.subr.bf16.mxu0 0
    %952 = vmatpush2.bf16.msra.mxu0 %v842
    %953 = vmatprep.subr.bf16.mxu0 0
    %954 = vmatpush2.bf16.msra.mxu0 %v841
    %955 = vmatprep.subr.bf16.mxu0 0
    %956 = vmatpush2.bf16.msra.mxu0 %v840
    %957 = vmatprep.subr.bf16.mxu0 0
    %958 = vmatpush2.bf16.msra.mxu0 %v839
    %959 = vmatprep.mubr.bf16.mxu0 %v387
    %960 = vmatmul.mubr.bf16.gmra.mxu0 %v386
    %v961 = vpop.f32.mrf.mxu0
    %v962 = vadd.f32 %v637, %v961
    %v963 = vpop.f32.mrf.mxu0
    %v964 = vpop.f32.mrf.mxu0
    %v965 = vadd.f32 %v637, %v964
    %v966 = vpop.f32.mrf.mxu0
    %967 = vmatprep.mubr.bf16.mxu0 %v393
    %968 = vmatmul.mubr.bf16.gmra.mxu0 %v392
    %v969 = vpop.f32.mrf.mxu0
    %v970 = vadd.f32 %v637, %v969
    %v971 = vpop.f32.mrf.mxu0
    %v972 = vpop.f32.mrf.mxu0
    %v973 = vadd.f32 %v637, %v972
    %v974 = vpop.f32.mrf.mxu0
    %975 = vmatprep.mubr.bf16.mxu0 %v399
    %976 = vmatmul.mubr.bf16.gmra.mxu0 %v398
    %v977 = vpop.f32.mrf.mxu0
    %v978 = vadd.f32 %v637, %v977
    %v979 = vpop.f32.mrf.mxu0
    %v980 = vpop.f32.mrf.mxu0
    %v981 = vadd.f32 %v637, %v980
    %v982 = vpop.f32.mrf.mxu0
    %983 = vmatprep.mubr.bf16.mxu0 %v405
    %984 = vmatmul.mubr.bf16.gmra.mxu0 %v404
    %v985 = vpop.f32.mrf.mxu0
    %v986 = vadd.f32 %v637, %v985
    %v987 = vpop.f32.mrf.mxu0
    %v988 = vpop.f32.mrf.mxu0
    %v989 = vadd.f32 %v637, %v988
    %v990 = vpop.f32.mrf.mxu0
    %991 = vmatprep.mubr.bf16.mxu0 %v411
    %992 = vmatmul.mubr.bf16.gmra.mxu0 %v410
    %v993 = vpop.f32.mrf.mxu0
    %v994 = vadd.f32 %v637, %v993
    %v995 = vpop.f32.mrf.mxu0
    %v996 = vpop.f32.mrf.mxu0
    %v997 = vadd.f32 %v637, %v996
    %v998 = vpop.f32.mrf.mxu0
    %999 = vmatprep.mubr.bf16.mxu0 %v417
    %1000 = vmatmul.mubr.bf16.gmra.mxu0 %v416
    %v1001 = vpop.f32.mrf.mxu0
    %v1002 = vadd.f32 %v637, %v1001
    %v1003 = vpop.f32.mrf.mxu0
    %v1004 = vpop.f32.mrf.mxu0
    %v1005 = vadd.f32 %v637, %v1004
    %v1006 = vpop.f32.mrf.mxu0
    %1007 = vmatprep.mubr.bf16.mxu0 %v423
    %1008 = vmatmul.mubr.bf16.gmra.mxu0 %v422
    %v1009 = vpop.f32.mrf.mxu0
    %v1010 = vadd.f32 %v637, %v1009
    %v1011 = vpop.f32.mrf.mxu0
    %v1012 = vpop.f32.mrf.mxu0
    %v1013 = vadd.f32 %v637, %v1012
    %v1014 = vpop.f32.mrf.mxu0
    %1015 = vmatprep.mubr.bf16.mxu0 %v429
    %1016 = vmatmul.mubr.bf16.gmra.mxu0 %v428
    %v1017 = vpop.f32.mrf.mxu0
    %v1018 = vadd.f32 %v637, %v1017
    %v1019 = vpop.f32.mrf.mxu0
    %v1020 = vpop.f32.mrf.mxu0
    %v1021 = vadd.f32 %v637, %v1020
    %v1022 = vpop.f32.mrf.mxu0
    %1023 = vmatprep.mubr.bf16.mxu0 %v435
    %1024 = vmatmul.mubr.bf16.gmra.mxu0 %v434
    %v1025 = vpop.f32.mrf.mxu0
    %v1026 = vadd.f32 %v637, %v1025
    %v1027 = vpop.f32.mrf.mxu0
    %v1028 = vpop.f32.mrf.mxu0
    %v1029 = vadd.f32 %v637, %v1028
    %v1030 = vpop.f32.mrf.mxu0
    %1031 = vmatprep.mubr.bf16.mxu0 %v441
    %1032 = vmatmul.mubr.bf16.gmra.mxu0 %v440
    %v1033 = vpop.f32.mrf.mxu0
    %v1034 = vadd.f32 %v637, %v1033
    %v1035 = vpop.f32.mrf.mxu0
    %v1036 = vpop.f32.mrf.mxu0
    %v1037 = vadd.f32 %v637, %v1036
    %v1038 = vpop.f32.mrf.mxu0
    %1039 = vmatprep.mubr.bf16.mxu0 %v447
    %1040 = vmatmul.mubr.bf16.gmra.mxu0 %v446
    %v1041 = vpop.f32.mrf.mxu0
    %v1042 = vadd.f32 %v637, %v1041
    %v1043 = vpop.f32.mrf.mxu0
    %v1044 = vpop.f32.mrf.mxu0
    %v1045 = vadd.f32 %v637, %v1044
    %v1046 = vpop.f32.mrf.mxu0
    %1047 = vmatprep.mubr.bf16.mxu0 %v453
    %1048 = vmatmul.mubr.bf16.gmra.mxu0 %v452
    %v1049 = vpop.f32.mrf.mxu0
    %v1050 = vadd.f32 %v637, %v1049
    %v1051 = vpop.f32.mrf.mxu0
    %v1052 = vpop.f32.mrf.mxu0
    %v1053 = vadd.f32 %v637, %v1052
    %v1054 = vpop.f32.mrf.mxu0
    %1055 = vmatprep.mubr.bf16.mxu0 %v459
    %1056 = vmatmul.mubr.bf16.gmra.mxu0 %v458
    %v1057 = vpop.f32.mrf.mxu0
    %v1058 = vadd.f32 %v637, %v1057
    %v1059 = vpop.f32.mrf.mxu0
    %v1060 = vpop.f32.mrf.mxu0
    %v1061 = vadd.f32 %v637, %v1060
    %v1062 = vpop.f32.mrf.mxu0
    %1063 = vmatprep.mubr.bf16.mxu0 %v465
    %1064 = vmatmul.mubr.bf16.gmra.mxu0 %v464
    %v1065 = vpop.f32.mrf.mxu0
    %v1066 = vadd.f32 %v637, %v1065
    %v1067 = vpop.f32.mrf.mxu0
    %v1068 = vpop.f32.mrf.mxu0
    %v1069 = vadd.f32 %v637, %v1068
    %v1070 = vpop.f32.mrf.mxu0
    %1071 = vmatprep.mubr.bf16.mxu0 %v471
    %1072 = vmatmul.mubr.bf16.gmra.mxu0 %v470
    %v1073 = vpop.f32.mrf.mxu0
    %v1074 = vadd.f32 %v637, %v1073
    %v1075 = vpop.f32.mrf.mxu0
    %v1076 = vpop.f32.mrf.mxu0
    %v1077 = vadd.f32 %v637, %v1076
    %v1078 = vpop.f32.mrf.mxu0
    %1079 = vmatprep.mubr.bf16.mxu0 %v477
    %1080 = vmatmul.mubr.bf16.gmra.mxu0 %v476
    %v1081 = vpop.f32.mrf.mxu0
    %v1082 = vadd.f32 %v637, %v1081
    %v1083 = vpop.f32.mrf.mxu0
    %v1084 = vpop.f32.mrf.mxu0
    %v1085 = vadd.f32 %v637, %v1084
    %v1086 = vpop.f32.mrf.mxu0
    %1087 = vmatprep.mubr.bf16.mxu0 %v483
    %1088 = vmatmul.mubr.bf16.gmra.mxu0 %v482
    %v1089 = vpop.f32.mrf.mxu0
    %v1090 = vadd.f32 %v637, %v1089
    %v1091 = vpop.f32.mrf.mxu0
    %v1092 = vpop.f32.mrf.mxu0
    %v1093 = vadd.f32 %v637, %v1092
    %v1094 = vpop.f32.mrf.mxu0
    %1095 = vmatprep.mubr.bf16.mxu0 %v489
    %1096 = vmatmul.mubr.bf16.gmra.mxu0 %v488
    %v1097 = vpop.f32.mrf.mxu0
    %v1098 = vadd.f32 %v637, %v1097
    %v1099 = vpop.f32.mrf.mxu0
    %v1100 = vpop.f32.mrf.mxu0
    %v1101 = vadd.f32 %v637, %v1100
    %v1102 = vpop.f32.mrf.mxu0
    %1103 = vmatprep.mubr.bf16.mxu0 %v495
    %1104 = vmatmul.mubr.bf16.gmra.mxu0 %v494
    %v1105 = vpop.f32.mrf.mxu0
    %v1106 = vadd.f32 %v637, %v1105
    %v1107 = vpop.f32.mrf.mxu0
    %v1108 = vpop.f32.mrf.mxu0
    %v1109 = vadd.f32 %v637, %v1108
    %v1110 = vpop.f32.mrf.mxu0
    %1111 = vmatprep.mubr.bf16.mxu0 %v501
    %1112 = vmatmul.mubr.bf16.gmra.mxu0 %v500
    %v1113 = vpop.f32.mrf.mxu0
    %v1114 = vadd.f32 %v637, %v1113
    %v1115 = vpop.f32.mrf.mxu0
    %v1116 = vpop.f32.mrf.mxu0
    %v1117 = vadd.f32 %v637, %v1116
    %v1118 = vpop.f32.mrf.mxu0
    %1119 = vmatprep.mubr.bf16.mxu0 %v507
    %1120 = vmatmul.mubr.bf16.gmra.mxu0 %v506
    %v1121 = vpop.f32.mrf.mxu0
    %v1122 = vadd.f32 %v637, %v1121
    %v1123 = vpop.f32.mrf.mxu0
    %v1124 = vpop.f32.mrf.mxu0
    %v1125 = vadd.f32 %v637, %v1124
    %v1126 = vpop.f32.mrf.mxu0
    %1127 = vmatprep.mubr.bf16.mxu0 %v513
    %1128 = vmatmul.mubr.bf16.gmra.mxu0 %v512
    %v1129 = vpop.f32.mrf.mxu0
    %v1130 = vadd.f32 %v637, %v1129
    %v1131 = vpop.f32.mrf.mxu0
    %v1132 = vpop.f32.mrf.mxu0
    %v1133 = vadd.f32 %v637, %v1132
    %v1134 = vpop.f32.mrf.mxu0
    %1135 = vmatprep.mubr.bf16.mxu0 %v519
    %1136 = vmatmul.mubr.bf16.gmra.mxu0 %v518
    %v1137 = vpop.f32.mrf.mxu0
    %v1138 = vadd.f32 %v637, %v1137
    %v1139 = vpop.f32.mrf.mxu0
    %v1140 = vpop.f32.mrf.mxu0
    %v1141 = vadd.f32 %v637, %v1140
    %v1142 = vpop.f32.mrf.mxu0
    %1143 = vmatprep.mubr.bf16.mxu0 %v525
    %1144 = vmatmul.mubr.bf16.gmra.mxu0 %v524
    %v1145 = vpop.f32.mrf.mxu0
    %v1146 = vadd.f32 %v637, %v1145
    %v1147 = vpop.f32.mrf.mxu0
    %v1148 = vpop.f32.mrf.mxu0
    %v1149 = vadd.f32 %v637, %v1148
    %v1150 = vpop.f32.mrf.mxu0
    %1151 = vmatprep.mubr.bf16.mxu0 %v531
    %1152 = vmatmul.mubr.bf16.gmra.mxu0 %v530
    %v1153 = vpop.f32.mrf.mxu0
    %v1154 = vadd.f32 %v637, %v1153
    %v1155 = vpop.f32.mrf.mxu0
    %v1156 = vpop.f32.mrf.mxu0
    %v1157 = vadd.f32 %v637, %v1156
    %v1158 = vpop.f32.mrf.mxu0
    %1159 = vdwg.mxu0
    %1160 = vmatprep.subr.bf16.mxu0 0
    %1161 = vmatpush1.bf16.msra.mxu0 %v854
    %1162 = vmatprep.subr.bf16.mxu0 0
    %1163 = vmatpush1.bf16.msra.mxu0 %v853
    %1164 = vmatprep.subr.bf16.mxu0 0
    %1165 = vmatpush1.bf16.msra.mxu0 %v852
    %1166 = vmatprep.subr.bf16.mxu0 0
    %1167 = vmatpush1.bf16.msra.mxu0 %v851
    %1168 = vmatprep.subr.bf16.mxu0 0
    %1169 = vmatpush1.bf16.msra.mxu0 %v850
    %1170 = vmatprep.subr.bf16.mxu0 0
    %1171 = vmatpush1.bf16.msra.mxu0 %v849
    %1172 = vmatprep.subr.bf16.mxu0 0
    %1173 = vmatpush1.bf16.msra.mxu0 %v848
    %1174 = vmatprep.subr.bf16.mxu0 0
    %1175 = vmatpush1.bf16.msra.mxu0 %v847
    %1176 = vmatprep.subr.bf16.mxu0 0
    %1177 = vmatpush2.bf16.msra.mxu0 %v862
    %1178 = vmatprep.subr.bf16.mxu0 0
    %1179 = vmatpush2.bf16.msra.mxu0 %v861
    %1180 = vmatprep.subr.bf16.mxu0 0
    %1181 = vmatpush2.bf16.msra.mxu0 %v860
    %1182 = vmatprep.subr.bf16.mxu0 0
    %1183 = vmatpush2.bf16.msra.mxu0 %v859
    %1184 = vmatprep.subr.bf16.mxu0 0
    %1185 = vmatpush2.bf16.msra.mxu0 %v858
    %1186 = vmatprep.subr.bf16.mxu0 0
    %1187 = vmatpush2.bf16.msra.mxu0 %v857
    %1188 = vmatprep.subr.bf16.mxu0 0
    %1189 = vmatpush2.bf16.msra.mxu0 %v856
    %1190 = vmatprep.subr.bf16.mxu0 0
    %1191 = vmatpush2.bf16.msra.mxu0 %v855
    %1192 = vmatprep.mubr.bf16.mxu0 %v389
    %1193 = vmatmul.mubr.bf16.gmra.mxu0 %v388
    %v1194 = vpop.f32.mrf.mxu0
    %v1195 = vadd.f32 %v962, %v1194
    %v1196 = vpop.f32.mrf.mxu0
    %v1197 = vpop.f32.mrf.mxu0
    %v1198 = vadd.f32 %v965, %v1197
    %v1199 = vpop.f32.mrf.mxu0
    %1200 = vmatprep.mubr.bf16.mxu0 %v395
    %1201 = vmatmul.mubr.bf16.gmra.mxu0 %v394
    %v1202 = vpop.f32.mrf.mxu0
    %v1203 = vadd.f32 %v970, %v1202
    %v1204 = vpop.f32.mrf.mxu0
    %v1205 = vpop.f32.mrf.mxu0
    %v1206 = vadd.f32 %v973, %v1205
    %v1207 = vpop.f32.mrf.mxu0
    %1208 = vmatprep.mubr.bf16.mxu0 %v401
    %1209 = vmatmul.mubr.bf16.gmra.mxu0 %v400
    %v1210 = vpop.f32.mrf.mxu0
    %v1211 = vadd.f32 %v978, %v1210
    %v1212 = vpop.f32.mrf.mxu0
    %v1213 = vpop.f32.mrf.mxu0
    %v1214 = vadd.f32 %v981, %v1213
    %v1215 = vpop.f32.mrf.mxu0
    %1216 = vmatprep.mubr.bf16.mxu0 %v407
    %1217 = vmatmul.mubr.bf16.gmra.mxu0 %v406
    %v1218 = vpop.f32.mrf.mxu0
    %v1219 = vadd.f32 %v986, %v1218
    %v1220 = vpop.f32.mrf.mxu0
    %v1221 = vpop.f32.mrf.mxu0
    %v1222 = vadd.f32 %v989, %v1221
    %v1223 = vpop.f32.mrf.mxu0
    %1224 = vmatprep.mubr.bf16.mxu0 %v413
    %1225 = vmatmul.mubr.bf16.gmra.mxu0 %v412
    %v1226 = vpop.f32.mrf.mxu0
    %v1227 = vadd.f32 %v994, %v1226
    %v1228 = vpop.f32.mrf.mxu0
    %v1229 = vpop.f32.mrf.mxu0
    %v1230 = vadd.f32 %v997, %v1229
    %v1231 = vpop.f32.mrf.mxu0
    %1232 = vmatprep.mubr.bf16.mxu0 %v419
    %1233 = vmatmul.mubr.bf16.gmra.mxu0 %v418
    %v1234 = vpop.f32.mrf.mxu0
    %v1235 = vadd.f32 %v1002, %v1234
    %v1236 = vpop.f32.mrf.mxu0
    %v1237 = vpop.f32.mrf.mxu0
    %v1238 = vadd.f32 %v1005, %v1237
    %v1239 = vpop.f32.mrf.mxu0
    %1240 = vmatprep.mubr.bf16.mxu0 %v425
    %1241 = vmatmul.mubr.bf16.gmra.mxu0 %v424
    %v1242 = vpop.f32.mrf.mxu0
    %v1243 = vadd.f32 %v1010, %v1242
    %v1244 = vpop.f32.mrf.mxu0
    %v1245 = vpop.f32.mrf.mxu0
    %v1246 = vadd.f32 %v1013, %v1245
    %v1247 = vpop.f32.mrf.mxu0
    %1248 = vmatprep.mubr.bf16.mxu0 %v431
    %1249 = vmatmul.mubr.bf16.gmra.mxu0 %v430
    %v1250 = vpop.f32.mrf.mxu0
    %v1251 = vadd.f32 %v1018, %v1250
    %v1252 = vpop.f32.mrf.mxu0
    %v1253 = vpop.f32.mrf.mxu0
    %v1254 = vadd.f32 %v1021, %v1253
    %v1255 = vpop.f32.mrf.mxu0
    %1256 = vmatprep.mubr.bf16.mxu0 %v437
    %1257 = vmatmul.mubr.bf16.gmra.mxu0 %v436
    %v1258 = vpop.f32.mrf.mxu0
    %v1259 = vadd.f32 %v1026, %v1258
    %v1260 = vpop.f32.mrf.mxu0
    %v1261 = vpop.f32.mrf.mxu0
    %v1262 = vadd.f32 %v1029, %v1261
    %v1263 = vpop.f32.mrf.mxu0
    %1264 = vmatprep.mubr.bf16.mxu0 %v443
    %1265 = vmatmul.mubr.bf16.gmra.mxu0 %v442
    %v1266 = vpop.f32.mrf.mxu0
    %v1267 = vadd.f32 %v1034, %v1266
    %v1268 = vpop.f32.mrf.mxu0
    %v1269 = vpop.f32.mrf.mxu0
    %v1270 = vadd.f32 %v1037, %v1269
    %v1271 = vpop.f32.mrf.mxu0
    %1272 = vmatprep.mubr.bf16.mxu0 %v449
    %1273 = vmatmul.mubr.bf16.gmra.mxu0 %v448
    %v1274 = vpop.f32.mrf.mxu0
    %v1275 = vadd.f32 %v1042, %v1274
    %v1276 = vpop.f32.mrf.mxu0
    %v1277 = vpop.f32.mrf.mxu0
    %v1278 = vadd.f32 %v1045, %v1277
    %v1279 = vpop.f32.mrf.mxu0
    %1280 = vmatprep.mubr.bf16.mxu0 %v455
    %1281 = vmatmul.mubr.bf16.gmra.mxu0 %v454
    %v1282 = vpop.f32.mrf.mxu0
    %v1283 = vadd.f32 %v1050, %v1282
    %v1284 = vpop.f32.mrf.mxu0
    %v1285 = vpop.f32.mrf.mxu0
    %v1286 = vadd.f32 %v1053, %v1285
    %v1287 = vpop.f32.mrf.mxu0
    %1288 = vmatprep.mubr.bf16.mxu0 %v461
    %1289 = vmatmul.mubr.bf16.gmra.mxu0 %v460
    %v1290 = vpop.f32.mrf.mxu0
    %v1291 = vadd.f32 %v1058, %v1290
    %v1292 = vpop.f32.mrf.mxu0
    %v1293 = vpop.f32.mrf.mxu0
    %v1294 = vadd.f32 %v1061, %v1293
    %v1295 = vpop.f32.mrf.mxu0
    %1296 = vmatprep.mubr.bf16.mxu0 %v467
    %1297 = vmatmul.mubr.bf16.gmra.mxu0 %v466
    %v1298 = vpop.f32.mrf.mxu0
    %v1299 = vadd.f32 %v1066, %v1298
    %v1300 = vpop.f32.mrf.mxu0
    %v1301 = vpop.f32.mrf.mxu0
    %v1302 = vadd.f32 %v1069, %v1301
    %v1303 = vpop.f32.mrf.mxu0
    %1304 = vmatprep.mubr.bf16.mxu0 %v473
    %1305 = vmatmul.mubr.bf16.gmra.mxu0 %v472
    %v1306 = vpop.f32.mrf.mxu0
    %v1307 = vadd.f32 %v1074, %v1306
    %v1308 = vpop.f32.mrf.mxu0
    %v1309 = vpop.f32.mrf.mxu0
    %v1310 = vadd.f32 %v1077, %v1309
    %v1311 = vpop.f32.mrf.mxu0
    %1312 = vmatprep.mubr.bf16.mxu0 %v479
    %1313 = vmatmul.mubr.bf16.gmra.mxu0 %v478
    %v1314 = vpop.f32.mrf.mxu0
    %v1315 = vadd.f32 %v1082, %v1314
    %v1316 = vpop.f32.mrf.mxu0
    %v1317 = vpop.f32.mrf.mxu0
    %v1318 = vadd.f32 %v1085, %v1317
    %v1319 = vpop.f32.mrf.mxu0
    %1320 = vmatprep.mubr.bf16.mxu0 %v485
    %1321 = vmatmul.mubr.bf16.gmra.mxu0 %v484
    %v1322 = vpop.f32.mrf.mxu0
    %v1323 = vadd.f32 %v1090, %v1322
    %v1324 = vpop.f32.mrf.mxu0
    %v1325 = vpop.f32.mrf.mxu0
    %v1326 = vadd.f32 %v1093, %v1325
    %v1327 = vpop.f32.mrf.mxu0
    %1328 = vmatprep.mubr.bf16.mxu0 %v491
    %1329 = vmatmul.mubr.bf16.gmra.mxu0 %v490
    %v1330 = vpop.f32.mrf.mxu0
    %v1331 = vadd.f32 %v1098, %v1330
    %v1332 = vpop.f32.mrf.mxu0
    %v1333 = vpop.f32.mrf.mxu0
    %v1334 = vadd.f32 %v1101, %v1333
    %v1335 = vpop.f32.mrf.mxu0
    %1336 = vmatprep.mubr.bf16.mxu0 %v497
    %1337 = vmatmul.mubr.bf16.gmra.mxu0 %v496
    %v1338 = vpop.f32.mrf.mxu0
    %v1339 = vadd.f32 %v1106, %v1338
    %v1340 = vpop.f32.mrf.mxu0
    %v1341 = vpop.f32.mrf.mxu0
    %v1342 = vadd.f32 %v1109, %v1341
    %v1343 = vpop.f32.mrf.mxu0
    %1344 = vmatprep.mubr.bf16.mxu0 %v503
    %1345 = vmatmul.mubr.bf16.gmra.mxu0 %v502
    %v1346 = vpop.f32.mrf.mxu0
    %v1347 = vadd.f32 %v1114, %v1346
    %v1348 = vpop.f32.mrf.mxu0
    %v1349 = vpop.f32.mrf.mxu0
    %v1350 = vadd.f32 %v1117, %v1349
    %v1351 = vpop.f32.mrf.mxu0
    %1352 = vmatprep.mubr.bf16.mxu0 %v509
    %1353 = vmatmul.mubr.bf16.gmra.mxu0 %v508
    %v1354 = vpop.f32.mrf.mxu0
    %v1355 = vadd.f32 %v1122, %v1354
    %v1356 = vpop.f32.mrf.mxu0
    %v1357 = vpop.f32.mrf.mxu0
    %v1358 = vadd.f32 %v1125, %v1357
    %v1359 = vpop.f32.mrf.mxu0
    %1360 = vmatprep.mubr.bf16.mxu0 %v515
    %1361 = vmatmul.mubr.bf16.gmra.mxu0 %v514
    %v1362 = vpop.f32.mrf.mxu0
    %v1363 = vadd.f32 %v1130, %v1362
    %v1364 = vpop.f32.mrf.mxu0
    %v1365 = vpop.f32.mrf.mxu0
    %v1366 = vadd.f32 %v1133, %v1365
    %v1367 = vpop.f32.mrf.mxu0
    %1368 = vmatprep.mubr.bf16.mxu0 %v521
    %1369 = vmatmul.mubr.bf16.gmra.mxu0 %v520
    %v1370 = vpop.f32.mrf.mxu0
    %v1371 = vadd.f32 %v1138, %v1370
    %v1372 = vpop.f32.mrf.mxu0
    %v1373 = vpop.f32.mrf.mxu0
    %v1374 = vadd.f32 %v1141, %v1373
    %v1375 = vpop.f32.mrf.mxu0
    %1376 = vmatprep.mubr.bf16.mxu0 %v527
    %1377 = vmatmul.mubr.bf16.gmra.mxu0 %v526
    %v1378 = vpop.f32.mrf.mxu0
    %v1379 = vadd.f32 %v1146, %v1378
    %v1380 = vpop.f32.mrf.mxu0
    %v1381 = vpop.f32.mrf.mxu0
    %v1382 = vadd.f32 %v1149, %v1381
    %v1383 = vpop.f32.mrf.mxu0
    %1384 = vmatprep.mubr.bf16.mxu0 %v533
    %1385 = vmatmul.mubr.bf16.gmra.mxu0 %v532
    %v1386 = vpop.f32.mrf.mxu0
    %v1387 = vadd.f32 %v1154, %v1386
    %v1388 = vpop.f32.mrf.mxu0
    %v1389 = vpop.f32.mrf.mxu0
    %v1390 = vadd.f32 %v1157, %v1389
    %v1391 = vpop.f32.mrf.mxu0
    %1392 = vdwg.mxu0
    %1393 = vmatprep.subr.bf16.mxu0 0
    %1394 = vmatpush1.bf16.msra.mxu0 %v870
    %1395 = vmatprep.subr.bf16.mxu0 0
    %1396 = vmatpush1.bf16.msra.mxu0 %v869
    %1397 = vmatprep.subr.bf16.mxu0 0
    %1398 = vmatpush1.bf16.msra.mxu0 %v868
    %1399 = vmatprep.subr.bf16.mxu0 0
    %1400 = vmatpush1.bf16.msra.mxu0 %v867
    %1401 = vmatprep.subr.bf16.mxu0 0
    %1402 = vmatpush1.bf16.msra.mxu0 %v866
    %1403 = vmatprep.subr.bf16.mxu0 0
    %1404 = vmatpush1.bf16.msra.mxu0 %v865
    %1405 = vmatprep.subr.bf16.mxu0 0
    %1406 = vmatpush1.bf16.msra.mxu0 %v864
    %1407 = vmatprep.subr.bf16.mxu0 0
    %1408 = vmatpush1.bf16.msra.mxu0 %v863
    %1409 = vmatprep.subr.bf16.mxu0 0
    %1410 = vmatpush2.bf16.msra.mxu0 %v878
    %1411 = vmatprep.subr.bf16.mxu0 0
    %1412 = vmatpush2.bf16.msra.mxu0 %v877
    %1413 = vmatprep.subr.bf16.mxu0 0
    %1414 = vmatpush2.bf16.msra.mxu0 %v876
    %1415 = vmatprep.subr.bf16.mxu0 0
    %1416 = vmatpush2.bf16.msra.mxu0 %v875
    %1417 = vmatprep.subr.bf16.mxu0 0
    %1418 = vmatpush2.bf16.msra.mxu0 %v874
    %1419 = vmatprep.subr.bf16.mxu0 0
    %1420 = vmatpush2.bf16.msra.mxu0 %v873
    %1421 = vmatprep.subr.bf16.mxu0 0
    %1422 = vmatpush2.bf16.msra.mxu0 %v872
    %1423 = vmatprep.subr.bf16.mxu0 0
    %1424 = vmatpush2.bf16.msra.mxu0 %v871
    %1425 = vmatprep.mubr.bf16.mxu0 %v391
    %1426 = vmatmul.mubr.bf16.gmra.mxu0 %v390
    %v1427 = vpop.f32.mrf.mxu0
    %v1428 = vadd.f32 %v1195, %v1427
    %v1429 = vpop.f32.mrf.mxu0
    %v1430 = vpop.f32.mrf.mxu0
    %v1431 = vadd.f32 %v1198, %v1430
    %v1432 = vpop.f32.mrf.mxu0
    %1433 = vmatprep.mubr.bf16.mxu0 %v397
    %1434 = vmatmul.mubr.bf16.gmra.mxu0 %v396
    %v1435 = vpop.f32.mrf.mxu0
    %v1436 = vadd.f32 %v1203, %v1435
    %v1437 = vpop.f32.mrf.mxu0
    %v1438 = vpop.f32.mrf.mxu0
    %v1439 = vadd.f32 %v1206, %v1438
    %v1440 = vpop.f32.mrf.mxu0
    %1441 = vmatprep.mubr.bf16.mxu0 %v403
    %1442 = vmatmul.mubr.bf16.gmra.mxu0 %v402
    %v1443 = vpop.f32.mrf.mxu0
    %v1444 = vadd.f32 %v1211, %v1443
    %v1445 = vpop.f32.mrf.mxu0
    %v1446 = vpop.f32.mrf.mxu0
    %v1447 = vadd.f32 %v1214, %v1446
    %v1448 = vpop.f32.mrf.mxu0
    %1449 = vmatprep.mubr.bf16.mxu0 %v409
    %1450 = vmatmul.mubr.bf16.gmra.mxu0 %v408
    %v1451 = vpop.f32.mrf.mxu0
    %v1452 = vadd.f32 %v1219, %v1451
    %v1453 = vpop.f32.mrf.mxu0
    %v1454 = vpop.f32.mrf.mxu0
    %v1455 = vadd.f32 %v1222, %v1454
    %v1456 = vpop.f32.mrf.mxu0
    %1457 = vmatprep.mubr.bf16.mxu0 %v415
    %1458 = vmatmul.mubr.bf16.gmra.mxu0 %v414
    %v1459 = vpop.f32.mrf.mxu0
    %v1460 = vadd.f32 %v1227, %v1459
    %v1461 = vpop.f32.mrf.mxu0
    %v1462 = vpop.f32.mrf.mxu0
    %v1463 = vadd.f32 %v1230, %v1462
    %v1464 = vpop.f32.mrf.mxu0
    %1465 = vmatprep.mubr.bf16.mxu0 %v421
    %1466 = vmatmul.mubr.bf16.gmra.mxu0 %v420
    %v1467 = vpop.f32.mrf.mxu0
    %v1468 = vadd.f32 %v1235, %v1467
    %v1469 = vpop.f32.mrf.mxu0
    %v1470 = vpop.f32.mrf.mxu0
    %v1471 = vadd.f32 %v1238, %v1470
    %v1472 = vpop.f32.mrf.mxu0
    %1473 = vmatprep.mubr.bf16.mxu0 %v427
    %1474 = vmatmul.mubr.bf16.gmra.mxu0 %v426
    %v1475 = vpop.f32.mrf.mxu0
    %v1476 = vadd.f32 %v1243, %v1475
    %v1477 = vpop.f32.mrf.mxu0
    %v1478 = vpop.f32.mrf.mxu0
    %v1479 = vadd.f32 %v1246, %v1478
    %v1480 = vpop.f32.mrf.mxu0
    %1481 = vmatprep.mubr.bf16.mxu0 %v433
    %1482 = vmatmul.mubr.bf16.gmra.mxu0 %v432
    %v1483 = vpop.f32.mrf.mxu0
    %v1484 = vadd.f32 %v1251, %v1483
    %v1485 = vpop.f32.mrf.mxu0
    %v1486 = vpop.f32.mrf.mxu0
    %v1487 = vadd.f32 %v1254, %v1486
    %v1488 = vpop.f32.mrf.mxu0
    %1489 = vmatprep.mubr.bf16.mxu0 %v439
    %1490 = vmatmul.mubr.bf16.gmra.mxu0 %v438
    %v1491 = vpop.f32.mrf.mxu0
    %v1492 = vadd.f32 %v1259, %v1491
    %v1493 = vpop.f32.mrf.mxu0
    %v1494 = vpop.f32.mrf.mxu0
    %v1495 = vadd.f32 %v1262, %v1494
    %v1496 = vpop.f32.mrf.mxu0
    %1497 = vmatprep.mubr.bf16.mxu0 %v445
    %1498 = vmatmul.mubr.bf16.gmra.mxu0 %v444
    %v1499 = vpop.f32.mrf.mxu0
    %v1500 = vadd.f32 %v1267, %v1499
    %v1501 = vpop.f32.mrf.mxu0
    %v1502 = vpop.f32.mrf.mxu0
    %v1503 = vadd.f32 %v1270, %v1502
    %v1504 = vpop.f32.mrf.mxu0
    %1505 = vmatprep.mubr.bf16.mxu0 %v451
    %1506 = vmatmul.mubr.bf16.gmra.mxu0 %v450
    %v1507 = vpop.f32.mrf.mxu0
    %v1508 = vadd.f32 %v1275, %v1507
    %v1509 = vpop.f32.mrf.mxu0
    %v1510 = vpop.f32.mrf.mxu0
    %v1511 = vadd.f32 %v1278, %v1510
    %v1512 = vpop.f32.mrf.mxu0
    %1513 = vmatprep.mubr.bf16.mxu0 %v457
    %1514 = vmatmul.mubr.bf16.gmra.mxu0 %v456
    %v1515 = vpop.f32.mrf.mxu0
    %v1516 = vadd.f32 %v1283, %v1515
    %v1517 = vpop.f32.mrf.mxu0
    %v1518 = vpop.f32.mrf.mxu0
    %v1519 = vadd.f32 %v1286, %v1518
    %v1520 = vpop.f32.mrf.mxu0
    %1521 = vmatprep.mubr.bf16.mxu0 %v463
    %1522 = vmatmul.mubr.bf16.gmra.mxu0 %v462
    %v1523 = vpop.f32.mrf.mxu0
    %v1524 = vadd.f32 %v1291, %v1523
    %v1525 = vpop.f32.mrf.mxu0
    %v1526 = vpop.f32.mrf.mxu0
    %v1527 = vadd.f32 %v1294, %v1526
    %v1528 = vpop.f32.mrf.mxu0
    %1529 = vmatprep.mubr.bf16.mxu0 %v469
    %1530 = vmatmul.mubr.bf16.gmra.mxu0 %v468
    %v1531 = vpop.f32.mrf.mxu0
    %v1532 = vadd.f32 %v1299, %v1531
    %v1533 = vpop.f32.mrf.mxu0
    %v1534 = vpop.f32.mrf.mxu0
    %v1535 = vadd.f32 %v1302, %v1534
    %v1536 = vpop.f32.mrf.mxu0
    %1537 = vmatprep.mubr.bf16.mxu0 %v475
    %1538 = vmatmul.mubr.bf16.gmra.mxu0 %v474
    %v1539 = vpop.f32.mrf.mxu0
    %v1540 = vadd.f32 %v1307, %v1539
    %v1541 = vpop.f32.mrf.mxu0
    %v1542 = vpop.f32.mrf.mxu0
    %v1543 = vadd.f32 %v1310, %v1542
    %v1544 = vpop.f32.mrf.mxu0
    %1545 = vmatprep.mubr.bf16.mxu0 %v481
    %1546 = vmatmul.mubr.bf16.gmra.mxu0 %v480
    %v1547 = vpop.f32.mrf.mxu0
    %v1548 = vadd.f32 %v1315, %v1547
    %v1549 = vpop.f32.mrf.mxu0
    %v1550 = vpop.f32.mrf.mxu0
    %v1551 = vadd.f32 %v1318, %v1550
    %v1552 = vpop.f32.mrf.mxu0
    %1553 = vmatprep.mubr.bf16.mxu0 %v487
    %1554 = vmatmul.mubr.bf16.gmra.mxu0 %v486
    %v1555 = vpop.f32.mrf.mxu0
    %v1556 = vadd.f32 %v1323, %v1555
    %v1557 = vpop.f32.mrf.mxu0
    %v1558 = vpop.f32.mrf.mxu0
    %v1559 = vadd.f32 %v1326, %v1558
    %v1560 = vpop.f32.mrf.mxu0
    %1561 = vmatprep.mubr.bf16.mxu0 %v493
    %1562 = vmatmul.mubr.bf16.gmra.mxu0 %v492
    %v1563 = vpop.f32.mrf.mxu0
    %v1564 = vadd.f32 %v1331, %v1563
    %v1565 = vpop.f32.mrf.mxu0
    %v1566 = vpop.f32.mrf.mxu0
    %v1567 = vadd.f32 %v1334, %v1566
    %v1568 = vpop.f32.mrf.mxu0
    %1569 = vmatprep.mubr.bf16.mxu0 %v499
    %1570 = vmatmul.mubr.bf16.gmra.mxu0 %v498
    %v1571 = vpop.f32.mrf.mxu0
    %v1572 = vadd.f32 %v1339, %v1571
    %v1573 = vpop.f32.mrf.mxu0
    %v1574 = vpop.f32.mrf.mxu0
    %v1575 = vadd.f32 %v1342, %v1574
    %v1576 = vpop.f32.mrf.mxu0
    %1577 = vmatprep.mubr.bf16.mxu0 %v505
    %1578 = vmatmul.mubr.bf16.gmra.mxu0 %v504
    %v1579 = vpop.f32.mrf.mxu0
    %v1580 = vadd.f32 %v1347, %v1579
    %v1581 = vpop.f32.mrf.mxu0
    %v1582 = vpop.f32.mrf.mxu0
    %v1583 = vadd.f32 %v1350, %v1582
    %v1584 = vpop.f32.mrf.mxu0
    %1585 = vmatprep.mubr.bf16.mxu0 %v511
    %1586 = vmatmul.mubr.bf16.gmra.mxu0 %v510
    %v1587 = vpop.f32.mrf.mxu0
    %v1588 = vadd.f32 %v1355, %v1587
    %v1589 = vpop.f32.mrf.mxu0
    %v1590 = vpop.f32.mrf.mxu0
    %v1591 = vadd.f32 %v1358, %v1590
    %v1592 = vpop.f32.mrf.mxu0
    %1593 = vmatprep.mubr.bf16.mxu0 %v517
    %1594 = vmatmul.mubr.bf16.gmra.mxu0 %v516
    %v1595 = vpop.f32.mrf.mxu0
    %v1596 = vadd.f32 %v1363, %v1595
    %v1597 = vpop.f32.mrf.mxu0
    %v1598 = vpop.f32.mrf.mxu0
    %v1599 = vadd.f32 %v1366, %v1598
    %v1600 = vpop.f32.mrf.mxu0
    %1601 = vmatprep.mubr.bf16.mxu0 %v523
    %1602 = vmatmul.mubr.bf16.gmra.mxu0 %v522
    %v1603 = vpop.f32.mrf.mxu0
    %v1604 = vadd.f32 %v1371, %v1603
    %v1605 = vpop.f32.mrf.mxu0
    %v1606 = vpop.f32.mrf.mxu0
    %v1607 = vadd.f32 %v1374, %v1606
    %v1608 = vpop.f32.mrf.mxu0
    %1609 = vmatprep.mubr.bf16.mxu0 %v529
    %1610 = vmatmul.mubr.bf16.gmra.mxu0 %v528
    %v1611 = vpop.f32.mrf.mxu0
    %v1612 = vadd.f32 %v1379, %v1611
    %v1613 = vpop.f32.mrf.mxu0
    %v1614 = vpop.f32.mrf.mxu0
    %v1615 = vadd.f32 %v1382, %v1614
    %v1616 = vpop.f32.mrf.mxu0
    %1617 = vmatprep.mubr.bf16.mxu0 %v535
    %1618 = vmatmul.mubr.bf16.gmra.mxu0 %v534
    %v1619 = vpop.f32.mrf.mxu0
    %v1620 = vadd.f32 %v1387, %v1619
    %v1621 = vpop.f32.mrf.mxu0
    %v1622 = vpop.f32.mrf.mxu0
    %v1623 = vadd.f32 %v1390, %v1622
    %v1624 = vpop.f32.mrf.mxu0
    %1625 = vdwg.mxu0
    %v1626 = vpack.c.bf16 %v1431, %v1428
    %v1627 = vpack.c.bf16 %v1439, %v1436
    %v1628 = vpack.c.bf16 %v1447, %v1444
    %v1629 = vpack.c.bf16 %v1455, %v1452
    %v1630 = vpack.c.bf16 %v1463, %v1460
    %v1631 = vpack.c.bf16 %v1471, %v1468
    %v1632 = vpack.c.bf16 %v1479, %v1476
    %v1633 = vpack.c.bf16 %v1487, %v1484
    %v1634 = vpack.c.bf16 %v1495, %v1492
    %v1635 = vpack.c.bf16 %v1503, %v1500
    %v1636 = vpack.c.bf16 %v1511, %v1508
    %v1637 = vpack.c.bf16 %v1519, %v1516
    %v1638 = vpack.c.bf16 %v1527, %v1524
    %v1639 = vpack.c.bf16 %v1535, %v1532
    %v1640 = vpack.c.bf16 %v1543, %v1540
    %v1641 = vpack.c.bf16 %v1551, %v1548
    %v1642 = vpack.c.bf16 %v1559, %v1556
    %v1643 = vpack.c.bf16 %v1567, %v1564
    %v1644 = vpack.c.bf16 %v1575, %v1572
    %v1645 = vpack.c.bf16 %v1583, %v1580
    %v1646 = vpack.c.bf16 %v1591, %v1588
    %v1647 = vpack.c.bf16 %v1599, %v1596
    %v1648 = vpack.c.bf16 %v1607, %v1604
    %v1649 = vpack.c.bf16 %v1615, %v1612
    %v1650 = vpack.c.bf16 %v1623, %v1620
    %v1651 = vld [vmem:[#allocation8] sm:$0xff]
    %v1652 = vld [vmem:[#allocation8 + $0x8] sm:$0xff]
    %v1653 = vld [vmem:[#allocation8 + $0x10] sm:$0xff]
    %v1654 = vld [vmem:[#allocation8 + $0x18] sm:$0xff]
    %v1655 = vld [vmem:[#allocation8 + $0x20] sm:$0xff]
    %v1656 = vld [vmem:[#allocation8 + $0x28] sm:$0xff]
    %v1657 = vld [vmem:[#allocation8 + $0x30] sm:$0xff]
    %v1658 = vld [vmem:[#allocation8 + $0x38] sm:$0xff]
    %v1659 = vld [vmem:[#allocation8 + $0x40] sm:$0xff]
    %v1660 = vld [vmem:[#allocation8 + $0x48] sm:$0xff]
    %v1661 = vld [vmem:[#allocation8 + $0x50] sm:$0xff]
    %v1662 = vld [vmem:[#allocation8 + $0x58] sm:$0xff]
    %v1663 = vld [vmem:[#allocation8 + $0x60] sm:$0xff]
    %v1664 = vld [vmem:[#allocation8 + $0x68] sm:$0xff]
    %v1665 = vld [vmem:[#allocation8 + $0x70] sm:$0xff]
    %v1666 = vld [vmem:[#allocation8 + $0x78] sm:$0xff]
    %v1667 = vld [vmem:[#allocation8 + $0x80] sm:$0xff]
    %v1668 = vld [vmem:[#allocation8 + $0x88] sm:$0xff]
    %v1669 = vld [vmem:[#allocation8 + $0x90] sm:$0xff]
    %v1670 = vld [vmem:[#allocation8 + $0x98] sm:$0xff]
    %v1671 = vld [vmem:[#allocation8 + $0xa0] sm:$0xff]
    %v1672 = vld [vmem:[#allocation8 + $0xa8] sm:$0xff]
    %v1673 = vld [vmem:[#allocation8 + $0xb0] sm:$0xff]
    %v1674 = vld [vmem:[#allocation8 + $0xb8] sm:$0xff]
    %v1675 = vld [vmem:[#allocation8 + $0xc0] sm:$0xff]
    %v1676 = vld [vmem:[#allocation8 + $0xc8] sm:$0xff]
    %v1677 = vld [vmem:[#allocation8 + $0xd0] sm:$0xff]
    %v1678 = vld [vmem:[#allocation8 + $0xd8] sm:$0xff]
    %v1679 = vld [vmem:[#allocation8 + $0xe0] sm:$0xff]
    %v1680 = vld [vmem:[#allocation8 + $0xe8] sm:$0xff]
    %v1681 = vld [vmem:[#allocation8 + $0xf0] sm:$0xff]
    %v1682 = vld [vmem:[#allocation8 + $0xf8] sm:$0xff]
    %v1683 = vld [vmem:[#allocation8 + $0x100] sm:$0xff]
    %v1684 = vld [vmem:[#allocation8 + $0x108] sm:$0xff]
    %v1685 = vld [vmem:[#allocation8 + $0x110] sm:$0xff]
    %v1686 = vld [vmem:[#allocation8 + $0x118] sm:$0xff]
    %v1687 = vld [vmem:[#allocation8 + $0x120] sm:$0xff]
    %v1688 = vld [vmem:[#allocation8 + $0x128] sm:$0xff]
    %v1689 = vld [vmem:[#allocation8 + $0x130] sm:$0xff]
    %v1690 = vld [vmem:[#allocation8 + $0x138] sm:$0xff]
    %v1691 = vld [vmem:[#allocation8 + $0x140] sm:$0xff]
    %v1692 = vld [vmem:[#allocation8 + $0x148] sm:$0xff]
    %v1693 = vld [vmem:[#allocation8 + $0x150] sm:$0xff]
    %v1694 = vld [vmem:[#allocation8 + $0x158] sm:$0xff]
    %v1695 = vld [vmem:[#allocation8 + $0x160] sm:$0xff]
    %v1696 = vld [vmem:[#allocation8 + $0x168] sm:$0xff]
    %v1697 = vld [vmem:[#allocation8 + $0x170] sm:$0xff]
    %v1698 = vld [vmem:[#allocation8 + $0x178] sm:$0xff]
    %v1699 = vld [vmem:[#allocation10] sm:$0x3f]
    %v1701 = vlaneseq
    %v1702 = vshrl.u32 %v1701, 7
    %v1703 = vsub.s32 0, %v1702
    %v1704 = vrot.slane %v1699, %v1703
    %v1705 = vlaneseq
    %v1706 = vshrl.u32 %v1705, 7
    %v1707 = vsub.s32 1, %v1706
    %v1708 = vrot.slane %v1699, %v1707
    %v1709 = vlaneseq
    %v1710 = vshrl.u32 %v1709, 7
    %v1711 = vsub.s32 2, %v1710
    %v1712 = vrot.slane %v1699, %v1711
    %v1713 = vlaneseq
    %v1714 = vshrl.u32 %v1713, 7
    %v1715 = vsub.s32 3, %v1714
    %v1716 = vrot.slane %v1699, %v1715
    %v1717 = vlaneseq
    %v1718 = vshrl.u32 %v1717, 7
    %v1719 = vsub.s32 4, %v1718
    %v1720 = vrot.slane %v1699, %v1719
    %v1721 = vlaneseq
    %v1722 = vshrl.u32 %v1721, 7
    %v1723 = vsub.s32 5, %v1722
    %v1724 = vrot.slane %v1699, %v1723
    %v1779 = vunpack.c.l.b16 %v1651
    %v1780 = vunpack.c.h.b16 %v1651
    %v1781 = vunpack.c.l.b16 %v1652
    %v1782 = vunpack.c.h.b16 %v1652
    %v1783 = vunpack.c.l.b16 %v1653
    %v1784 = vunpack.c.h.b16 %v1653
    %v1785 = vunpack.c.l.b16 %v1654
    %v1786 = vunpack.c.h.b16 %v1654
    %v1787 = vunpack.c.l.b16 %v1655
    %v1788 = vunpack.c.h.b16 %v1655
    %v1789 = vunpack.c.l.b16 %v1656
    %v1790 = vunpack.c.h.b16 %v1656
    %v1791 = vunpack.c.l.b16 %v1657
    %v1792 = vunpack.c.h.b16 %v1657
    %v1793 = vunpack.c.l.b16 %v1658
    %v1794 = vunpack.c.h.b16 %v1658
    %v1795 = vunpack.c.l.b16 %v1659
    %v1796 = vunpack.c.h.b16 %v1659
    %v1797 = vunpack.c.l.b16 %v1660
    %v1798 = vunpack.c.h.b16 %v1660
    %v1799 = vunpack.c.l.b16 %v1661
    %v1800 = vunpack.c.h.b16 %v1661
    %v1801 = vunpack.c.l.b16 %v1662
    %v1802 = vunpack.c.h.b16 %v1662
    %v1803 = vunpack.c.l.b16 %v1663
    %v1804 = vunpack.c.h.b16 %v1663
    %v1805 = vunpack.c.l.b16 %v1664
    %v1806 = vunpack.c.h.b16 %v1664
    %v1807 = vunpack.c.l.b16 %v1665
    %v1808 = vunpack.c.h.b16 %v1665
    %v1809 = vunpack.c.l.b16 %v1666
    %v1810 = vunpack.c.h.b16 %v1666
    %v1811 = vunpack.c.l.b16 %v1667
    %v1812 = vunpack.c.h.b16 %v1667
    %v1813 = vunpack.c.l.b16 %v1668
    %v1814 = vunpack.c.h.b16 %v1668
    %v1815 = vunpack.c.l.b16 %v1669
    %v1816 = vunpack.c.h.b16 %v1669
    %v1817 = vunpack.c.l.b16 %v1670
    %v1818 = vunpack.c.h.b16 %v1670
    %v1819 = vunpack.c.l.b16 %v1671
    %v1820 = vunpack.c.h.b16 %v1671
    %v1821 = vunpack.c.l.b16 %v1672
    %v1822 = vunpack.c.h.b16 %v1672
    %v1823 = vunpack.c.l.b16 %v1673
    %v1824 = vunpack.c.h.b16 %v1673
    %v1825 = vunpack.c.l.b16 %v1674
    %v1826 = vunpack.c.h.b16 %v1674
    %v1827 = vunpack.c.l.b16 %v1675
    %v1828 = vunpack.c.h.b16 %v1675
    %v1829 = vunpack.c.l.b16 %v1676
    %v1830 = vunpack.c.h.b16 %v1676
    %v1831 = vunpack.c.l.b16 %v1677
    %v1832 = vunpack.c.h.b16 %v1677
    %v1833 = vunpack.c.l.b16 %v1678
    %v1834 = vunpack.c.h.b16 %v1678
    %v1835 = vunpack.c.l.b16 %v1679
    %v1836 = vunpack.c.h.b16 %v1679
    %v1837 = vunpack.c.l.b16 %v1680
    %v1838 = vunpack.c.h.b16 %v1680
    %v1839 = vunpack.c.l.b16 %v1681
    %v1840 = vunpack.c.h.b16 %v1681
    %v1841 = vunpack.c.l.b16 %v1682
    %v1842 = vunpack.c.h.b16 %v1682
    %v1843 = vunpack.c.l.b16 %v1683
    %v1844 = vunpack.c.h.b16 %v1683
    %v1845 = vunpack.c.l.b16 %v1684
    %v1846 = vunpack.c.h.b16 %v1684
    %v1847 = vunpack.c.l.b16 %v1685
    %v1848 = vunpack.c.h.b16 %v1685
    %v1849 = vunpack.c.l.b16 %v1686
    %v1850 = vunpack.c.h.b16 %v1686
    %v1851 = vunpack.c.l.b16 %v1687
    %v1852 = vunpack.c.h.b16 %v1687
    %v1853 = vunpack.c.l.b16 %v1688
    %v1854 = vunpack.c.h.b16 %v1688
    %v1855 = vunpack.c.l.b16 %v1689
    %v1856 = vunpack.c.h.b16 %v1689
    %v1857 = vunpack.c.l.b16 %v1690
    %v1858 = vunpack.c.h.b16 %v1690
    %v1859 = vunpack.c.l.b16 %v1691
    %v1860 = vunpack.c.h.b16 %v1691
    %v1861 = vunpack.c.l.b16 %v1692
    %v1862 = vunpack.c.h.b16 %v1692
    %v1863 = vunpack.c.l.b16 %v1693
    %v1864 = vunpack.c.h.b16 %v1693
    %v1865 = vunpack.c.l.b16 %v1694
    %v1866 = vunpack.c.h.b16 %v1694
    %v1867 = vunpack.c.l.b16 %v1695
    %v1868 = vunpack.c.h.b16 %v1695
    %v1869 = vunpack.c.l.b16 %v1696
    %v1870 = vunpack.c.h.b16 %v1696
    %v1871 = vunpack.c.l.b16 %v1697
    %v1872 = vunpack.c.h.b16 %v1697
    %v1873 = vunpack.c.l.b16 %v1698
    %v1874 = vunpack.c.h.b16 %v1698
    %v1875 = vpack.c.b16 %v1785, %v1779
    %v1876 = vpack.c.b16 %v1786, %v1780
    %v1877 = vpack.c.b16 %v1787, %v1781
    %v1878 = vpack.c.b16 %v1788, %v1782
    %v1879 = vpack.c.b16 %v1789, %v1783
    %v1880 = vpack.c.b16 %v1790, %v1784
    %v1881 = vpack.c.b16 %v1797, %v1791
    %v1882 = vpack.c.b16 %v1798, %v1792
    %v1883 = vpack.c.b16 %v1799, %v1793
    %v1884 = vpack.c.b16 %v1800, %v1794
    %v1885 = vpack.c.b16 %v1801, %v1795
    %v1886 = vpack.c.b16 %v1802, %v1796
    %v1887 = vpack.c.b16 %v1809, %v1803
    %v1888 = vpack.c.b16 %v1810, %v1804
    %v1889 = vpack.c.b16 %v1811, %v1805
    %v1890 = vpack.c.b16 %v1812, %v1806
    %v1891 = vpack.c.b16 %v1813, %v1807
    %v1892 = vpack.c.b16 %v1814, %v1808
    %v1893 = vpack.c.b16 %v1821, %v1815
    %v1894 = vpack.c.b16 %v1822, %v1816
    %v1895 = vpack.c.b16 %v1823, %v1817
    %v1896 = vpack.c.b16 %v1824, %v1818
    %v1897 = vpack.c.b16 %v1825, %v1819
    %v1898 = vpack.c.b16 %v1826, %v1820
    %v1899 = vpack.c.b16 %v1833, %v1827
    %v1900 = vpack.c.b16 %v1834, %v1828
    %v1901 = vpack.c.b16 %v1835, %v1829
    %v1902 = vpack.c.b16 %v1836, %v1830
    %v1903 = vpack.c.b16 %v1837, %v1831
    %v1904 = vpack.c.b16 %v1838, %v1832
    %v1905 = vpack.c.b16 %v1845, %v1839
    %v1906 = vpack.c.b16 %v1846, %v1840
    %v1907 = vpack.c.b16 %v1847, %v1841
    %v1908 = vpack.c.b16 %v1848, %v1842
    %v1909 = vpack.c.b16 %v1849, %v1843
    %v1910 = vpack.c.b16 %v1850, %v1844
    %v1911 = vpack.c.b16 %v1857, %v1851
    %v1912 = vpack.c.b16 %v1858, %v1852
    %v1913 = vpack.c.b16 %v1859, %v1853
    %v1914 = vpack.c.b16 %v1860, %v1854
    %v1915 = vpack.c.b16 %v1861, %v1855
    %v1916 = vpack.c.b16 %v1862, %v1856
    %v1917 = vpack.c.b16 %v1869, %v1863
    %v1918 = vpack.c.b16 %v1870, %v1864
    %v1919 = vpack.c.b16 %v1871, %v1865
    %v1920 = vpack.c.b16 %v1872, %v1866
    %v1921 = vpack.c.b16 %v1873, %v1867
    %v1922 = vpack.c.b16 %v1874, %v1868
    %1971 = vmatprep.subr.bf16.mxu0 %v1918
    %1972 = vmatpush1.bf16.msra.mxu0 %v1917
    %1973 = vmatprep.subr.bf16.mxu0 %v1912
    %1974 = vmatpush1.bf16.msra.mxu0 %v1911
    %1975 = vmatprep.subr.bf16.mxu0 %v1906
    %1976 = vmatpush1.bf16.msra.mxu0 %v1905
    %1977 = vmatprep.subr.bf16.mxu0 %v1900
    %1978 = vmatpush1.bf16.msra.mxu0 %v1899
    %1979 = vmatprep.subr.bf16.mxu0 %v1894
    %1980 = vmatpush1.bf16.msra.mxu0 %v1893
    %1981 = vmatprep.subr.bf16.mxu0 %v1888
    %1982 = vmatpush1.bf16.msra.mxu0 %v1887
    %1983 = vmatprep.subr.bf16.mxu0 %v1882
    %1984 = vmatpush1.bf16.msra.mxu0 %v1881
    %1985 = vmatprep.subr.bf16.mxu0 %v1876
    %1986 = vmatpush1.bf16.msra.mxu0 %v1875
    %1987 = vmatprep.subr.bf16.mxu0 0
    %1988 = vmatpush2.bf16.msra.mxu0 0
    %1989 = vmatprep.subr.bf16.mxu0 0
    %1990 = vmatpush2.bf16.msra.mxu0 0
    %1991 = vmatprep.subr.bf16.mxu0 0
    %1992 = vmatpush2.bf16.msra.mxu0 0
    %1993 = vmatprep.subr.bf16.mxu0 0
    %1994 = vmatpush2.bf16.msra.mxu0 0
    %1995 = vmatprep.subr.bf16.mxu0 0
    %1996 = vmatpush2.bf16.msra.mxu0 0
    %1997 = vmatprep.subr.bf16.mxu0 0
    %1998 = vmatpush2.bf16.msra.mxu0 0
    %1999 = vmatprep.subr.bf16.mxu0 0
    %2000 = vmatpush2.bf16.msra.mxu0 0
    %2001 = vmatprep.subr.bf16.mxu0 0
    %2002 = vmatpush2.bf16.msra.mxu0 0
    %2003 = vmatprep.mubr.bf16.mxu0 0
    %2004 = vmatmul.mubr.bf16.gmra.mxu0 %v1626
    %v2005 = vpop.f32.mrf.mxu0
    %v2006 = vadd.f32 %v1704, %v2005
    %v2007 = vpop.f32.mrf.mxu0
    %v2008 = vadd.f32 %v1708, %v2007
    %v2009 = vpop.f32.mrf.mxu0
    %v2010 = vadd.f32 %v1704, %v2009
    %v2011 = vpop.f32.mrf.mxu0
    %v2012 = vadd.f32 %v1708, %v2011
    %2013 = vmatprep.mubr.bf16.mxu0 0
    %2014 = vmatmul.mubr.bf16.gmra.mxu0 %v1627
    %v2015 = vpop.f32.mrf.mxu0
    %v2016 = vadd.f32 %v1704, %v2015
    %v2017 = vpop.f32.mrf.mxu0
    %v2018 = vadd.f32 %v1708, %v2017
    %v2019 = vpop.f32.mrf.mxu0
    %v2020 = vadd.f32 %v1704, %v2019
    %v2021 = vpop.f32.mrf.mxu0
    %v2022 = vadd.f32 %v1708, %v2021
    %2023 = vmatprep.mubr.bf16.mxu0 0
    %2024 = vmatmul.mubr.bf16.gmra.mxu0 %v1628
    %v2025 = vpop.f32.mrf.mxu0
    %v2026 = vadd.f32 %v1704, %v2025
    %v2027 = vpop.f32.mrf.mxu0
    %v2028 = vadd.f32 %v1708, %v2027
    %v2029 = vpop.f32.mrf.mxu0
    %v2030 = vadd.f32 %v1704, %v2029
    %v2031 = vpop.f32.mrf.mxu0
    %v2032 = vadd.f32 %v1708, %v2031
    %2033 = vmatprep.mubr.bf16.mxu0 0
    %2034 = vmatmul.mubr.bf16.gmra.mxu0 %v1629
    %v2035 = vpop.f32.mrf.mxu0
    %v2036 = vadd.f32 %v1704, %v2035
    %v2037 = vpop.f32.mrf.mxu0
    %v2038 = vadd.f32 %v1708, %v2037
    %v2039 = vpop.f32.mrf.mxu0
    %v2040 = vadd.f32 %v1704, %v2039
    %v2041 = vpop.f32.mrf.mxu0
    %v2042 = vadd.f32 %v1708, %v2041
    %2043 = vmatprep.mubr.bf16.mxu0 0
    %2044 = vmatmul.mubr.bf16.gmra.mxu0 %v1630
    %v2045 = vpop.f32.mrf.mxu0
    %v2046 = vadd.f32 %v1704, %v2045
    %v2047 = vpop.f32.mrf.mxu0
    %v2048 = vadd.f32 %v1708, %v2047
    %v2049 = vpop.f32.mrf.mxu0
    %v2050 = vadd.f32 %v1704, %v2049
    %v2051 = vpop.f32.mrf.mxu0
    %v2052 = vadd.f32 %v1708, %v2051
    %2053 = vmatprep.mubr.bf16.mxu0 0
    %2054 = vmatmul.mubr.bf16.gmra.mxu0 %v1631
    %v2055 = vpop.f32.mrf.mxu0
    %v2056 = vadd.f32 %v1704, %v2055
    %v2057 = vpop.f32.mrf.mxu0
    %v2058 = vadd.f32 %v1708, %v2057
    %v2059 = vpop.f32.mrf.mxu0
    %v2060 = vadd.f32 %v1704, %v2059
    %v2061 = vpop.f32.mrf.mxu0
    %v2062 = vadd.f32 %v1708, %v2061
    %2063 = vmatprep.mubr.bf16.mxu0 0
    %2064 = vmatmul.mubr.bf16.gmra.mxu0 %v1632
    %v2065 = vpop.f32.mrf.mxu0
    %v2066 = vadd.f32 %v1704, %v2065
    %v2067 = vpop.f32.mrf.mxu0
    %v2068 = vadd.f32 %v1708, %v2067
    %v2069 = vpop.f32.mrf.mxu0
    %v2070 = vadd.f32 %v1704, %v2069
    %v2071 = vpop.f32.mrf.mxu0
    %v2072 = vadd.f32 %v1708, %v2071
    %2073 = vmatprep.mubr.bf16.mxu0 0
    %2074 = vmatmul.mubr.bf16.gmra.mxu0 %v1633
    %v2075 = vpop.f32.mrf.mxu0
    %v2076 = vadd.f32 %v1704, %v2075
    %v2077 = vpop.f32.mrf.mxu0
    %v2078 = vadd.f32 %v1708, %v2077
    %v2079 = vpop.f32.mrf.mxu0
    %v2080 = vadd.f32 %v1704, %v2079
    %v2081 = vpop.f32.mrf.mxu0
    %v2082 = vadd.f32 %v1708, %v2081
    %2083 = vmatprep.mubr.bf16.mxu0 0
    %2084 = vmatmul.mubr.bf16.gmra.mxu0 %v1634
    %v2085 = vpop.f32.mrf.mxu0
    %v2086 = vadd.f32 %v1704, %v2085
    %v2087 = vpop.f32.mrf.mxu0
    %v2088 = vadd.f32 %v1708, %v2087
    %v2089 = vpop.f32.mrf.mxu0
    %v2090 = vadd.f32 %v1704, %v2089
    %v2091 = vpop.f32.mrf.mxu0
    %v2092 = vadd.f32 %v1708, %v2091
    %2093 = vmatprep.mubr.bf16.mxu0 0
    %2094 = vmatmul.mubr.bf16.gmra.mxu0 %v1635
    %v2095 = vpop.f32.mrf.mxu0
    %v2096 = vadd.f32 %v1704, %v2095
    %v2097 = vpop.f32.mrf.mxu0
    %v2098 = vadd.f32 %v1708, %v2097
    %v2099 = vpop.f32.mrf.mxu0
    %v2100 = vadd.f32 %v1704, %v2099
    %v2101 = vpop.f32.mrf.mxu0
    %v2102 = vadd.f32 %v1708, %v2101
    %2103 = vmatprep.mubr.bf16.mxu0 0
    %2104 = vmatmul.mubr.bf16.gmra.mxu0 %v1636
    %v2105 = vpop.f32.mrf.mxu0
    %v2106 = vadd.f32 %v1704, %v2105
    %v2107 = vpop.f32.mrf.mxu0
    %v2108 = vadd.f32 %v1708, %v2107
    %v2109 = vpop.f32.mrf.mxu0
    %v2110 = vadd.f32 %v1704, %v2109
    %v2111 = vpop.f32.mrf.mxu0
    %v2112 = vadd.f32 %v1708, %v2111
    %2113 = vmatprep.mubr.bf16.mxu0 0
    %2114 = vmatmul.mubr.bf16.gmra.mxu0 %v1637
    %v2115 = vpop.f32.mrf.mxu0
    %v2116 = vadd.f32 %v1704, %v2115
    %v2117 = vpop.f32.mrf.mxu0
    %v2118 = vadd.f32 %v1708, %v2117
    %v2119 = vpop.f32.mrf.mxu0
    %v2120 = vadd.f32 %v1704, %v2119
    %v2121 = vpop.f32.mrf.mxu0
    %v2122 = vadd.f32 %v1708, %v2121
    %2123 = vmatprep.mubr.bf16.mxu0 0
    %2124 = vmatmul.mubr.bf16.gmra.mxu0 %v1638
    %v2125 = vpop.f32.mrf.mxu0
    %v2126 = vadd.f32 %v1704, %v2125
    %v2127 = vpop.f32.mrf.mxu0
    %v2128 = vadd.f32 %v1708, %v2127
    %v2129 = vpop.f32.mrf.mxu0
    %v2130 = vadd.f32 %v1704, %v2129
    %v2131 = vpop.f32.mrf.mxu0
    %v2132 = vadd.f32 %v1708, %v2131
    %2133 = vmatprep.mubr.bf16.mxu0 0
    %2134 = vmatmul.mubr.bf16.gmra.mxu0 %v1639
    %v2135 = vpop.f32.mrf.mxu0
    %v2136 = vadd.f32 %v1704, %v2135
    %v2137 = vpop.f32.mrf.mxu0
    %v2138 = vadd.f32 %v1708, %v2137
    %v2139 = vpop.f32.mrf.mxu0
    %v2140 = vadd.f32 %v1704, %v2139
    %v2141 = vpop.f32.mrf.mxu0
    %v2142 = vadd.f32 %v1708, %v2141
    %2143 = vmatprep.mubr.bf16.mxu0 0
    %2144 = vmatmul.mubr.bf16.gmra.mxu0 %v1640
    %v2145 = vpop.f32.mrf.mxu0
    %v2146 = vadd.f32 %v1704, %v2145
    %v2147 = vpop.f32.mrf.mxu0
    %v2148 = vadd.f32 %v1708, %v2147
    %v2149 = vpop.f32.mrf.mxu0
    %v2150 = vadd.f32 %v1704, %v2149
    %v2151 = vpop.f32.mrf.mxu0
    %v2152 = vadd.f32 %v1708, %v2151
    %2153 = vmatprep.mubr.bf16.mxu0 0
    %2154 = vmatmul.mubr.bf16.gmra.mxu0 %v1641
    %v2155 = vpop.f32.mrf.mxu0
    %v2156 = vadd.f32 %v1704, %v2155
    %v2157 = vpop.f32.mrf.mxu0
    %v2158 = vadd.f32 %v1708, %v2157
    %v2159 = vpop.f32.mrf.mxu0
    %v2160 = vadd.f32 %v1704, %v2159
    %v2161 = vpop.f32.mrf.mxu0
    %v2162 = vadd.f32 %v1708, %v2161
    %2163 = vmatprep.mubr.bf16.mxu0 0
    %2164 = vmatmul.mubr.bf16.gmra.mxu0 %v1642
    %v2165 = vpop.f32.mrf.mxu0
    %v2166 = vadd.f32 %v1704, %v2165
    %v2167 = vpop.f32.mrf.mxu0
    %v2168 = vadd.f32 %v1708, %v2167
    %v2169 = vpop.f32.mrf.mxu0
    %v2170 = vadd.f32 %v1704, %v2169
    %v2171 = vpop.f32.mrf.mxu0
    %v2172 = vadd.f32 %v1708, %v2171
    %2173 = vmatprep.mubr.bf16.mxu0 0
    %2174 = vmatmul.mubr.bf16.gmra.mxu0 %v1643
    %v2175 = vpop.f32.mrf.mxu0
    %v2176 = vadd.f32 %v1704, %v2175
    %v2177 = vpop.f32.mrf.mxu0
    %v2178 = vadd.f32 %v1708, %v2177
    %v2179 = vpop.f32.mrf.mxu0
    %v2180 = vadd.f32 %v1704, %v2179
    %v2181 = vpop.f32.mrf.mxu0
    %v2182 = vadd.f32 %v1708, %v2181
    %2183 = vmatprep.mubr.bf16.mxu0 0
    %2184 = vmatmul.mubr.bf16.gmra.mxu0 %v1644
    %v2185 = vpop.f32.mrf.mxu0
    %v2186 = vadd.f32 %v1704, %v2185
    %v2187 = vpop.f32.mrf.mxu0
    %v2188 = vadd.f32 %v1708, %v2187
    %v2189 = vpop.f32.mrf.mxu0
    %v2190 = vadd.f32 %v1704, %v2189
    %v2191 = vpop.f32.mrf.mxu0
    %v2192 = vadd.f32 %v1708, %v2191
    %2193 = vmatprep.mubr.bf16.mxu0 0
    %2194 = vmatmul.mubr.bf16.gmra.mxu0 %v1645
    %v2195 = vpop.f32.mrf.mxu0
    %v2196 = vadd.f32 %v1704, %v2195
    %v2197 = vpop.f32.mrf.mxu0
    %v2198 = vadd.f32 %v1708, %v2197
    %v2199 = vpop.f32.mrf.mxu0
    %v2200 = vadd.f32 %v1704, %v2199
    %v2201 = vpop.f32.mrf.mxu0
    %v2202 = vadd.f32 %v1708, %v2201
    %2203 = vmatprep.mubr.bf16.mxu0 0
    %2204 = vmatmul.mubr.bf16.gmra.mxu0 %v1646
    %v2205 = vpop.f32.mrf.mxu0
    %v2206 = vadd.f32 %v1704, %v2205
    %v2207 = vpop.f32.mrf.mxu0
    %v2208 = vadd.f32 %v1708, %v2207
    %v2209 = vpop.f32.mrf.mxu0
    %v2210 = vadd.f32 %v1704, %v2209
    %v2211 = vpop.f32.mrf.mxu0
    %v2212 = vadd.f32 %v1708, %v2211
    %2213 = vmatprep.mubr.bf16.mxu0 0
    %2214 = vmatmul.mubr.bf16.gmra.mxu0 %v1647
    %v2215 = vpop.f32.mrf.mxu0
    %v2216 = vadd.f32 %v1704, %v2215
    %v2217 = vpop.f32.mrf.mxu0
    %v2218 = vadd.f32 %v1708, %v2217
    %v2219 = vpop.f32.mrf.mxu0
    %v2220 = vadd.f32 %v1704, %v2219
    %v2221 = vpop.f32.mrf.mxu0
    %v2222 = vadd.f32 %v1708, %v2221
    %2223 = vmatprep.mubr.bf16.mxu0 0
    %2224 = vmatmul.mubr.bf16.gmra.mxu0 %v1648
    %v2225 = vpop.f32.mrf.mxu0
    %v2226 = vadd.f32 %v1704, %v2225
    %v2227 = vpop.f32.mrf.mxu0
    %v2228 = vadd.f32 %v1708, %v2227
    %v2229 = vpop.f32.mrf.mxu0
    %v2230 = vadd.f32 %v1704, %v2229
    %v2231 = vpop.f32.mrf.mxu0
    %v2232 = vadd.f32 %v1708, %v2231
    %2233 = vmatprep.mubr.bf16.mxu0 0
    %2234 = vmatmul.mubr.bf16.gmra.mxu0 %v1649
    %v2235 = vpop.f32.mrf.mxu0
    %v2236 = vadd.f32 %v1704, %v2235
    %v2237 = vpop.f32.mrf.mxu0
    %v2238 = vadd.f32 %v1708, %v2237
    %v2239 = vpop.f32.mrf.mxu0
    %v2240 = vadd.f32 %v1704, %v2239
    %v2241 = vpop.f32.mrf.mxu0
    %v2242 = vadd.f32 %v1708, %v2241
    %2243 = vmatprep.mubr.bf16.mxu0 0
    %2244 = vmatmul.mubr.bf16.gmra.mxu0 %v1650
    %v2245 = vpop.f32.mrf.mxu0
    %v2246 = vadd.f32 %v1704, %v2245
    %v2247 = vpop.f32.mrf.mxu0
    %v2248 = vadd.f32 %v1708, %v2247
    %v2249 = vpop.f32.mrf.mxu0
    %v2250 = vadd.f32 %v1704, %v2249
    %v2251 = vpop.f32.mrf.mxu0
    %v2252 = vadd.f32 %v1708, %v2251
    %2253 = vdwg.mxu0
    %2254 = vmatprep.subr.bf16.mxu0 %v1920
    %2255 = vmatpush1.bf16.msra.mxu0 %v1919
    %2256 = vmatprep.subr.bf16.mxu0 %v1914
    %2257 = vmatpush1.bf16.msra.mxu0 %v1913
    %2258 = vmatprep.subr.bf16.mxu0 %v1908
    %2259 = vmatpush1.bf16.msra.mxu0 %v1907
    %2260 = vmatprep.subr.bf16.mxu0 %v1902
    %2261 = vmatpush1.bf16.msra.mxu0 %v1901
    %2262 = vmatprep.subr.bf16.mxu0 %v1896
    %2263 = vmatpush1.bf16.msra.mxu0 %v1895
    %2264 = vmatprep.subr.bf16.mxu0 %v1890
    %2265 = vmatpush1.bf16.msra.mxu0 %v1889
    %2266 = vmatprep.subr.bf16.mxu0 %v1884
    %2267 = vmatpush1.bf16.msra.mxu0 %v1883
    %2268 = vmatprep.subr.bf16.mxu0 %v1878
    %2269 = vmatpush1.bf16.msra.mxu0 %v1877
    %2270 = vmatprep.subr.bf16.mxu0 0
    %2271 = vmatpush2.bf16.msra.mxu0 0
    %2272 = vmatprep.subr.bf16.mxu0 0
    %2273 = vmatpush2.bf16.msra.mxu0 0
    %2274 = vmatprep.subr.bf16.mxu0 0
    %2275 = vmatpush2.bf16.msra.mxu0 0
    %2276 = vmatprep.subr.bf16.mxu0 0
    %2277 = vmatpush2.bf16.msra.mxu0 0
    %2278 = vmatprep.subr.bf16.mxu0 0
    %2279 = vmatpush2.bf16.msra.mxu0 0
    %2280 = vmatprep.subr.bf16.mxu0 0
    %2281 = vmatpush2.bf16.msra.mxu0 0
    %2282 = vmatprep.subr.bf16.mxu0 0
    %2283 = vmatpush2.bf16.msra.mxu0 0
    %2284 = vmatprep.subr.bf16.mxu0 0
    %2285 = vmatpush2.bf16.msra.mxu0 0
    %2286 = vmatprep.mubr.bf16.mxu0 0
    %2287 = vmatmul.mubr.bf16.gmra.mxu0 %v1626
    %v2288 = vpop.f32.mrf.mxu0
    %v2289 = vadd.f32 %v1712, %v2288
    %v2290 = vpop.f32.mrf.mxu0
    %v2291 = vadd.f32 %v1716, %v2290
    %v2292 = vpop.f32.mrf.mxu0
    %v2293 = vadd.f32 %v1712, %v2292
    %v2294 = vpop.f32.mrf.mxu0
    %v2295 = vadd.f32 %v1716, %v2294
    %2296 = vmatprep.mubr.bf16.mxu0 0
    %2297 = vmatmul.mubr.bf16.gmra.mxu0 %v1627
    %v2298 = vpop.f32.mrf.mxu0
    %v2299 = vadd.f32 %v1712, %v2298
    %v2300 = vpop.f32.mrf.mxu0
    %v2301 = vadd.f32 %v1716, %v2300
    %v2302 = vpop.f32.mrf.mxu0
    %v2303 = vadd.f32 %v1712, %v2302
    %v2304 = vpop.f32.mrf.mxu0
    %v2305 = vadd.f32 %v1716, %v2304
    %2306 = vmatprep.mubr.bf16.mxu0 0
    %2307 = vmatmul.mubr.bf16.gmra.mxu0 %v1628
    %v2308 = vpop.f32.mrf.mxu0
    %v2309 = vadd.f32 %v1712, %v2308
    %v2310 = vpop.f32.mrf.mxu0
    %v2311 = vadd.f32 %v1716, %v2310
    %v2312 = vpop.f32.mrf.mxu0
    %v2313 = vadd.f32 %v1712, %v2312
    %v2314 = vpop.f32.mrf.mxu0
    %v2315 = vadd.f32 %v1716, %v2314
    %2316 = vmatprep.mubr.bf16.mxu0 0
    %2317 = vmatmul.mubr.bf16.gmra.mxu0 %v1629
    %v2318 = vpop.f32.mrf.mxu0
    %v2319 = vadd.f32 %v1712, %v2318
    %v2320 = vpop.f32.mrf.mxu0
    %v2321 = vadd.f32 %v1716, %v2320
    %v2322 = vpop.f32.mrf.mxu0
    %v2323 = vadd.f32 %v1712, %v2322
    %v2324 = vpop.f32.mrf.mxu0
    %v2325 = vadd.f32 %v1716, %v2324
    %2326 = vmatprep.mubr.bf16.mxu0 0
    %2327 = vmatmul.mubr.bf16.gmra.mxu0 %v1630
    %v2328 = vpop.f32.mrf.mxu0
    %v2329 = vadd.f32 %v1712, %v2328
    %v2330 = vpop.f32.mrf.mxu0
    %v2331 = vadd.f32 %v1716, %v2330
    %v2332 = vpop.f32.mrf.mxu0
    %v2333 = vadd.f32 %v1712, %v2332
    %v2334 = vpop.f32.mrf.mxu0
    %v2335 = vadd.f32 %v1716, %v2334
    %2336 = vmatprep.mubr.bf16.mxu0 0
    %2337 = vmatmul.mubr.bf16.gmra.mxu0 %v1631
    %v2338 = vpop.f32.mrf.mxu0
    %v2339 = vadd.f32 %v1712, %v2338
    %v2340 = vpop.f32.mrf.mxu0
    %v2341 = vadd.f32 %v1716, %v2340
    %v2342 = vpop.f32.mrf.mxu0
    %v2343 = vadd.f32 %v1712, %v2342
    %v2344 = vpop.f32.mrf.mxu0
    %v2345 = vadd.f32 %v1716, %v2344
    %2346 = vmatprep.mubr.bf16.mxu0 0
    %2347 = vmatmul.mubr.bf16.gmra.mxu0 %v1632
    %v2348 = vpop.f32.mrf.mxu0
    %v2349 = vadd.f32 %v1712, %v2348
    %v2350 = vpop.f32.mrf.mxu0
    %v2351 = vadd.f32 %v1716, %v2350
    %v2352 = vpop.f32.mrf.mxu0
    %v2353 = vadd.f32 %v1712, %v2352
    %v2354 = vpop.f32.mrf.mxu0
    %v2355 = vadd.f32 %v1716, %v2354
    %2356 = vmatprep.mubr.bf16.mxu0 0
    %2357 = vmatmul.mubr.bf16.gmra.mxu0 %v1633
    %v2358 = vpop.f32.mrf.mxu0
    %v2359 = vadd.f32 %v1712, %v2358
    %v2360 = vpop.f32.mrf.mxu0
    %v2361 = vadd.f32 %v1716, %v2360
    %v2362 = vpop.f32.mrf.mxu0
    %v2363 = vadd.f32 %v1712, %v2362
    %v2364 = vpop.f32.mrf.mxu0
    %v2365 = vadd.f32 %v1716, %v2364
    %2366 = vmatprep.mubr.bf16.mxu0 0
    %2367 = vmatmul.mubr.bf16.gmra.mxu0 %v1634
    %v2368 = vpop.f32.mrf.mxu0
    %v2369 = vadd.f32 %v1712, %v2368
    %v2370 = vpop.f32.mrf.mxu0
    %v2371 = vadd.f32 %v1716, %v2370
    %v2372 = vpop.f32.mrf.mxu0
    %v2373 = vadd.f32 %v1712, %v2372
    %v2374 = vpop.f32.mrf.mxu0
    %v2375 = vadd.f32 %v1716, %v2374
    %2376 = vmatprep.mubr.bf16.mxu0 0
    %2377 = vmatmul.mubr.bf16.gmra.mxu0 %v1635
    %v2378 = vpop.f32.mrf.mxu0
    %v2379 = vadd.f32 %v1712, %v2378
    %v2380 = vpop.f32.mrf.mxu0
    %v2381 = vadd.f32 %v1716, %v2380
    %v2382 = vpop.f32.mrf.mxu0
    %v2383 = vadd.f32 %v1712, %v2382
    %v2384 = vpop.f32.mrf.mxu0
    %v2385 = vadd.f32 %v1716, %v2384
    %2386 = vmatprep.mubr.bf16.mxu0 0
    %2387 = vmatmul.mubr.bf16.gmra.mxu0 %v1636
    %v2388 = vpop.f32.mrf.mxu0
    %v2389 = vadd.f32 %v1712, %v2388
    %v2390 = vpop.f32.mrf.mxu0
    %v2391 = vadd.f32 %v1716, %v2390
    %v2392 = vpop.f32.mrf.mxu0
    %v2393 = vadd.f32 %v1712, %v2392
    %v2394 = vpop.f32.mrf.mxu0
    %v2395 = vadd.f32 %v1716, %v2394
    %2396 = vmatprep.mubr.bf16.mxu0 0
    %2397 = vmatmul.mubr.bf16.gmra.mxu0 %v1637
    %v2398 = vpop.f32.mrf.mxu0
    %v2399 = vadd.f32 %v1712, %v2398
    %v2400 = vpop.f32.mrf.mxu0
    %v2401 = vadd.f32 %v1716, %v2400
    %v2402 = vpop.f32.mrf.mxu0
    %v2403 = vadd.f32 %v1712, %v2402
    %v2404 = vpop.f32.mrf.mxu0
    %v2405 = vadd.f32 %v1716, %v2404
    %2406 = vmatprep.mubr.bf16.mxu0 0
    %2407 = vmatmul.mubr.bf16.gmra.mxu0 %v1638
    %v2408 = vpop.f32.mrf.mxu0
    %v2409 = vadd.f32 %v1712, %v2408
    %v2410 = vpop.f32.mrf.mxu0
    %v2411 = vadd.f32 %v1716, %v2410
    %v2412 = vpop.f32.mrf.mxu0
    %v2413 = vadd.f32 %v1712, %v2412
    %v2414 = vpop.f32.mrf.mxu0
    %v2415 = vadd.f32 %v1716, %v2414
    %2416 = vmatprep.mubr.bf16.mxu0 0
    %2417 = vmatmul.mubr.bf16.gmra.mxu0 %v1639
    %v2418 = vpop.f32.mrf.mxu0
    %v2419 = vadd.f32 %v1712, %v2418
    %v2420 = vpop.f32.mrf.mxu0
    %v2421 = vadd.f32 %v1716, %v2420
    %v2422 = vpop.f32.mrf.mxu0
    %v2423 = vadd.f32 %v1712, %v2422
    %v2424 = vpop.f32.mrf.mxu0
    %v2425 = vadd.f32 %v1716, %v2424
    %2426 = vmatprep.mubr.bf16.mxu0 0
    %2427 = vmatmul.mubr.bf16.gmra.mxu0 %v1640
    %v2428 = vpop.f32.mrf.mxu0
    %v2429 = vadd.f32 %v1712, %v2428
    %v2430 = vpop.f32.mrf.mxu0
    %v2431 = vadd.f32 %v1716, %v2430
    %v2432 = vpop.f32.mrf.mxu0
    %v2433 = vadd.f32 %v1712, %v2432
    %v2434 = vpop.f32.mrf.mxu0
    %v2435 = vadd.f32 %v1716, %v2434
    %2436 = vmatprep.mubr.bf16.mxu0 0
    %2437 = vmatmul.mubr.bf16.gmra.mxu0 %v1641
    %v2438 = vpop.f32.mrf.mxu0
    %v2439 = vadd.f32 %v1712, %v2438
    %v2440 = vpop.f32.mrf.mxu0
    %v2441 = vadd.f32 %v1716, %v2440
    %v2442 = vpop.f32.mrf.mxu0
    %v2443 = vadd.f32 %v1712, %v2442
    %v2444 = vpop.f32.mrf.mxu0
    %v2445 = vadd.f32 %v1716, %v2444
    %2446 = vmatprep.mubr.bf16.mxu0 0
    %2447 = vmatmul.mubr.bf16.gmra.mxu0 %v1642
    %v2448 = vpop.f32.mrf.mxu0
    %v2449 = vadd.f32 %v1712, %v2448
    %v2450 = vpop.f32.mrf.mxu0
    %v2451 = vadd.f32 %v1716, %v2450
    %v2452 = vpop.f32.mrf.mxu0
    %v2453 = vadd.f32 %v1712, %v2452
    %v2454 = vpop.f32.mrf.mxu0
    %v2455 = vadd.f32 %v1716, %v2454
    %2456 = vmatprep.mubr.bf16.mxu0 0
    %2457 = vmatmul.mubr.bf16.gmra.mxu0 %v1643
    %v2458 = vpop.f32.mrf.mxu0
    %v2459 = vadd.f32 %v1712, %v2458
    %v2460 = vpop.f32.mrf.mxu0
    %v2461 = vadd.f32 %v1716, %v2460
    %v2462 = vpop.f32.mrf.mxu0
    %v2463 = vadd.f32 %v1712, %v2462
    %v2464 = vpop.f32.mrf.mxu0
    %v2465 = vadd.f32 %v1716, %v2464
    %2466 = vmatprep.mubr.bf16.mxu0 0
    %2467 = vmatmul.mubr.bf16.gmra.mxu0 %v1644
    %v2468 = vpop.f32.mrf.mxu0
    %v2469 = vadd.f32 %v1712, %v2468
    %v2470 = vpop.f32.mrf.mxu0
    %v2471 = vadd.f32 %v1716, %v2470
    %v2472 = vpop.f32.mrf.mxu0
    %v2473 = vadd.f32 %v1712, %v2472
    %v2474 = vpop.f32.mrf.mxu0
    %v2475 = vadd.f32 %v1716, %v2474
    %2476 = vmatprep.mubr.bf16.mxu0 0
    %2477 = vmatmul.mubr.bf16.gmra.mxu0 %v1645
    %v2478 = vpop.f32.mrf.mxu0
    %v2479 = vadd.f32 %v1712, %v2478
    %v2480 = vpop.f32.mrf.mxu0
    %v2481 = vadd.f32 %v1716, %v2480
    %v2482 = vpop.f32.mrf.mxu0
    %v2483 = vadd.f32 %v1712, %v2482
    %v2484 = vpop.f32.mrf.mxu0
    %v2485 = vadd.f32 %v1716, %v2484
    %2486 = vmatprep.mubr.bf16.mxu0 0
    %2487 = vmatmul.mubr.bf16.gmra.mxu0 %v1646
    %v2488 = vpop.f32.mrf.mxu0
    %v2489 = vadd.f32 %v1712, %v2488
    %v2490 = vpop.f32.mrf.mxu0
    %v2491 = vadd.f32 %v1716, %v2490
    %v2492 = vpop.f32.mrf.mxu0
    %v2493 = vadd.f32 %v1712, %v2492
    %v2494 = vpop.f32.mrf.mxu0
    %v2495 = vadd.f32 %v1716, %v2494
    %2496 = vmatprep.mubr.bf16.mxu0 0
    %2497 = vmatmul.mubr.bf16.gmra.mxu0 %v1647
    %v2498 = vpop.f32.mrf.mxu0
    %v2499 = vadd.f32 %v1712, %v2498
    %v2500 = vpop.f32.mrf.mxu0
    %v2501 = vadd.f32 %v1716, %v2500
    %v2502 = vpop.f32.mrf.mxu0
    %v2503 = vadd.f32 %v1712, %v2502
    %v2504 = vpop.f32.mrf.mxu0
    %v2505 = vadd.f32 %v1716, %v2504
    %2506 = vmatprep.mubr.bf16.mxu0 0
    %2507 = vmatmul.mubr.bf16.gmra.mxu0 %v1648
    %v2508 = vpop.f32.mrf.mxu0
    %v2509 = vadd.f32 %v1712, %v2508
    %v2510 = vpop.f32.mrf.mxu0
    %v2511 = vadd.f32 %v1716, %v2510
    %v2512 = vpop.f32.mrf.mxu0
    %v2513 = vadd.f32 %v1712, %v2512
    %v2514 = vpop.f32.mrf.mxu0
    %v2515 = vadd.f32 %v1716, %v2514
    %2516 = vmatprep.mubr.bf16.mxu0 0
    %2517 = vmatmul.mubr.bf16.gmra.mxu0 %v1649
    %v2518 = vpop.f32.mrf.mxu0
    %v2519 = vadd.f32 %v1712, %v2518
    %v2520 = vpop.f32.mrf.mxu0
    %v2521 = vadd.f32 %v1716, %v2520
    %v2522 = vpop.f32.mrf.mxu0
    %v2523 = vadd.f32 %v1712, %v2522
    %v2524 = vpop.f32.mrf.mxu0
    %v2525 = vadd.f32 %v1716, %v2524
    %2526 = vmatprep.mubr.bf16.mxu0 0
    %2527 = vmatmul.mubr.bf16.gmra.mxu0 %v1650
    %v2528 = vpop.f32.mrf.mxu0
    %v2529 = vadd.f32 %v1712, %v2528
    %v2530 = vpop.f32.mrf.mxu0
    %v2531 = vadd.f32 %v1716, %v2530
    %v2532 = vpop.f32.mrf.mxu0
    %v2533 = vadd.f32 %v1712, %v2532
    %v2534 = vpop.f32.mrf.mxu0
    %v2535 = vadd.f32 %v1716, %v2534
    %2536 = vdwg.mxu0
    %2537 = vmatprep.subr.bf16.mxu0 %v1922
    %2538 = vmatpush1.bf16.msra.mxu0 %v1921
    %2539 = vmatprep.subr.bf16.mxu0 %v1916
    %2540 = vmatpush1.bf16.msra.mxu0 %v1915
    %2541 = vmatprep.subr.bf16.mxu0 %v1910
    %2542 = vmatpush1.bf16.msra.mxu0 %v1909
    %2543 = vmatprep.subr.bf16.mxu0 %v1904
    %2544 = vmatpush1.bf16.msra.mxu0 %v1903
    %2545 = vmatprep.subr.bf16.mxu0 %v1898
    %2546 = vmatpush1.bf16.msra.mxu0 %v1897
    %2547 = vmatprep.subr.bf16.mxu0 %v1892
    %2548 = vmatpush1.bf16.msra.mxu0 %v1891
    %2549 = vmatprep.subr.bf16.mxu0 %v1886
    %2550 = vmatpush1.bf16.msra.mxu0 %v1885
    %2551 = vmatprep.subr.bf16.mxu0 %v1880
    %2552 = vmatpush1.bf16.msra.mxu0 %v1879
    %2553 = vmatprep.subr.bf16.mxu0 0
    %2554 = vmatpush2.bf16.msra.mxu0 0
    %2555 = vmatprep.subr.bf16.mxu0 0
    %2556 = vmatpush2.bf16.msra.mxu0 0
    %2557 = vmatprep.subr.bf16.mxu0 0
    %2558 = vmatpush2.bf16.msra.mxu0 0
    %2559 = vmatprep.subr.bf16.mxu0 0
    %2560 = vmatpush2.bf16.msra.mxu0 0
    %2561 = vmatprep.subr.bf16.mxu0 0
    %2562 = vmatpush2.bf16.msra.mxu0 0
    %2563 = vmatprep.subr.bf16.mxu0 0
    %2564 = vmatpush2.bf16.msra.mxu0 0
    %2565 = vmatprep.subr.bf16.mxu0 0
    %2566 = vmatpush2.bf16.msra.mxu0 0
    %2567 = vmatprep.subr.bf16.mxu0 0
    %2568 = vmatpush2.bf16.msra.mxu0 0
    %2569 = vmatprep.mubr.bf16.mxu0 0
    %2570 = vmatmul.mubr.bf16.gmra.mxu0 %v1626
    %v2571 = vpop.f32.mrf.mxu0
    %v2572 = vadd.f32 %v1720, %v2571
    %v2573 = vpop.f32.mrf.mxu0
    %v2574 = vadd.f32 %v1724, %v2573
    %v2575 = vpop.f32.mrf.mxu0
    %v2576 = vadd.f32 %v1720, %v2575
    %v2577 = vpop.f32.mrf.mxu0
    %v2578 = vadd.f32 %v1724, %v2577
    %2579 = vmatprep.mubr.bf16.mxu0 0
    %2580 = vmatmul.mubr.bf16.gmra.mxu0 %v1627
    %v2581 = vpop.f32.mrf.mxu0
    %v2582 = vadd.f32 %v1720, %v2581
    %v2583 = vpop.f32.mrf.mxu0
    %v2584 = vadd.f32 %v1724, %v2583
    %v2585 = vpop.f32.mrf.mxu0
    %v2586 = vadd.f32 %v1720, %v2585
    %v2587 = vpop.f32.mrf.mxu0
    %v2588 = vadd.f32 %v1724, %v2587
    %2589 = vmatprep.mubr.bf16.mxu0 0
    %2590 = vmatmul.mubr.bf16.gmra.mxu0 %v1628
    %v2591 = vpop.f32.mrf.mxu0
    %v2592 = vadd.f32 %v1720, %v2591
    %v2593 = vpop.f32.mrf.mxu0
    %v2594 = vadd.f32 %v1724, %v2593
    %v2595 = vpop.f32.mrf.mxu0
    %v2596 = vadd.f32 %v1720, %v2595
    %v2597 = vpop.f32.mrf.mxu0
    %v2598 = vadd.f32 %v1724, %v2597
    %2599 = vmatprep.mubr.bf16.mxu0 0
    %2600 = vmatmul.mubr.bf16.gmra.mxu0 %v1629
    %v2601 = vpop.f32.mrf.mxu0
    %v2602 = vadd.f32 %v1720, %v2601
    %v2603 = vpop.f32.mrf.mxu0
    %v2604 = vadd.f32 %v1724, %v2603
    %v2605 = vpop.f32.mrf.mxu0
    %v2606 = vadd.f32 %v1720, %v2605
    %v2607 = vpop.f32.mrf.mxu0
    %v2608 = vadd.f32 %v1724, %v2607
    %2609 = vmatprep.mubr.bf16.mxu0 0
    %2610 = vmatmul.mubr.bf16.gmra.mxu0 %v1630
    %v2611 = vpop.f32.mrf.mxu0
    %v2612 = vadd.f32 %v1720, %v2611
    %v2613 = vpop.f32.mrf.mxu0
    %v2614 = vadd.f32 %v1724, %v2613
    %v2615 = vpop.f32.mrf.mxu0
    %v2616 = vadd.f32 %v1720, %v2615
    %v2617 = vpop.f32.mrf.mxu0
    %v2618 = vadd.f32 %v1724, %v2617
    %2619 = vmatprep.mubr.bf16.mxu0 0
    %2620 = vmatmul.mubr.bf16.gmra.mxu0 %v1631
    %v2621 = vpop.f32.mrf.mxu0
    %v2622 = vadd.f32 %v1720, %v2621
    %v2623 = vpop.f32.mrf.mxu0
    %v2624 = vadd.f32 %v1724, %v2623
    %v2625 = vpop.f32.mrf.mxu0
    %v2626 = vadd.f32 %v1720, %v2625
    %v2627 = vpop.f32.mrf.mxu0
    %v2628 = vadd.f32 %v1724, %v2627
    %2629 = vmatprep.mubr.bf16.mxu0 0
    %2630 = vmatmul.mubr.bf16.gmra.mxu0 %v1632
    %v2631 = vpop.f32.mrf.mxu0
    %v2632 = vadd.f32 %v1720, %v2631
    %v2633 = vpop.f32.mrf.mxu0
    %v2634 = vadd.f32 %v1724, %v2633
    %v2635 = vpop.f32.mrf.mxu0
    %v2636 = vadd.f32 %v1720, %v2635
    %v2637 = vpop.f32.mrf.mxu0
    %v2638 = vadd.f32 %v1724, %v2637
    %2639 = vmatprep.mubr.bf16.mxu0 0
    %2640 = vmatmul.mubr.bf16.gmra.mxu0 %v1633
    %v2641 = vpop.f32.mrf.mxu0
    %v2642 = vadd.f32 %v1720, %v2641
    %v2643 = vpop.f32.mrf.mxu0
    %v2644 = vadd.f32 %v1724, %v2643
    %v2645 = vpop.f32.mrf.mxu0
    %v2646 = vadd.f32 %v1720, %v2645
    %v2647 = vpop.f32.mrf.mxu0
    %v2648 = vadd.f32 %v1724, %v2647
    %2649 = vmatprep.mubr.bf16.mxu0 0
    %2650 = vmatmul.mubr.bf16.gmra.mxu0 %v1634
    %v2651 = vpop.f32.mrf.mxu0
    %v2652 = vadd.f32 %v1720, %v2651
    %v2653 = vpop.f32.mrf.mxu0
    %v2654 = vadd.f32 %v1724, %v2653
    %v2655 = vpop.f32.mrf.mxu0
    %v2656 = vadd.f32 %v1720, %v2655
    %v2657 = vpop.f32.mrf.mxu0
    %v2658 = vadd.f32 %v1724, %v2657
    %2659 = vmatprep.mubr.bf16.mxu0 0
    %2660 = vmatmul.mubr.bf16.gmra.mxu0 %v1635
    %v2661 = vpop.f32.mrf.mxu0
    %v2662 = vadd.f32 %v1720, %v2661
    %v2663 = vpop.f32.mrf.mxu0
    %v2664 = vadd.f32 %v1724, %v2663
    %v2665 = vpop.f32.mrf.mxu0
    %v2666 = vadd.f32 %v1720, %v2665
    %v2667 = vpop.f32.mrf.mxu0
    %v2668 = vadd.f32 %v1724, %v2667
    %2669 = vmatprep.mubr.bf16.mxu0 0
    %2670 = vmatmul.mubr.bf16.gmra.mxu0 %v1636
    %v2671 = vpop.f32.mrf.mxu0
    %v2672 = vadd.f32 %v1720, %v2671
    %v2673 = vpop.f32.mrf.mxu0
    %v2674 = vadd.f32 %v1724, %v2673
    %v2675 = vpop.f32.mrf.mxu0
    %v2676 = vadd.f32 %v1720, %v2675
    %v2677 = vpop.f32.mrf.mxu0
    %v2678 = vadd.f32 %v1724, %v2677
    %2679 = vmatprep.mubr.bf16.mxu0 0
    %2680 = vmatmul.mubr.bf16.gmra.mxu0 %v1637
    %v2681 = vpop.f32.mrf.mxu0
    %v2682 = vadd.f32 %v1720, %v2681
    %v2683 = vpop.f32.mrf.mxu0
    %v2684 = vadd.f32 %v1724, %v2683
    %v2685 = vpop.f32.mrf.mxu0
    %v2686 = vadd.f32 %v1720, %v2685
    %v2687 = vpop.f32.mrf.mxu0
    %v2688 = vadd.f32 %v1724, %v2687
    %2689 = vmatprep.mubr.bf16.mxu0 0
    %2690 = vmatmul.mubr.bf16.gmra.mxu0 %v1638
    %v2691 = vpop.f32.mrf.mxu0
    %v2692 = vadd.f32 %v1720, %v2691
    %v2693 = vpop.f32.mrf.mxu0
    %v2694 = vadd.f32 %v1724, %v2693
    %v2695 = vpop.f32.mrf.mxu0
    %v2696 = vadd.f32 %v1720, %v2695
    %v2697 = vpop.f32.mrf.mxu0
    %v2698 = vadd.f32 %v1724, %v2697
    %2699 = vmatprep.mubr.bf16.mxu0 0
    %2700 = vmatmul.mubr.bf16.gmra.mxu0 %v1639
    %v2701 = vpop.f32.mrf.mxu0
    %v2702 = vadd.f32 %v1720, %v2701
    %v2703 = vpop.f32.mrf.mxu0
    %v2704 = vadd.f32 %v1724, %v2703
    %v2705 = vpop.f32.mrf.mxu0
    %v2706 = vadd.f32 %v1720, %v2705
    %v2707 = vpop.f32.mrf.mxu0
    %v2708 = vadd.f32 %v1724, %v2707
    %2709 = vmatprep.mubr.bf16.mxu0 0
    %2710 = vmatmul.mubr.bf16.gmra.mxu0 %v1640
    %v2711 = vpop.f32.mrf.mxu0
    %v2712 = vadd.f32 %v1720, %v2711
    %v2713 = vpop.f32.mrf.mxu0
    %v2714 = vadd.f32 %v1724, %v2713
    %v2715 = vpop.f32.mrf.mxu0
    %v2716 = vadd.f32 %v1720, %v2715
    %v2717 = vpop.f32.mrf.mxu0
    %v2718 = vadd.f32 %v1724, %v2717
    %2719 = vmatprep.mubr.bf16.mxu0 0
    %2720 = vmatmul.mubr.bf16.gmra.mxu0 %v1641
    %v2721 = vpop.f32.mrf.mxu0
    %v2722 = vadd.f32 %v1720, %v2721
    %v2723 = vpop.f32.mrf.mxu0
    %v2724 = vadd.f32 %v1724, %v2723
    %v2725 = vpop.f32.mrf.mxu0
    %v2726 = vadd.f32 %v1720, %v2725
    %v2727 = vpop.f32.mrf.mxu0
    %v2728 = vadd.f32 %v1724, %v2727
    %2729 = vmatprep.mubr.bf16.mxu0 0
    %2730 = vmatmul.mubr.bf16.gmra.mxu0 %v1642
    %v2731 = vpop.f32.mrf.mxu0
    %v2732 = vadd.f32 %v1720, %v2731
    %v2733 = vpop.f32.mrf.mxu0
    %v2734 = vadd.f32 %v1724, %v2733
    %v2735 = vpop.f32.mrf.mxu0
    %v2736 = vadd.f32 %v1720, %v2735
    %v2737 = vpop.f32.mrf.mxu0
    %v2738 = vadd.f32 %v1724, %v2737
    %2739 = vmatprep.mubr.bf16.mxu0 0
    %2740 = vmatmul.mubr.bf16.gmra.mxu0 %v1643
    %v2741 = vpop.f32.mrf.mxu0
    %v2742 = vadd.f32 %v1720, %v2741
    %v2743 = vpop.f32.mrf.mxu0
    %v2744 = vadd.f32 %v1724, %v2743
    %v2745 = vpop.f32.mrf.mxu0
    %v2746 = vadd.f32 %v1720, %v2745
    %v2747 = vpop.f32.mrf.mxu0
    %v2748 = vadd.f32 %v1724, %v2747
    %2749 = vmatprep.mubr.bf16.mxu0 0
    %2750 = vmatmul.mubr.bf16.gmra.mxu0 %v1644
    %v2751 = vpop.f32.mrf.mxu0
    %v2752 = vadd.f32 %v1720, %v2751
    %v2753 = vpop.f32.mrf.mxu0
    %v2754 = vadd.f32 %v1724, %v2753
    %v2755 = vpop.f32.mrf.mxu0
    %v2756 = vadd.f32 %v1720, %v2755
    %v2757 = vpop.f32.mrf.mxu0
    %v2758 = vadd.f32 %v1724, %v2757
    %2759 = vmatprep.mubr.bf16.mxu0 0
    %2760 = vmatmul.mubr.bf16.gmra.mxu0 %v1645
    %v2761 = vpop.f32.mrf.mxu0
    %v2762 = vadd.f32 %v1720, %v2761
    %v2763 = vpop.f32.mrf.mxu0
    %v2764 = vadd.f32 %v1724, %v2763
    %v2765 = vpop.f32.mrf.mxu0
    %v2766 = vadd.f32 %v1720, %v2765
    %v2767 = vpop.f32.mrf.mxu0
    %v2768 = vadd.f32 %v1724, %v2767
    %2769 = vmatprep.mubr.bf16.mxu0 0
    %2770 = vmatmul.mubr.bf16.gmra.mxu0 %v1646
    %v2771 = vpop.f32.mrf.mxu0
    %v2772 = vadd.f32 %v1720, %v2771
    %v2773 = vpop.f32.mrf.mxu0
    %v2774 = vadd.f32 %v1724, %v2773
    %v2775 = vpop.f32.mrf.mxu0
    %v2776 = vadd.f32 %v1720, %v2775
    %v2777 = vpop.f32.mrf.mxu0
    %v2778 = vadd.f32 %v1724, %v2777
    %2779 = vmatprep.mubr.bf16.mxu0 0
    %2780 = vmatmul.mubr.bf16.gmra.mxu0 %v1647
    %v2781 = vpop.f32.mrf.mxu0
    %v2782 = vadd.f32 %v1720, %v2781
    %v2783 = vpop.f32.mrf.mxu0
    %v2784 = vadd.f32 %v1724, %v2783
    %v2785 = vpop.f32.mrf.mxu0
    %v2786 = vadd.f32 %v1720, %v2785
    %v2787 = vpop.f32.mrf.mxu0
    %v2788 = vadd.f32 %v1724, %v2787
    %2789 = vmatprep.mubr.bf16.mxu0 0
    %2790 = vmatmul.mubr.bf16.gmra.mxu0 %v1648
    %v2791 = vpop.f32.mrf.mxu0
    %v2792 = vadd.f32 %v1720, %v2791
    %v2793 = vpop.f32.mrf.mxu0
    %v2794 = vadd.f32 %v1724, %v2793
    %v2795 = vpop.f32.mrf.mxu0
    %v2796 = vadd.f32 %v1720, %v2795
    %v2797 = vpop.f32.mrf.mxu0
    %v2798 = vadd.f32 %v1724, %v2797
    %2799 = vmatprep.mubr.bf16.mxu0 0
    %2800 = vmatmul.mubr.bf16.gmra.mxu0 %v1649
    %v2801 = vpop.f32.mrf.mxu0
    %v2802 = vadd.f32 %v1720, %v2801
    %v2803 = vpop.f32.mrf.mxu0
    %v2804 = vadd.f32 %v1724, %v2803
    %v2805 = vpop.f32.mrf.mxu0
    %v2806 = vadd.f32 %v1720, %v2805
    %v2807 = vpop.f32.mrf.mxu0
    %v2808 = vadd.f32 %v1724, %v2807
    %2809 = vmatprep.mubr.bf16.mxu0 0
    %2810 = vmatmul.mubr.bf16.gmra.mxu0 %v1650
    %v2811 = vpop.f32.mrf.mxu0
    %v2812 = vadd.f32 %v1720, %v2811
    %v2813 = vpop.f32.mrf.mxu0
    %v2814 = vadd.f32 %v1724, %v2813
    %v2815 = vpop.f32.mrf.mxu0
    %v2816 = vadd.f32 %v1720, %v2815
    %v2817 = vpop.f32.mrf.mxu0
    %v2818 = vadd.f32 %v1724, %v2817
    %2819 = vdwg.mxu0
    %2820 = vst [vmem:[#allocation11] sm:$0xff] %v2006
    %2821 = vst [vmem:[#allocation11 + $0x8] sm:$0xff] %v2008
    %2822 = vst [vmem:[#allocation11 + $0x10] sm:$0xff] %v2289
    %2823 = vst [vmem:[#allocation11 + $0x18] sm:$0xff] %v2291
    %2824 = vst [vmem:[#allocation11 + $0x20] sm:$0xff] %v2572
    %2825 = vst [vmem:[#allocation11 + $0x28] sm:$0xff] %v2574
    %2826 = vst [vmem:[#allocation11 + $0x30] sm:$0xff] %v2010
    %2827 = vst [vmem:[#allocation11 + $0x38] sm:$0xff] %v2012
    %2828 = vst [vmem:[#allocation11 + $0x40] sm:$0xff] %v2293
    %2829 = vst [vmem:[#allocation11 + $0x48] sm:$0xff] %v2295
    %2830 = vst [vmem:[#allocation11 + $0x50] sm:$0xff] %v2576
    %2831 = vst [vmem:[#allocation11 + $0x58] sm:$0xff] %v2578
    %2832 = vst [vmem:[#allocation11 + $0x60] sm:$0xff] %v2016
    %2833 = vst [vmem:[#allocation11 + $0x68] sm:$0xff] %v2018
    %2834 = vst [vmem:[#allocation11 + $0x70] sm:$0xff] %v2299
    %2835 = vst [vmem:[#allocation11 + $0x78] sm:$0xff] %v2301
    %2836 = vst [vmem:[#allocation11 + $0x80] sm:$0xff] %v2582
    %2837 = vst [vmem:[#allocation11 + $0x88] sm:$0xff] %v2584
    %2838 = vst [vmem:[#allocation11 + $0x90] sm:$0xff] %v2020
    %2839 = vst [vmem:[#allocation11 + $0x98] sm:$0xff] %v2022
    %2840 = vst [vmem:[#allocation11 + $0xa0] sm:$0xff] %v2303
    %2841 = vst [vmem:[#allocation11 + $0xa8] sm:$0xff] %v2305
    %2842 = vst [vmem:[#allocation11 + $0xb0] sm:$0xff] %v2586
    %2843 = vst [vmem:[#allocation11 + $0xb8] sm:$0xff] %v2588
    %2844 = vst [vmem:[#allocation11 + $0xc0] sm:$0xff] %v2026
    %2845 = vst [vmem:[#allocation11 + $0xc8] sm:$0xff] %v2028
    %2846 = vst [vmem:[#allocation11 + $0xd0] sm:$0xff] %v2309
    %2847 = vst [vmem:[#allocation11 + $0xd8] sm:$0xff] %v2311
    %2848 = vst [vmem:[#allocation11 + $0xe0] sm:$0xff] %v2592
    %2849 = vst [vmem:[#allocation11 + $0xe8] sm:$0xff] %v2594
    %2850 = vst [vmem:[#allocation11 + $0xf0] sm:$0xff] %v2030
    %2851 = vst [vmem:[#allocation11 + $0xf8] sm:$0xff] %v2032
    %2852 = vst [vmem:[#allocation11 + $0x100] sm:$0xff] %v2313
    %2853 = vst [vmem:[#allocation11 + $0x108] sm:$0xff] %v2315
    %2854 = vst [vmem:[#allocation11 + $0x110] sm:$0xff] %v2596
    %2855 = vst [vmem:[#allocation11 + $0x118] sm:$0xff] %v2598
    %2856 = vst [vmem:[#allocation11 + $0x120] sm:$0xff] %v2036
    %2857 = vst [vmem:[#allocation11 + $0x128] sm:$0xff] %v2038
    %2858 = vst [vmem:[#allocation11 + $0x130] sm:$0xff] %v2319
    %2859 = vst [vmem:[#allocation11 + $0x138] sm:$0xff] %v2321
    %2860 = vst [vmem:[#allocation11 + $0x140] sm:$0xff] %v2602
    %2861 = vst [vmem:[#allocation11 + $0x148] sm:$0xff] %v2604
    %2862 = vst [vmem:[#allocation11 + $0x150] sm:$0xff] %v2040
    %2863 = vst [vmem:[#allocation11 + $0x158] sm:$0xff] %v2042
    %2864 = vst [vmem:[#allocation11 + $0x160] sm:$0xff] %v2323
    %2865 = vst [vmem:[#allocation11 + $0x168] sm:$0xff] %v2325
    %2866 = vst [vmem:[#allocation11 + $0x170] sm:$0xff] %v2606
    %2867 = vst [vmem:[#allocation11 + $0x178] sm:$0xff] %v2608
    %2868 = vst [vmem:[#allocation11 + $0x180] sm:$0xff] %v2046
    %2869 = vst [vmem:[#allocation11 + $0x188] sm:$0xff] %v2048
    %2870 = vst [vmem:[#allocation11 + $0x190] sm:$0xff] %v2329
    %2871 = vst [vmem:[#allocation11 + $0x198] sm:$0xff] %v2331
    %2872 = vst [vmem:[#allocation11 + $0x1a0] sm:$0xff] %v2612
    %2873 = vst [vmem:[#allocation11 + $0x1a8] sm:$0xff] %v2614
    %2874 = vst [vmem:[#allocation11 + $0x1b0] sm:$0xff] %v2050
    %2875 = vst [vmem:[#allocation11 + $0x1b8] sm:$0xff] %v2052
    %2876 = vst [vmem:[#allocation11 + $0x1c0] sm:$0xff] %v2333
    %2877 = vst [vmem:[#allocation11 + $0x1c8] sm:$0xff] %v2335
    %2878 = vst [vmem:[#allocation11 + $0x1d0] sm:$0xff] %v2616
    %2879 = vst [vmem:[#allocation11 + $0x1d8] sm:$0xff] %v2618
    %2880 = vst [vmem:[#allocation11 + $0x1e0] sm:$0xff] %v2056
    %2881 = vst [vmem:[#allocation11 + $0x1e8] sm:$0xff] %v2058
    %2882 = vst [vmem:[#allocation11 + $0x1f0] sm:$0xff] %v2339
    %2883 = vst [vmem:[#allocation11 + $0x1f8] sm:$0xff] %v2341
    %2884 = vst [vmem:[#allocation11 + $0x200] sm:$0xff] %v2622
    %2885 = vst [vmem:[#allocation11 + $0x208] sm:$0xff] %v2624
    %2886 = vst [vmem:[#allocation11 + $0x210] sm:$0xff] %v2060
    %2887 = vst [vmem:[#allocation11 + $0x218] sm:$0xff] %v2062
    %2888 = vst [vmem:[#allocation11 + $0x220] sm:$0xff] %v2343
    %2889 = vst [vmem:[#allocation11 + $0x228] sm:$0xff] %v2345
    %2890 = vst [vmem:[#allocation11 + $0x230] sm:$0xff] %v2626
    %2891 = vst [vmem:[#allocation11 + $0x238] sm:$0xff] %v2628
    %2892 = vst [vmem:[#allocation11 + $0x240] sm:$0xff] %v2066
    %2893 = vst [vmem:[#allocation11 + $0x248] sm:$0xff] %v2068
    %2894 = vst [vmem:[#allocation11 + $0x250] sm:$0xff] %v2349
    %2895 = vst [vmem:[#allocation11 + $0x258] sm:$0xff] %v2351
    %2896 = vst [vmem:[#allocation11 + $0x260] sm:$0xff] %v2632
    %2897 = vst [vmem:[#allocation11 + $0x268] sm:$0xff] %v2634
    %2898 = vst [vmem:[#allocation11 + $0x270] sm:$0xff] %v2070
    %2899 = vst [vmem:[#allocation11 + $0x278] sm:$0xff] %v2072
    %2900 = vst [vmem:[#allocation11 + $0x280] sm:$0xff] %v2353
    %2901 = vst [vmem:[#allocation11 + $0x288] sm:$0xff] %v2355
    %2902 = vst [vmem:[#allocation11 + $0x290] sm:$0xff] %v2636
    %2903 = vst [vmem:[#allocation11 + $0x298] sm:$0xff] %v2638
    %2904 = vst [vmem:[#allocation11 + $0x2a0] sm:$0xff] %v2076
    %2905 = vst [vmem:[#allocation11 + $0x2a8] sm:$0xff] %v2078
    %2906 = vst [vmem:[#allocation11 + $0x2b0] sm:$0xff] %v2359
    %2907 = vst [vmem:[#allocation11 + $0x2b8] sm:$0xff] %v2361
    %2908 = vst [vmem:[#allocation11 + $0x2c0] sm:$0xff] %v2642
    %2909 = vst [vmem:[#allocation11 + $0x2c8] sm:$0xff] %v2644
    %2910 = vst [vmem:[#allocation11 + $0x2d0] sm:$0xff] %v2080
    %2911 = vst [vmem:[#allocation11 + $0x2d8] sm:$0xff] %v2082
    %2912 = vst [vmem:[#allocation11 + $0x2e0] sm:$0xff] %v2363
    %2913 = vst [vmem:[#allocation11 + $0x2e8] sm:$0xff] %v2365
    %2914 = vst [vmem:[#allocation11 + $0x2f0] sm:$0xff] %v2646
    %2915 = vst [vmem:[#allocation11 + $0x2f8] sm:$0xff] %v2648
    %2916 = vst [vmem:[#allocation11 + $0x300] sm:$0xff] %v2086
    %2917 = vst [vmem:[#allocation11 + $0x308] sm:$0xff] %v2088
    %2918 = vst [vmem:[#allocation11 + $0x310] sm:$0xff] %v2369
    %2919 = vst [vmem:[#allocation11 + $0x318] sm:$0xff] %v2371
    %2920 = vst [vmem:[#allocation11 + $0x320] sm:$0xff] %v2652
    %2921 = vst [vmem:[#allocation11 + $0x328] sm:$0xff] %v2654
    %2922 = vst [vmem:[#allocation11 + $0x330] sm:$0xff] %v2090
    %2923 = vst [vmem:[#allocation11 + $0x338] sm:$0xff] %v2092
    %2924 = vst [vmem:[#allocation11 + $0x340] sm:$0xff] %v2373
    %2925 = vst [vmem:[#allocation11 + $0x348] sm:$0xff] %v2375
    %2926 = vst [vmem:[#allocation11 + $0x350] sm:$0xff] %v2656
    %2927 = vst [vmem:[#allocation11 + $0x358] sm:$0xff] %v2658
    %2928 = vst [vmem:[#allocation11 + $0x360] sm:$0xff] %v2096
    %2929 = vst [vmem:[#allocation11 + $0x368] sm:$0xff] %v2098
    %2930 = vst [vmem:[#allocation11 + $0x370] sm:$0xff] %v2379
    %2931 = vst [vmem:[#allocation11 + $0x378] sm:$0xff] %v2381
    %2932 = vst [vmem:[#allocation11 + $0x380] sm:$0xff] %v2662
    %2933 = vst [vmem:[#allocation11 + $0x388] sm:$0xff] %v2664
    %2934 = vst [vmem:[#allocation11 + $0x390] sm:$0xff] %v2100
    %2935 = vst [vmem:[#allocation11 + $0x398] sm:$0xff] %v2102
    %2936 = vst [vmem:[#allocation11 + $0x3a0] sm:$0xff] %v2383
    %2937 = vst [vmem:[#allocation11 + $0x3a8] sm:$0xff] %v2385
    %2938 = vst [vmem:[#allocation11 + $0x3b0] sm:$0xff] %v2666
    %2939 = vst [vmem:[#allocation11 + $0x3b8] sm:$0xff] %v2668
    %2940 = vst [vmem:[#allocation11 + $0x3c0] sm:$0xff] %v2106
    %2941 = vst [vmem:[#allocation11 + $0x3c8] sm:$0xff] %v2108
    %2942 = vst [vmem:[#allocation11 + $0x3d0] sm:$0xff] %v2389
    %2943 = vst [vmem:[#allocation11 + $0x3d8] sm:$0xff] %v2391
    %2944 = vst [vmem:[#allocation11 + $0x3e0] sm:$0xff] %v2672
    %2945 = vst [vmem:[#allocation11 + $0x3e8] sm:$0xff] %v2674
    %2946 = vst [vmem:[#allocation11 + $0x3f0] sm:$0xff] %v2110
    %2947 = vst [vmem:[#allocation11 + $0x3f8] sm:$0xff] %v2112
    %2948 = vst [vmem:[#allocation11 + $0x400] sm:$0xff] %v2393
    %2949 = vst [vmem:[#allocation11 + $0x408] sm:$0xff] %v2395
    %2950 = vst [vmem:[#allocation11 + $0x410] sm:$0xff] %v2676
    %2951 = vst [vmem:[#allocation11 + $0x418] sm:$0xff] %v2678
    %2952 = vst [vmem:[#allocation11 + $0x420] sm:$0xff] %v2116
    %2953 = vst [vmem:[#allocation11 + $0x428] sm:$0xff] %v2118
    %2954 = vst [vmem:[#allocation11 + $0x430] sm:$0xff] %v2399
    %2955 = vst [vmem:[#allocation11 + $0x438] sm:$0xff] %v2401
    %2956 = vst [vmem:[#allocation11 + $0x440] sm:$0xff] %v2682
    %2957 = vst [vmem:[#allocation11 + $0x448] sm:$0xff] %v2684
    %2958 = vst [vmem:[#allocation11 + $0x450] sm:$0xff] %v2120
    %2959 = vst [vmem:[#allocation11 + $0x458] sm:$0xff] %v2122
    %2960 = vst [vmem:[#allocation11 + $0x460] sm:$0xff] %v2403
    %2961 = vst [vmem:[#allocation11 + $0x468] sm:$0xff] %v2405
    %2962 = vst [vmem:[#allocation11 + $0x470] sm:$0xff] %v2686
    %2963 = vst [vmem:[#allocation11 + $0x478] sm:$0xff] %v2688
    %2964 = vst [vmem:[#allocation11 + $0x480] sm:$0xff] %v2126
    %2965 = vst [vmem:[#allocation11 + $0x488] sm:$0xff] %v2128
    %2966 = vst [vmem:[#allocation11 + $0x490] sm:$0xff] %v2409
    %2967 = vst [vmem:[#allocation11 + $0x498] sm:$0xff] %v2411
    %2968 = vst [vmem:[#allocation11 + $0x4a0] sm:$0xff] %v2692
    %2969 = vst [vmem:[#allocation11 + $0x4a8] sm:$0xff] %v2694
    %2970 = vst [vmem:[#allocation11 + $0x4b0] sm:$0xff] %v2130
    %2971 = vst [vmem:[#allocation11 + $0x4b8] sm:$0xff] %v2132
    %2972 = vst [vmem:[#allocation11 + $0x4c0] sm:$0xff] %v2413
    %2973 = vst [vmem:[#allocation11 + $0x4c8] sm:$0xff] %v2415
    %2974 = vst [vmem:[#allocation11 + $0x4d0] sm:$0xff] %v2696
    %2975 = vst [vmem:[#allocation11 + $0x4d8] sm:$0xff] %v2698
    %2976 = vst [vmem:[#allocation11 + $0x4e0] sm:$0xff] %v2136
    %2977 = vst [vmem:[#allocation11 + $0x4e8] sm:$0xff] %v2138
    %2978 = vst [vmem:[#allocation11 + $0x4f0] sm:$0xff] %v2419
    %2979 = vst [vmem:[#allocation11 + $0x4f8] sm:$0xff] %v2421
    %2980 = vst [vmem:[#allocation11 + $0x500] sm:$0xff] %v2702
    %2981 = vst [vmem:[#allocation11 + $0x508] sm:$0xff] %v2704
    %2982 = vst [vmem:[#allocation11 + $0x510] sm:$0xff] %v2140
    %2983 = vst [vmem:[#allocation11 + $0x518] sm:$0xff] %v2142
    %2984 = vst [vmem:[#allocation11 + $0x520] sm:$0xff] %v2423
    %2985 = vst [vmem:[#allocation11 + $0x528] sm:$0xff] %v2425
    %2986 = vst [vmem:[#allocation11 + $0x530] sm:$0xff] %v2706
    %2987 = vst [vmem:[#allocation11 + $0x538] sm:$0xff] %v2708
    %2988 = vst [vmem:[#allocation11 + $0x540] sm:$0xff] %v2146
    %2989 = vst [vmem:[#allocation11 + $0x548] sm:$0xff] %v2148
    %2990 = vst [vmem:[#allocation11 + $0x550] sm:$0xff] %v2429
    %2991 = vst [vmem:[#allocation11 + $0x558] sm:$0xff] %v2431
    %2992 = vst [vmem:[#allocation11 + $0x560] sm:$0xff] %v2712
    %2993 = vst [vmem:[#allocation11 + $0x568] sm:$0xff] %v2714
    %2994 = vst [vmem:[#allocation11 + $0x570] sm:$0xff] %v2150
    %2995 = vst [vmem:[#allocation11 + $0x578] sm:$0xff] %v2152
    %2996 = vst [vmem:[#allocation11 + $0x580] sm:$0xff] %v2433
    %2997 = vst [vmem:[#allocation11 + $0x588] sm:$0xff] %v2435
    %2998 = vst [vmem:[#allocation11 + $0x590] sm:$0xff] %v2716
    %2999 = vst [vmem:[#allocation11 + $0x598] sm:$0xff] %v2718
    %3000 = vst [vmem:[#allocation11 + $0x5a0] sm:$0xff] %v2156
    %3001 = vst [vmem:[#allocation11 + $0x5a8] sm:$0xff] %v2158
    %3002 = vst [vmem:[#allocation11 + $0x5b0] sm:$0xff] %v2439
    %3003 = vst [vmem:[#allocation11 + $0x5b8] sm:$0xff] %v2441
    %3004 = vst [vmem:[#allocation11 + $0x5c0] sm:$0xff] %v2722
    %3005 = vst [vmem:[#allocation11 + $0x5c8] sm:$0xff] %v2724
    %3006 = vst [vmem:[#allocation11 + $0x5d0] sm:$0xff] %v2160
    %3007 = vst [vmem:[#allocation11 + $0x5d8] sm:$0xff] %v2162
    %3008 = vst [vmem:[#allocation11 + $0x5e0] sm:$0xff] %v2443
    %3009 = vst [vmem:[#allocation11 + $0x5e8] sm:$0xff] %v2445
    %3010 = vst [vmem:[#allocation11 + $0x5f0] sm:$0xff] %v2726
    %3011 = vst [vmem:[#allocation11 + $0x5f8] sm:$0xff] %v2728
    %3012 = vst [vmem:[#allocation11 + $0x600] sm:$0xff] %v2166
    %3013 = vst [vmem:[#allocation11 + $0x608] sm:$0xff] %v2168
    %3014 = vst [vmem:[#allocation11 + $0x610] sm:$0xff] %v2449
    %3015 = vst [vmem:[#allocation11 + $0x618] sm:$0xff] %v2451
    %3016 = vst [vmem:[#allocation11 + $0x620] sm:$0xff] %v2732
    %3017 = vst [vmem:[#allocation11 + $0x628] sm:$0xff] %v2734
    %3018 = vst [vmem:[#allocation11 + $0x630] sm:$0xff] %v2170
    %3019 = vst [vmem:[#allocation11 + $0x638] sm:$0xff] %v2172
    %3020 = vst [vmem:[#allocation11 + $0x640] sm:$0xff] %v2453
    %3021 = vst [vmem:[#allocation11 + $0x648] sm:$0xff] %v2455
    %3022 = vst [vmem:[#allocation11 + $0x650] sm:$0xff] %v2736
    %3023 = vst [vmem:[#allocation11 + $0x658] sm:$0xff] %v2738
    %3024 = vst [vmem:[#allocation11 + $0x660] sm:$0xff] %v2176
    %3025 = vst [vmem:[#allocation11 + $0x668] sm:$0xff] %v2178
    %3026 = vst [vmem:[#allocation11 + $0x670] sm:$0xff] %v2459
    %3027 = vst [vmem:[#allocation11 + $0x678] sm:$0xff] %v2461
    %3028 = vst [vmem:[#allocation11 + $0x680] sm:$0xff] %v2742
    %3029 = vst [vmem:[#allocation11 + $0x688] sm:$0xff] %v2744
    %3030 = vst [vmem:[#allocation11 + $0x690] sm:$0xff] %v2180
    %3031 = vst [vmem:[#allocation11 + $0x698] sm:$0xff] %v2182
    %3032 = vst [vmem:[#allocation11 + $0x6a0] sm:$0xff] %v2463
    %3033 = vst [vmem:[#allocation11 + $0x6a8] sm:$0xff] %v2465
    %3034 = vst [vmem:[#allocation11 + $0x6b0] sm:$0xff] %v2746
    %3035 = vst [vmem:[#allocation11 + $0x6b8] sm:$0xff] %v2748
    %3036 = vst [vmem:[#allocation11 + $0x6c0] sm:$0xff] %v2186
    %3037 = vst [vmem:[#allocation11 + $0x6c8] sm:$0xff] %v2188
    %3038 = vst [vmem:[#allocation11 + $0x6d0] sm:$0xff] %v2469
    %3039 = vst [vmem:[#allocation11 + $0x6d8] sm:$0xff] %v2471
    %3040 = vst [vmem:[#allocation11 + $0x6e0] sm:$0xff] %v2752
    %3041 = vst [vmem:[#allocation11 + $0x6e8] sm:$0xff] %v2754
    %3042 = vst [vmem:[#allocation11 + $0x6f0] sm:$0xff] %v2190
    %3043 = vst [vmem:[#allocation11 + $0x6f8] sm:$0xff] %v2192
    %3044 = vst [vmem:[#allocation11 + $0x700] sm:$0xff] %v2473
    %3045 = vst [vmem:[#allocation11 + $0x708] sm:$0xff] %v2475
    %3046 = vst [vmem:[#allocation11 + $0x710] sm:$0xff] %v2756
    %3047 = vst [vmem:[#allocation11 + $0x718] sm:$0xff] %v2758
    %3048 = vst [vmem:[#allocation11 + $0x720] sm:$0xff] %v2196
    %3049 = vst [vmem:[#allocation11 + $0x728] sm:$0xff] %v2198
    %3050 = vst [vmem:[#allocation11 + $0x730] sm:$0xff] %v2479
    %3051 = vst [vmem:[#allocation11 + $0x738] sm:$0xff] %v2481
    %3052 = vst [vmem:[#allocation11 + $0x740] sm:$0xff] %v2762
    %3053 = vst [vmem:[#allocation11 + $0x748] sm:$0xff] %v2764
    %3054 = vst [vmem:[#allocation11 + $0x750] sm:$0xff] %v2200
    %3055 = vst [vmem:[#allocation11 + $0x758] sm:$0xff] %v2202
    %3056 = vst [vmem:[#allocation11 + $0x760] sm:$0xff] %v2483
    %3057 = vst [vmem:[#allocation11 + $0x768] sm:$0xff] %v2485
    %3058 = vst [vmem:[#allocation11 + $0x770] sm:$0xff] %v2766
    %3059 = vst [vmem:[#allocation11 + $0x778] sm:$0xff] %v2768
    %3060 = vst [vmem:[#allocation11 + $0x780] sm:$0xff] %v2206
    %3061 = vst [vmem:[#allocation11 + $0x788] sm:$0xff] %v2208
    %3062 = vst [vmem:[#allocation11 + $0x790] sm:$0xff] %v2489
    %3063 = vst [vmem:[#allocation11 + $0x798] sm:$0xff] %v2491
    %3064 = vst [vmem:[#allocation11 + $0x7a0] sm:$0xff] %v2772
    %3065 = vst [vmem:[#allocation11 + $0x7a8] sm:$0xff] %v2774
    %3066 = vst [vmem:[#allocation11 + $0x7b0] sm:$0xff] %v2210
    %3067 = vst [vmem:[#allocation11 + $0x7b8] sm:$0xff] %v2212
    %3068 = vst [vmem:[#allocation11 + $0x7c0] sm:$0xff] %v2493
    %3069 = vst [vmem:[#allocation11 + $0x7c8] sm:$0xff] %v2495
    %3070 = vst [vmem:[#allocation11 + $0x7d0] sm:$0xff] %v2776
    %3071 = vst [vmem:[#allocation11 + $0x7d8] sm:$0xff] %v2778
    %3072 = vst [vmem:[#allocation11 + $0x7e0] sm:$0xff] %v2216
    %3073 = vst [vmem:[#allocation11 + $0x7e8] sm:$0xff] %v2218
    %3074 = vst [vmem:[#allocation11 + $0x7f0] sm:$0xff] %v2499
    %3075 = vst [vmem:[#allocation11 + $0x7f8] sm:$0xff] %v2501
    %3076 = vst [vmem:[#allocation11 + $0x800] sm:$0xff] %v2782
    %3077 = vst [vmem:[#allocation11 + $0x808] sm:$0xff] %v2784
    %3078 = vst [vmem:[#allocation11 + $0x810] sm:$0xff] %v2220
    %3079 = vst [vmem:[#allocation11 + $0x818] sm:$0xff] %v2222
    %3080 = vst [vmem:[#allocation11 + $0x820] sm:$0xff] %v2503
    %3081 = vst [vmem:[#allocation11 + $0x828] sm:$0xff] %v2505
    %3082 = vst [vmem:[#allocation11 + $0x830] sm:$0xff] %v2786
    %3083 = vst [vmem:[#allocation11 + $0x838] sm:$0xff] %v2788
    %3084 = vst [vmem:[#allocation11 + $0x840] sm:$0xff] %v2226
    %3085 = vst [vmem:[#allocation11 + $0x848] sm:$0xff] %v2228
    %3086 = vst [vmem:[#allocation11 + $0x850] sm:$0xff] %v2509
    %3087 = vst [vmem:[#allocation11 + $0x858] sm:$0xff] %v2511
    %3088 = vst [vmem:[#allocation11 + $0x860] sm:$0xff] %v2792
    %3089 = vst [vmem:[#allocation11 + $0x868] sm:$0xff] %v2794
    %3090 = vst [vmem:[#allocation11 + $0x870] sm:$0xff] %v2230
    %3091 = vst [vmem:[#allocation11 + $0x878] sm:$0xff] %v2232
    %3092 = vst [vmem:[#allocation11 + $0x880] sm:$0xff] %v2513
    %3093 = vst [vmem:[#allocation11 + $0x888] sm:$0xff] %v2515
    %3094 = vst [vmem:[#allocation11 + $0x890] sm:$0xff] %v2796
    %3095 = vst [vmem:[#allocation11 + $0x898] sm:$0xff] %v2798
    %3096 = vst [vmem:[#allocation11 + $0x8a0] sm:$0xff] %v2236
    %3097 = vst [vmem:[#allocation11 + $0x8a8] sm:$0xff] %v2238
    %3098 = vst [vmem:[#allocation11 + $0x8b0] sm:$0xff] %v2519
    %3099 = vst [vmem:[#allocation11 + $0x8b8] sm:$0xff] %v2521
    %3100 = vst [vmem:[#allocation11 + $0x8c0] sm:$0xff] %v2802
    %3101 = vst [vmem:[#allocation11 + $0x8c8] sm:$0xff] %v2804
    %3102 = vst [vmem:[#allocation11 + $0x8d0] sm:$0xff] %v2240
    %3103 = vst [vmem:[#allocation11 + $0x8d8] sm:$0xff] %v2242
    %3104 = vst [vmem:[#allocation11 + $0x8e0] sm:$0xff] %v2523
    %3105 = vst [vmem:[#allocation11 + $0x8e8] sm:$0xff] %v2525
    %3106 = vst [vmem:[#allocation11 + $0x8f0] sm:$0xff] %v2806
    %3107 = vst [vmem:[#allocation11 + $0x8f8] sm:$0xff] %v2808
    %3108 = vst [vmem:[#allocation11 + $0x900] sm:$0xff] %v2246
    %3109 = vst [vmem:[#allocation11 + $0x908] sm:$0xff] %v2248
    %3110 = vst [vmem:[#allocation11 + $0x910] sm:$0xff] %v2529
    %3111 = vst [vmem:[#allocation11 + $0x918] sm:$0xff] %v2531
    %3112 = vst [vmem:[#allocation11 + $0x920] sm:$0xff] %v2812
    %3113 = vst [vmem:[#allocation11 + $0x928] sm:$0xff] %v2814
    %3114 = vst [vmem:[#allocation11 + $0x930] sm:$0x3] %v2250
    %3115 = vst [vmem:[#allocation11 + $0x938] sm:$0x3] %v2252
    %3116 = vst [vmem:[#allocation11 + $0x940] sm:$0x3] %v2533
    %3117 = vst [vmem:[#allocation11 + $0x948] sm:$0x3] %v2535
    %3118 = vst [vmem:[#allocation11 + $0x950] sm:$0x3] %v2816
    %3119 = vst [vmem:[#allocation11 + $0x958] sm:$0x3] %v2818
    // Predicated region
    $region42: #{tpu_custom_call.1} parent=1 // pred_check
      _
    $region43: #{tpu_custom_call.1} parent=1 // pred_check_branch
      %3121 = sbr.rel (0) target = $region45
    $region44: #{tpu_custom_call.1} parent=1 // pred_region
      %s3123 = ssub.s32 38400, 38400
      %3124 = vsyncadd [#allocation4], %s3123
      %s3125 = sshll.u32 [#allocation11], 4
      %s3126 = int_to_ptr.vmem [resolvable:$true] %s3125
      %3131 = dma.vmem_to_hbm [thread:$0]  %s3126, 38400, %s5, [#allocation4], 768, 768, 48
    $region45: #{tpu_custom_call.1} parent=1 // pred_fallthru
      _
    // Predicated region
    $region46: #{tpu_custom_call.1} parent=1 // pred_check
      _
    $region47: #{tpu_custom_call.1} parent=1 // pred_check_branch
      %3133 = sbr.rel (0) target = $region49
    $region48: #{tpu_custom_call.1} parent=1 // pred_region
      %3134 = dma.done [#allocation4], 38400
    $region49: #{tpu_custom_call.1} parent=1 // pred_fallthru
      _
    %3135 = vsyncpa [#allocation3], 1
    %3136 = vsyncpa [#allocation6], 1
    %3137 = vsyncpa [#allocation9], 1
    %3138 = vsyncpa [#allocation4], 1

</llo_original>
